<compile_context>
chip_gen: v5e
topology: v5e:2x2
jax: 0.10.0
libtpu: 0.0.40
codegen_flags: <defaults>
</compile_context>

<pallas_src>
import functools

import jax
import jax.numpy as jnp
from jax.experimental import pallas as pl
from jax.experimental.pallas import tpu as pltpu


def _layernorm(x, gamma, beta, eps=1e-6):
    # PyTorch nn.LayerNorm: biased variance over the last dim (module uses eps=1e-6).
    mean = jnp.mean(x, axis=-1, keepdims=True)
    var = jnp.mean((x - mean) ** 2, axis=-1, keepdims=True)
    return (x - mean) * jax.lax.rsqrt(var + eps) * gamma + beta


# ----------------------------------------------------------------------------
# Fused decoder-layer kernel: one (batch, q-tile) per grid step.
# ----------------------------------------------------------------------------
def decoder_layer_kernel(
    xf_ref,                                                    # (S, D) activations
    wq_ref, wkv_ref, wfc_ref, ln1_g_ref, ln1_b_ref,            # attention params
    w1_ref, b1_ref, w2_ref, b2_ref, ln2_g_ref, ln2_b_ref,      # FFN params
    o_ref,                                                     # (TQ, D) output tile
    kh_ref, vh_ref,                                            # VMEM scratch (KV cache)
    *, n_head, d_k, d_v, tq,
):
    cdt = wq_ref.dtype                       # MXU compute dtype (f32 or bf16)
    inv_temp = 1.0 / (d_k ** 0.5)
    S = xf_ref.shape[0]

    # ---- K/V projection: once per batch row, reused by every query tile ----
    @pl.when(pl.program_id(1) == 0)
    def _():
        x_full = xf_ref[...]                                         # (S, D)
        kv = jnp.dot(x_full.astype(cdt), wkv_ref[...],
                     preferred_element_type=jnp.float32)             # (S, H*(dk+dv))
        k = kv[:, : n_head * d_k]
        v = kv[:, n_head * d_k:]
        kh_ref[...] = jnp.swapaxes(k.reshape(S, n_head, d_k), 0, 1).astype(cdt)
        vh_ref[...] = jnp.swapaxes(v.reshape(S, n_head, d_v), 0, 1).astype(cdt)

    # ---- query tile sliced from the resident full-sequence block ----
    q_start = pl.multiple_of(pl.program_id(1) * tq, tq)
    x_q = xf_ref[pl.ds(q_start, tq), :]                              # (TQ, D)

    q = jnp.dot(x_q.astype(cdt), wq_ref[...],
                preferred_element_type=jnp.float32) * inv_temp       # (TQ, H*dk)
    qh = jnp.swapaxes(q.reshape(tq, n_head, d_k), 0, 1).astype(cdt)  # (H,TQ,dk)

    s = jnp.einsum('hqd,hkd->hqk', qh, kh_ref[...],
                   preferred_element_type=jnp.float32)               # (H,TQ,S)
    # TODO(synk): attention_mask support (masked_fill with -1e9 before the max
    # subtraction); the reference call path uses attention_mask=None.
    s = s - jnp.max(s, axis=-1, keepdims=True)
    p = jnp.exp(s)                                                   # unnormalized
    denom = jnp.sum(p, axis=-1, keepdims=True)                       # (H,TQ,1)

    ctx = jnp.einsum('hqk,hkd->hqd', p.astype(cdt), vh_ref[...],
                     preferred_element_type=jnp.float32)             # (H,TQ,dv)
    # Normalize the small context tensor, not the (H,TQ,S) probabilities.
    ctx = ctx * pl.reciprocal(denom, approx=True)
    ctx = jnp.swapaxes(ctx, 0, 1).reshape(tq, n_head * d_v)

    attn = jnp.dot(ctx.astype(cdt), wfc_ref[...],
                   preferred_element_type=jnp.float32)               # (TQ, D)
    attn = attn + x_q.astype(jnp.float32)                            # residual
    attn = _layernorm(attn,
                      ln1_g_ref[...].astype(jnp.float32),
                      ln1_b_ref[...].astype(jnp.float32))

    # ---- position-wise FFN fused into the same kernel (no HBM round trip) ----
    h = jnp.dot(attn.astype(cdt), w1_ref[...],
                preferred_element_type=jnp.float32) + b1_ref[...].astype(jnp.float32)
    h = jnp.maximum(h, 0.0)                                          # ReLU
    y = jnp.dot(h.astype(cdt), w2_ref[...],
                preferred_element_type=jnp.float32) + b2_ref[...].astype(jnp.float32)
    y = y + attn                                                     # residual
    y = _layernorm(y,
                   ln2_g_ref[...].astype(jnp.float32),
                   ln2_b_ref[...].astype(jnp.float32))
    o_ref[...] = y.astype(o_ref.dtype)


# ----------------------------------------------------------------------------
# Wrapper helpers
# ----------------------------------------------------------------------------
def _vmem_limit_bytes():
    # ~75% of physical VMEM, capped at 100 MiB: ~48 MiB on v7x (64 MiB/TC),
    # ~96-100 MiB on v5e/v6e (128 MiB).
    cap = 64 * 1024 * 1024
    try:
        cap = int(getattr(pltpu.get_tpu_info(), "vmem_capacity_bytes", cap))
    except Exception:
        pass
    return min((cap * 3) // 4, 100 * 1024 * 1024)


def _pick_tq(S, cap=128):
    # Largest tile <= cap that divides S and is sublane-aligned (multiple of 8).
    if S <= cap:
        return S
    for t in range(cap, 7, -1):
        if S % t == 0 and t % 8 == 0:
            return t
    return S


# ----------------------------------------------------------------------------
# Wrapper
# ----------------------------------------------------------------------------
def transformer_decoder_layer(x, attn_params, ffn_params, n_head, d_k, d_v,
                              *, tq=None):
    B, S, D = x.shape
    if tq is None:
        tq = _pick_tq(S)
    assert S % tq == 0, (S, tq)
    n_q = S // tq
    cdt = attn_params["wq"].dtype

    params = (attn_params["wq"], attn_params["wkv"], attn_params["fc"],
              attn_params["ln_g"], attn_params["ln_b"],
              ffn_params["w1"], ffn_params["b1"], ffn_params["w2"],
              ffn_params["b2"], ffn_params["ln_g"], ffn_params["ln_b"])

    kern = functools.partial(decoder_layer_kernel,
                             n_head=n_head, d_k=d_k, d_v=d_v, tq=tq)

    def build_and_run(single_buffer_weights):
        def wspec(arr):
            n = arr.ndim

            def idx(b, i):
                return (0,) * n

            if single_buffer_weights:
                # Constant block index -> no point double-buffering weights.
                return pl.BlockSpec(arr.shape, idx, pipeline_mode=pl.Buffered(1))
            return pl.BlockSpec(arr.shape, idx)

        in_specs = [pl.BlockSpec((None, S, D), lambda b, i: (b, 0, 0))]
        in_specs += [wspec(p) for p in params]

        return pl.pallas_call(
            kern,
            out_shape=jax.ShapeDtypeStruct((B, S, D), x.dtype),
            grid=(B, n_q),
            in_specs=in_specs,
            out_specs=pl.BlockSpec((None, tq, D), lambda b, i: (b, i, 0)),
            scratch_shapes=[
                pltpu.VMEM((n_head, S, d_k), cdt),   # cached head-major K
                pltpu.VMEM((n_head, S, d_v), cdt),   # cached head-major V
            ],
            compiler_params=pltpu.CompilerParams(
                # Batch axis parallel (megacore split); query-tile axis is
                # "arbitrary" so the carried KV scratch is legal.
                dimension_semantics=("parallel", "arbitrary"),
                vmem_limit_bytes=_vmem_limit_bytes(),
            ),
        )(x, *params)

    try:
        return build_and_run(single_buffer_weights=True)
    except Exception:
        # Fallback if this JAX build rejects pipeline_mode=pl.Buffered(1).
        return build_and_run(single_buffer_weights=False)


# ----------------------------------------------------------------------------
# Deterministic parameter construction (K and V projection weights are fused).
# For real configs keep H*d_k, H*d_v, D, d_inner multiples of 128/256 so the
# kv split and MXU tiles stay lane-aligned.
# ----------------------------------------------------------------------------
def make_params(key, d_model, d_inner, n_head, d_k, d_v, dtype=jnp.float32):
    ks = jax.random.split(key, 6)
    scale = 0.05
    wk = scale * jax.random.normal(ks[1], (d_model, n_head * d_k), dtype)
    wv = scale * jax.random.normal(ks[2], (d_model, n_head * d_v), dtype)
    attn = {
        "wq": scale * jax.random.normal(ks[0], (d_model, n_head * d_k), dtype),
        "wkv": jnp.concatenate([wk, wv], axis=1),          # (D, H*(dk+dv))
        "fc": scale * jax.random.normal(ks[3], (n_head * d_v, d_model), dtype),
        "ln_g": jnp.ones((1, d_model), dtype),
        "ln_b": jnp.zeros((1, d_model), dtype),
    }
    ffn = {
        "w1": scale * jax.random.normal(ks[4], (d_model, d_inner), dtype),
        "b1": jnp.zeros((1, d_inner), dtype),
        "w2": scale * jax.random.normal(ks[5], (d_inner, d_model), dtype),
        "b2": jnp.zeros((1, d_model), dtype),
        "ln_g": jnp.ones((1, d_model), dtype),
        "ln_b": jnp.zeros((1, d_model), dtype),
    }
    return attn, ffn


# ----------------------------------------------------------------------------
# Pure-JAX reference (same math, exact softmax / LN) for a sanity check.
# ----------------------------------------------------------------------------
def _reference(x, ap, fp, n_head, d_k, d_v):
    B, S, D = x.shape
    q = x @ ap["wq"]
    kv = x @ ap["wkv"]
    k = kv[..., : n_head * d_k]
    v = kv[..., n_head * d_k:]
    q = q.reshape(B, S, n_head, d_k).transpose(0, 2, 1, 3) / (d_k ** 0.5)
    k = k.reshape(B, S, n_head, d_k).transpose(0, 2, 1, 3)
    v = v.reshape(B, S, n_head, d_v).transpose(0, 2, 1, 3)
    s = jnp.einsum('bhqd,bhkd->bhqk', q, k)
    p = jax.nn.softmax(s, axis=-1)
    ctx = jnp.einsum('bhqk,bhkd->bhqd', p, v).transpose(0, 2, 1, 3).reshape(B, S, -1)
    a = _layernorm(ctx @ ap["fc"] + x, ap["ln_g"], ap["ln_b"])
    h = jnp.maximum(a @ fp["w1"] + fp["b1"], 0.0)
    y = _layernorm(h @ fp["w2"] + fp["b2"] + a, fp["ln_g"], fp["ln_b"])
    return y


if __name__ == "__main__":
    B, S = 2, 8
    d_model, d_inner = 32, 64
    n_head, d_k, d_v = 4, 8, 8

    key = jax.random.PRNGKey(0)
    k_x, k_p = jax.random.split(key)
    x = jax.random.normal(k_x, (B, S, d_model), jnp.float32)
    attn_params, ffn_params = make_params(k_p, d_model, d_inner, n_head, d_k, d_v)

    out = transformer_decoder_layer(x, attn_params, ffn_params, n_head, d_k, d_v)
    out = jax.block_until_ready(out)
    assert out.shape == (B, S, d_model)

    ref = _reference(x, attn_params, ffn_params, n_head, d_k, d_v)
    max_err = float(jnp.max(jnp.abs(out - ref)))
    assert jnp.allclose(out, ref, atol=1e-2, rtol=1e-2), max_err
    print("KERNEL_OK")
</pallas_src>

<mosaic_0001>
module attributes {stable_mosaic.version = 11 : i64} {
  func.func @decoder_layer_kernel(%arg0: i32, %arg1: i32, %arg2: memref<1x8x32xf32, #tpu.memory_space<vmem>>, %arg3: memref<32x32xf32, #tpu.memory_space<vmem>>, %arg4: memref<32x64xf32, #tpu.memory_space<vmem>>, %arg5: memref<32x32xf32, #tpu.memory_space<vmem>>, %arg6: memref<1x32xf32, #tpu.memory_space<vmem>>, %arg7: memref<1x32xf32, #tpu.memory_space<vmem>>, %arg8: memref<32x64xf32, #tpu.memory_space<vmem>>, %arg9: memref<1x64xf32, #tpu.memory_space<vmem>>, %arg10: memref<64x32xf32, #tpu.memory_space<vmem>>, %arg11: memref<1x32xf32, #tpu.memory_space<vmem>>, %arg12: memref<1x32xf32, #tpu.memory_space<vmem>>, %arg13: memref<1x32xf32, #tpu.memory_space<vmem>>, %arg14: memref<1x8x32xf32, #tpu.memory_space<vmem>>, %arg15: memref<4x8x8xf32, #tpu.memory_space<vmem>>, %arg16: memref<4x8x8xf32, #tpu.memory_space<vmem>>) attributes {dimension_semantics = [#tpu.dimension_semantics<parallel>, #tpu.dimension_semantics<arbitrary>], iteration_bounds = array<i64: 2, 1>, scalar_prefetch = 0 : i64, scratch_operands = 2 : i64, tpu.core_type = #tpu.core_type<tc>, window_params = [{transform_indices = @transform_0, window_bounds = array<i64: 1, 8, 32>}, {pipeline_mode = #tpu.pipeline_mode<synchronous>, transform_indices = @transform_1, window_bounds = array<i64: 32, 32>}, {pipeline_mode = #tpu.pipeline_mode<synchronous>, transform_indices = @transform_2, window_bounds = array<i64: 32, 64>}, {pipeline_mode = #tpu.pipeline_mode<synchronous>, transform_indices = @transform_3, window_bounds = array<i64: 32, 32>}, {pipeline_mode = #tpu.pipeline_mode<synchronous>, transform_indices = @transform_4, window_bounds = array<i64: 1, 32>}, {pipeline_mode = #tpu.pipeline_mode<synchronous>, transform_indices = @transform_5, window_bounds = array<i64: 1, 32>}, {pipeline_mode = #tpu.pipeline_mode<synchronous>, transform_indices = @transform_6, window_bounds = array<i64: 32, 64>}, {pipeline_mode = #tpu.pipeline_mode<synchronous>, transform_indices = @transform_7, window_bounds = array<i64: 1, 64>}, {pipeline_mode = #tpu.pipeline_mode<synchronous>, transform_indices = @transform_8, window_bounds = array<i64: 64, 32>}, {pipeline_mode = #tpu.pipeline_mode<synchronous>, transform_indices = @transform_9, window_bounds = array<i64: 1, 32>}, {pipeline_mode = #tpu.pipeline_mode<synchronous>, transform_indices = @transform_10, window_bounds = array<i64: 1, 32>}, {pipeline_mode = #tpu.pipeline_mode<synchronous>, transform_indices = @transform_11, window_bounds = array<i64: 1, 32>}, {transform_indices = @transform_12, window_bounds = array<i64: 1, 8, 32>}]} {
    %c0_i32 = arith.constant 0 : i32
    %0 = arith.cmpi eq, %arg1, %c0_i32 : i32
    %1 = arith.extui %0 : i1 to i32
    %c0_i32_0 = arith.constant 0 : i32
    %2 = arith.cmpi ne, %1, %c0_i32_0 : i32
    scf.if %2 {
      %c0_50 = arith.constant 0 : index
      %c0_51 = arith.constant 0 : index
      %c0_52 = arith.constant 0 : index
      %97 = vector.load %arg2[%c0_50, %c0_51, %c0_52] : memref<1x8x32xf32, #tpu.memory_space<vmem>>, vector<1x8x32xf32>
      %98 = vector.shape_cast %97 : vector<1x8x32xf32> to vector<8x32xf32>
      %c0_53 = arith.constant 0 : index
      %c0_54 = arith.constant 0 : index
      %99 = vector.load %arg4[%c0_53, %c0_54] : memref<32x64xf32, #tpu.memory_space<vmem>>, vector<32x64xf32>
      %cst_55 = arith.constant dense<0.000000e+00> : vector<8x64xf32>
      %100 = tpu.matmul %98, %99, %cst_55 {dimension_numbers = #tpu.dot_dimension_numbers<[1], [0], [0], [1], [0, 0, 1, 1], [], []>} : vector<8x32xf32>, vector<32x64xf32>, vector<8x64xf32> -> vector<8x64xf32>
      %101 = vector.extract_strided_slice %100 {offsets = [0, 0], sizes = [8, 32], strides = [1, 1]} : vector<8x64xf32> to vector<8x32xf32>
      %102 = vector.extract_strided_slice %100 {offsets = [0, 32], sizes = [8, 32], strides = [1, 1]} : vector<8x64xf32> to vector<8x32xf32>
      %103 = vector.shape_cast %101 : vector<8x32xf32> to vector<8x4x8xf32>
      %104 = tpu.transpose %103, [1, 0, 2] : vector<8x4x8xf32> -> vector<4x8x8xf32>
      %c0_56 = arith.constant 0 : index
      %c0_57 = arith.constant 0 : index
      %c0_58 = arith.constant 0 : index
      %105 = vector.load %arg15[%c0_56, %c0_57, %c0_58] : memref<4x8x8xf32, #tpu.memory_space<vmem>>, vector<4x8x8xf32>
      tpu.vector_store %arg15[%c0_56, %c0_57, %c0_58], %104 {strides = array<i32>} : memref<4x8x8xf32, #tpu.memory_space<vmem>>, vector<4x8x8xf32>,
      %106 = vector.shape_cast %102 : vector<8x32xf32> to vector<8x4x8xf32>
      %107 = tpu.transpose %106, [1, 0, 2] : vector<8x4x8xf32> -> vector<4x8x8xf32>
      %c0_59 = arith.constant 0 : index
      %c0_60 = arith.constant 0 : index
      %c0_61 = arith.constant 0 : index
      %108 = vector.load %arg16[%c0_59, %c0_60, %c0_61] : memref<4x8x8xf32, #tpu.memory_space<vmem>>, vector<4x8x8xf32>
      tpu.vector_store %arg16[%c0_59, %c0_60, %c0_61], %107 {strides = array<i32>} : memref<4x8x8xf32, #tpu.memory_space<vmem>>, vector<4x8x8xf32>,
    } else {
    }
    %c8_i32 = arith.constant 8 : i32
    %3 = arith.muli %arg1, %c8_i32 : i32
    %4 = tpu.assume_multiple %3, 8 : i32
    %c0 = arith.constant 0 : index
    %5 = arith.index_cast %4 : i32 to index
    %c0_1 = arith.constant 0 : index
    %6 = vector.load %arg2[%c0, %5, %c0_1] : memref<1x8x32xf32, #tpu.memory_space<vmem>>, vector<1x8x32xf32>
    %7 = vector.shape_cast %6 : vector<1x8x32xf32> to vector<8x32xf32>
    %c0_2 = arith.constant 0 : index
    %c0_3 = arith.constant 0 : index
    %8 = vector.load %arg3[%c0_2, %c0_3] : memref<32x32xf32, #tpu.memory_space<vmem>>, vector<32x32xf32>
    %cst = arith.constant dense<0.000000e+00> : vector<8x32xf32>
    %9 = tpu.matmul %7, %8, %cst {dimension_numbers = #tpu.dot_dimension_numbers<[1], [0], [0], [1], [0, 0, 1, 1], [], []>} : vector<8x32xf32>, vector<32x32xf32>, vector<8x32xf32> -> vector<8x32xf32>
    %cst_4 = arith.constant 0.353553385 : f32
    %10 = vector.broadcast %cst_4 : f32 to vector<8x32xf32>
    %11 = arith.mulf %9, %10 : vector<8x32xf32>
    %12 = vector.shape_cast %11 : vector<8x32xf32> to vector<8x4x8xf32>
    %13 = tpu.transpose %12, [1, 0, 2] : vector<8x4x8xf32> -> vector<4x8x8xf32>
    %c0_5 = arith.constant 0 : index
    %c0_6 = arith.constant 0 : index
    %c0_7 = arith.constant 0 : index
    %14 = vector.load %arg15[%c0_5, %c0_6, %c0_7] : memref<4x8x8xf32, #tpu.memory_space<vmem>>, vector<4x8x8xf32>
    "tpu.trace_start"() <{level = 10 : i32, message = "hqd,hkd->hqk"}> : () -> ()
    %cst_8 = arith.constant dense<0.000000e+00> : vector<4x8x8xf32>
    %15 = tpu.matmul %13, %14, %cst_8 {dimension_numbers = #tpu.dot_dimension_numbers<[2], [2], [1], [1], [0, 0, 0, 1, 1, 1], [0], [0]>} : vector<4x8x8xf32>, vector<4x8x8xf32>, vector<4x8x8xf32> -> vector<4x8x8xf32>
    "tpu.trace_stop"() : () -> ()
    %cst_9 = arith.constant dense<0xFF800000> : vector<4x8xf32>
    %16 = vector.multi_reduction <maximumf>, %15, %cst_9 [2] : vector<4x8x8xf32> to vector<4x8xf32>
    %17 = vector.shape_cast %16 : vector<4x8xf32> to vector<4x8x1xf32>
    %18 = vector.broadcast %17 : vector<4x8x1xf32> to vector<4x8x8xf32>
    %19 = arith.subf %15, %18 : vector<4x8x8xf32>
    %20 = math.exp %19 : vector<4x8x8xf32>
    %cst_10 = arith.constant dense<0.000000e+00> : vector<4x8xf32>
    %21 = vector.multi_reduction <add>, %20, %cst_10 [2] : vector<4x8x8xf32> to vector<4x8xf32>
    %22 = vector.shape_cast %21 : vector<4x8xf32> to vector<4x8x1xf32>
    %c0_11 = arith.constant 0 : index
    %c0_12 = arith.constant 0 : index
    %c0_13 = arith.constant 0 : index
    %23 = vector.load %arg16[%c0_11, %c0_12, %c0_13] : memref<4x8x8xf32, #tpu.memory_space<vmem>>, vector<4x8x8xf32>
    "tpu.trace_start"() <{level = 10 : i32, message = "hqk,hkd->hqd"}> : () -> ()
    %cst_14 = arith.constant dense<0.000000e+00> : vector<4x8x8xf32>
    %24 = tpu.matmul %20, %23, %cst_14 {dimension_numbers = #tpu.dot_dimension_numbers<[2], [1], [1], [2], [0, 0, 0, 1, 1, 2], [0], [0]>} : vector<4x8x8xf32>, vector<4x8x8xf32>, vector<4x8x8xf32> -> vector<4x8x8xf32>
    "tpu.trace_stop"() : () -> ()
    %25 = tpu.reciprocal %22 {approx = true} : vector<4x8x1xf32> -> vector<4x8x1xf32>
    %26 = vector.broadcast %25 : vector<4x8x1xf32> to vector<4x8x8xf32>
    %27 = arith.mulf %24, %26 : vector<4x8x8xf32>
    %28 = tpu.transpose %27, [1, 0, 2] : vector<4x8x8xf32> -> vector<8x4x8xf32>
    %29 = vector.shape_cast %28 : vector<8x4x8xf32> to vector<8x32xf32>
    %c0_15 = arith.constant 0 : index
    %c0_16 = arith.constant 0 : index
    %30 = vector.load %arg5[%c0_15, %c0_16] : memref<32x32xf32, #tpu.memory_space<vmem>>, vector<32x32xf32>
    %cst_17 = arith.constant dense<0.000000e+00> : vector<8x32xf32>
    %31 = tpu.matmul %29, %30, %cst_17 {dimension_numbers = #tpu.dot_dimension_numbers<[1], [0], [0], [1], [0, 0, 1, 1], [], []>} : vector<8x32xf32>, vector<32x32xf32>, vector<8x32xf32> -> vector<8x32xf32>
    %32 = arith.addf %31, %7 : vector<8x32xf32>
    %c0_18 = arith.constant 0 : index
    %c0_19 = arith.constant 0 : index
    %33 = vector.load %arg6[%c0_18, %c0_19] : memref<1x32xf32, #tpu.memory_space<vmem>>, vector<1x32xf32>
    %c0_20 = arith.constant 0 : index
    %c0_21 = arith.constant 0 : index
    %34 = vector.load %arg7[%c0_20, %c0_21] : memref<1x32xf32, #tpu.memory_space<vmem>>, vector<1x32xf32>
    %cst_22 = arith.constant dense<0.000000e+00> : vector<8xf32>
    %35 = vector.multi_reduction <add>, %32, %cst_22 [1] : vector<8x32xf32> to vector<8xf32>
    %36 = vector.shape_cast %35 : vector<8xf32> to vector<8x1xf32>
    %cst_23 = arith.constant 3.200000e+01 : f32
    %37 = vector.broadcast %cst_23 : f32 to vector<8x1xf32>
    %38 = arith.divf %36, %37 : vector<8x1xf32>
    %39 = vector.broadcast %38 : vector<8x1xf32> to vector<8x32xf32>
    %40 = arith.subf %32, %39 : vector<8x32xf32>
    %41 = arith.mulf %40, %40 : vector<8x32xf32>
    %cst_24 = arith.constant dense<0.000000e+00> : vector<8xf32>
    %42 = vector.multi_reduction <add>, %41, %cst_24 [1] : vector<8x32xf32> to vector<8xf32>
    %43 = vector.shape_cast %42 : vector<8xf32> to vector<8x1xf32>
    %cst_25 = arith.constant 3.200000e+01 : f32
    %44 = vector.broadcast %cst_25 : f32 to vector<8x1xf32>
    %45 = arith.divf %43, %44 : vector<8x1xf32>
    %46 = vector.broadcast %38 : vector<8x1xf32> to vector<8x32xf32>
    %47 = arith.subf %32, %46 : vector<8x32xf32>
    %cst_26 = arith.constant 9.99999997E-7 : f32
    %48 = vector.broadcast %cst_26 : f32 to vector<8x1xf32>
    %49 = arith.addf %45, %48 : vector<8x1xf32>
    %50 = math.rsqrt %49 : vector<8x1xf32>
    %51 = vector.broadcast %50 : vector<8x1xf32> to vector<8x32xf32>
    %52 = arith.mulf %47, %51 : vector<8x32xf32>
    %53 = vector.broadcast %33 : vector<1x32xf32> to vector<8x32xf32>
    %54 = arith.mulf %52, %53 : vector<8x32xf32>
    %55 = vector.broadcast %34 : vector<1x32xf32> to vector<8x32xf32>
    %56 = arith.addf %54, %55 : vector<8x32xf32>
    %c0_27 = arith.constant 0 : index
    %c0_28 = arith.constant 0 : index
    %57 = vector.load %arg8[%c0_27, %c0_28] : memref<32x64xf32, #tpu.memory_space<vmem>>, vector<32x64xf32>
    %cst_29 = arith.constant dense<0.000000e+00> : vector<8x64xf32>
    %58 = tpu.matmul %56, %57, %cst_29 {dimension_numbers = #tpu.dot_dimension_numbers<[1], [0], [0], [1], [0, 0, 1, 1], [], []>} : vector<8x32xf32>, vector<32x64xf32>, vector<8x64xf32> -> vector<8x64xf32>
    %c0_30 = arith.constant 0 : index
    %c0_31 = arith.constant 0 : index
    %59 = vector.load %arg9[%c0_30, %c0_31] : memref<1x64xf32, #tpu.memory_space<vmem>>, vector<1x64xf32>
    %60 = vector.broadcast %59 : vector<1x64xf32> to vector<8x64xf32>
    %61 = arith.addf %58, %60 : vector<8x64xf32>
    %cst_32 = arith.constant 0.000000e+00 : f32
    %62 = vector.broadcast %cst_32 : f32 to vector<8x64xf32>
    %63 = arith.maximumf %61, %62 : vector<8x64xf32>
    %c0_33 = arith.constant 0 : index
    %c0_34 = arith.constant 0 : index
    %64 = vector.load %arg10[%c0_33, %c0_34] : memref<64x32xf32, #tpu.memory_space<vmem>>, vector<64x32xf32>
    %cst_35 = arith.constant dense<0.000000e+00> : vector<8x32xf32>
    %65 = tpu.matmul %63, %64, %cst_35 {dimension_numbers = #tpu.dot_dimension_numbers<[1], [0], [0], [1], [0, 0, 1, 1], [], []>} : vector<8x64xf32>, vector<64x32xf32>, vector<8x32xf32> -> vector<8x32xf32>
    %c0_36 = arith.constant 0 : index
    %c0_37 = arith.constant 0 : index
    %66 = vector.load %arg11[%c0_36, %c0_37] : memref<1x32xf32, #tpu.memory_space<vmem>>, vector<1x32xf32>
    %67 = vector.broadcast %66 : vector<1x32xf32> to vector<8x32xf32>
    %68 = arith.addf %65, %67 : vector<8x32xf32>
    %69 = arith.addf %68, %56 : vector<8x32xf32>
    %c0_38 = arith.constant 0 : index
    %c0_39 = arith.constant 0 : index
    %70 = vector.load %arg12[%c0_38, %c0_39] : memref<1x32xf32, #tpu.memory_space<vmem>>, vector<1x32xf32>
    %c0_40 = arith.constant 0 : index
    %c0_41 = arith.constant 0 : index
    %71 = vector.load %arg13[%c0_40, %c0_41] : memref<1x32xf32, #tpu.memory_space<vmem>>, vector<1x32xf32>
    %cst_42 = arith.constant dense<0.000000e+00> : vector<8xf32>
    %72 = vector.multi_reduction <add>, %69, %cst_42 [1] : vector<8x32xf32> to vector<8xf32>
    %73 = vector.shape_cast %72 : vector<8xf32> to vector<8x1xf32>
    %cst_43 = arith.constant 3.200000e+01 : f32
    %74 = vector.broadcast %cst_43 : f32 to vector<8x1xf32>
    %75 = arith.divf %73, %74 : vector<8x1xf32>
    %76 = vector.broadcast %75 : vector<8x1xf32> to vector<8x32xf32>
    %77 = arith.subf %69, %76 : vector<8x32xf32>
    %78 = arith.mulf %77, %77 : vector<8x32xf32>
    %cst_44 = arith.constant dense<0.000000e+00> : vector<8xf32>
    %79 = vector.multi_reduction <add>, %78, %cst_44 [1] : vector<8x32xf32> to vector<8xf32>
    %80 = vector.shape_cast %79 : vector<8xf32> to vector<8x1xf32>
    %cst_45 = arith.constant 3.200000e+01 : f32
    %81 = vector.broadcast %cst_45 : f32 to vector<8x1xf32>
    %82 = arith.divf %80, %81 : vector<8x1xf32>
    %83 = vector.broadcast %75 : vector<8x1xf32> to vector<8x32xf32>
    %84 = arith.subf %69, %83 : vector<8x32xf32>
    %cst_46 = arith.constant 9.99999997E-7 : f32
    %85 = vector.broadcast %cst_46 : f32 to vector<8x1xf32>
    %86 = arith.addf %82, %85 : vector<8x1xf32>
    %87 = math.rsqrt %86 : vector<8x1xf32>
    %88 = vector.broadcast %87 : vector<8x1xf32> to vector<8x32xf32>
    %89 = arith.mulf %84, %88 : vector<8x32xf32>
    %90 = vector.broadcast %70 : vector<1x32xf32> to vector<8x32xf32>
    %91 = arith.mulf %89, %90 : vector<8x32xf32>
    %92 = vector.broadcast %71 : vector<1x32xf32> to vector<8x32xf32>
    %93 = arith.addf %91, %92 : vector<8x32xf32>
    %c0_47 = arith.constant 0 : index
    %c0_48 = arith.constant 0 : index
    %c0_49 = arith.constant 0 : index
    %94 = vector.load %arg14[%c0_47, %c0_48, %c0_49] : memref<1x8x32xf32, #tpu.memory_space<vmem>>, vector<1x8x32xf32>
    %95 = vector.shape_cast %94 : vector<1x8x32xf32> to vector<8x32xf32>
    %96 = vector.shape_cast %93 : vector<8x32xf32> to vector<1x8x32xf32>
    tpu.vector_store %arg14[%c0_47, %c0_48, %c0_49], %96 {strides = array<i32>} : memref<1x8x32xf32, #tpu.memory_space<vmem>>, vector<1x8x32xf32>,
    return
  }
  func.func @transform_0(%arg0: i32, %arg1: i32) -> (i32, i32, i32) {
    %c0_i32 = arith.constant 0 : i32
    %c0_i32_0 = arith.constant 0 : i32
    %c0_i32_1 = arith.constant 0 : i32
    return %arg0, %c0_i32, %c0_i32_0 : i32, i32, i32
  }
  func.func @transform_1(%arg0: i32, %arg1: i32) -> (i32, i32) {
    %c0_i32 = arith.constant 0 : i32
    %c0_i32_0 = arith.constant 0 : i32
    %c0_i32_1 = arith.constant 0 : i32
    return %c0_i32, %c0_i32_0 : i32, i32
  }
  func.func @transform_2(%arg0: i32, %arg1: i32) -> (i32, i32) {
    %c0_i32 = arith.constant 0 : i32
    %c0_i32_0 = arith.constant 0 : i32
    %c0_i32_1 = arith.constant 0 : i32
    return %c0_i32, %c0_i32_0 : i32, i32
  }
  func.func @transform_3(%arg0: i32, %arg1: i32) -> (i32, i32) {
    %c0_i32 = arith.constant 0 : i32
    %c0_i32_0 = arith.constant 0 : i32
    %c0_i32_1 = arith.constant 0 : i32
    return %c0_i32, %c0_i32_0 : i32, i32
  }
  func.func @transform_4(%arg0: i32, %arg1: i32) -> (i32, i32) {
    %c0_i32 = arith.constant 0 : i32
    %c0_i32_0 = arith.constant 0 : i32
    %c0_i32_1 = arith.constant 0 : i32
    return %c0_i32, %c0_i32_0 : i32, i32
  }
  func.func @transform_5(%arg0: i32, %arg1: i32) -> (i32, i32) {
    %c0_i32 = arith.constant 0 : i32
    %c0_i32_0 = arith.constant 0 : i32
    %c0_i32_1 = arith.constant 0 : i32
    return %c0_i32, %c0_i32_0 : i32, i32
  }
  func.func @transform_6(%arg0: i32, %arg1: i32) -> (i32, i32) {
    %c0_i32 = arith.constant 0 : i32
    %c0_i32_0 = arith.constant 0 : i32
    %c0_i32_1 = arith.constant 0 : i32
    return %c0_i32, %c0_i32_0 : i32, i32
  }
  func.func @transform_7(%arg0: i32, %arg1: i32) -> (i32, i32) {
    %c0_i32 = arith.constant 0 : i32
    %c0_i32_0 = arith.constant 0 : i32
    %c0_i32_1 = arith.constant 0 : i32
    return %c0_i32, %c0_i32_0 : i32, i32
  }
  func.func @transform_8(%arg0: i32, %arg1: i32) -> (i32, i32) {
    %c0_i32 = arith.constant 0 : i32
    %c0_i32_0 = arith.constant 0 : i32
    %c0_i32_1 = arith.constant 0 : i32
    return %c0_i32, %c0_i32_0 : i32, i32
  }
  func.func @transform_9(%arg0: i32, %arg1: i32) -> (i32, i32) {
    %c0_i32 = arith.constant 0 : i32
    %c0_i32_0 = arith.constant 0 : i32
    %c0_i32_1 = arith.constant 0 : i32
    return %c0_i32, %c0_i32_0 : i32, i32
  }
  func.func @transform_10(%arg0: i32, %arg1: i32) -> (i32, i32) {
    %c0_i32 = arith.constant 0 : i32
    %c0_i32_0 = arith.constant 0 : i32
    %c0_i32_1 = arith.constant 0 : i32
    return %c0_i32, %c0_i32_0 : i32, i32
  }
  func.func @transform_11(%arg0: i32, %arg1: i32) -> (i32, i32) {
    %c0_i32 = arith.constant 0 : i32
    %c0_i32_0 = arith.constant 0 : i32
    %c0_i32_1 = arith.constant 0 : i32
    return %c0_i32, %c0_i32_0 : i32, i32
  }
  func.func @transform_12(%arg0: i32, %arg1: i32) -> (i32, i32, i32) {
    %c0_i32 = arith.constant 0 : i32
    %c0_i32_0 = arith.constant 0 : i32
    return %arg0, %arg1, %c0_i32 : i32, i32, i32
  }
}

module attributes {stable_mosaic.version = 11 : i64} {
  func.func @decoder_layer_kernel(%arg0: i32, %arg1: i32, %arg2: memref<1x8x32xf32, #tpu.memory_space<vmem>>, %arg3: memref<32x32xf32, #tpu.memory_space<vmem>>, %arg4: memref<32x64xf32, #tpu.memory_space<vmem>>, %arg5: memref<32x32xf32, #tpu.memory_space<vmem>>, %arg6: memref<1x32xf32, #tpu.memory_space<vmem>>, %arg7: memref<1x32xf32, #tpu.memory_space<vmem>>, %arg8: memref<32x64xf32, #tpu.memory_space<vmem>>, %arg9: memref<1x64xf32, #tpu.memory_space<vmem>>, %arg10: memref<64x32xf32, #tpu.memory_space<vmem>>, %arg11: memref<1x32xf32, #tpu.memory_space<vmem>>, %arg12: memref<1x32xf32, #tpu.memory_space<vmem>>, %arg13: memref<1x32xf32, #tpu.memory_space<vmem>>, %arg14: memref<1x8x32xf32, #tpu.memory_space<vmem>>, %arg15: memref<4x8x8xf32, #tpu.memory_space<vmem>>, %arg16: memref<4x8x8xf32, #tpu.memory_space<vmem>>) attributes {dimension_semantics = [#tpu.dimension_semantics<parallel>, #tpu.dimension_semantics<arbitrary>], iteration_bounds = array<i64: 2, 1>, scalar_prefetch = 0 : i64, scratch_operands = 2 : i64, tpu.core_type = #tpu.core_type<tc>, window_params = [{transform_indices = @transform_0, window_bounds = array<i64: 1, 8, 32>}, {pipeline_mode = #tpu.pipeline_mode<synchronous>, transform_indices = @transform_1, window_bounds = array<i64: 32, 32>}, {pipeline_mode = #tpu.pipeline_mode<synchronous>, transform_indices = @transform_2, window_bounds = array<i64: 32, 64>}, {pipeline_mode = #tpu.pipeline_mode<synchronous>, transform_indices = @transform_3, window_bounds = array<i64: 32, 32>}, {pipeline_mode = #tpu.pipeline_mode<synchronous>, transform_indices = @transform_4, window_bounds = array<i64: 1, 32>}, {pipeline_mode = #tpu.pipeline_mode<synchronous>, transform_indices = @transform_5, window_bounds = array<i64: 1, 32>}, {pipeline_mode = #tpu.pipeline_mode<synchronous>, transform_indices = @transform_6, window_bounds = array<i64: 32, 64>}, {pipeline_mode = #tpu.pipeline_mode<synchronous>, transform_indices = @transform_7, window_bounds = array<i64: 1, 64>}, {pipeline_mode = #tpu.pipeline_mode<synchronous>, transform_indices = @transform_8, window_bounds = array<i64: 64, 32>}, {pipeline_mode = #tpu.pipeline_mode<synchronous>, transform_indices = @transform_9, window_bounds = array<i64: 1, 32>}, {pipeline_mode = #tpu.pipeline_mode<synchronous>, transform_indices = @transform_10, window_bounds = array<i64: 1, 32>}, {pipeline_mode = #tpu.pipeline_mode<synchronous>, transform_indices = @transform_11, window_bounds = array<i64: 1, 32>}, {transform_indices = @transform_12, window_bounds = array<i64: 1, 8, 32>}]} {
    %c0_i32 = arith.constant 0 : i32
    %0 = arith.cmpi eq, %arg1, %c0_i32 : i32
    %1 = arith.extui %0 : i1 to i32
    %c0_i32_0 = arith.constant 0 : i32
    %2 = arith.cmpi ne, %1, %c0_i32_0 : i32
    scf.if %2 {
      %c0_50 = arith.constant 0 : index
      %c0_51 = arith.constant 0 : index
      %c0_52 = arith.constant 0 : index
      %97 = vector.load %arg2[%c0_50, %c0_51, %c0_52] : memref<1x8x32xf32, #tpu.memory_space<vmem>>, vector<1x8x32xf32>
      %98 = vector.shape_cast %97 : vector<1x8x32xf32> to vector<8x32xf32>
      %c0_53 = arith.constant 0 : index
      %c0_54 = arith.constant 0 : index
      %99 = vector.load %arg4[%c0_53, %c0_54] : memref<32x64xf32, #tpu.memory_space<vmem>>, vector<32x64xf32>
      %cst_55 = arith.constant dense<0.000000e+00> : vector<8x64xf32>
      %100 = tpu.matmul %98, %99, %cst_55 {dimension_numbers = #tpu.dot_dimension_numbers<[1], [0], [0], [1], [0, 0, 1, 1], [], []>} : vector<8x32xf32>, vector<32x64xf32>, vector<8x64xf32> -> vector<8x64xf32>
      %101 = vector.extract_strided_slice %100 {offsets = [0, 0], sizes = [8, 32], strides = [1, 1]} : vector<8x64xf32> to vector<8x32xf32>
      %102 = vector.extract_strided_slice %100 {offsets = [0, 32], sizes = [8, 32], strides = [1, 1]} : vector<8x64xf32> to vector<8x32xf32>
      %103 = vector.shape_cast %101 : vector<8x32xf32> to vector<8x4x8xf32>
      %104 = tpu.transpose %103, [1, 0, 2] : vector<8x4x8xf32> -> vector<4x8x8xf32>
      %c0_56 = arith.constant 0 : index
      %c0_57 = arith.constant 0 : index
      %c0_58 = arith.constant 0 : index
      %105 = vector.load %arg15[%c0_56, %c0_57, %c0_58] : memref<4x8x8xf32, #tpu.memory_space<vmem>>, vector<4x8x8xf32>
      tpu.vector_store %arg15[%c0_56, %c0_57, %c0_58], %104 {strides = array<i32>} : memref<4x8x8xf32, #tpu.memory_space<vmem>>, vector<4x8x8xf32>,
      %106 = vector.shape_cast %102 : vector<8x32xf32> to vector<8x4x8xf32>
      %107 = tpu.transpose %106, [1, 0, 2] : vector<8x4x8xf32> -> vector<4x8x8xf32>
      %c0_59 = arith.constant 0 : index
      %c0_60 = arith.constant 0 : index
      %c0_61 = arith.constant 0 : index
      %108 = vector.load %arg16[%c0_59, %c0_60, %c0_61] : memref<4x8x8xf32, #tpu.memory_space<vmem>>, vector<4x8x8xf32>
      tpu.vector_store %arg16[%c0_59, %c0_60, %c0_61], %107 {strides = array<i32>} : memref<4x8x8xf32, #tpu.memory_space<vmem>>, vector<4x8x8xf32>,
    } else {
    }
    %c8_i32 = arith.constant 8 : i32
    %3 = arith.muli %arg1, %c8_i32 : i32
    %4 = tpu.assume_multiple %3, 8 : i32
    %c0 = arith.constant 0 : index
    %5 = arith.index_cast %4 : i32 to index
    %c0_1 = arith.constant 0 : index
    %6 = vector.load %arg2[%c0, %5, %c0_1] : memref<1x8x32xf32, #tpu.memory_space<vmem>>, vector<1x8x32xf32>
    %7 = vector.shape_cast %6 : vector<1x8x32xf32> to vector<8x32xf32>
    %c0_2 = arith.constant 0 : index
    %c0_3 = arith.constant 0 : index
    %8 = vector.load %arg3[%c0_2, %c0_3] : memref<32x32xf32, #tpu.memory_space<vmem>>, vector<32x32xf32>
    %cst = arith.constant dense<0.000000e+00> : vector<8x32xf32>
    %9 = tpu.matmul %7, %8, %cst {dimension_numbers = #tpu.dot_dimension_numbers<[1], [0], [0], [1], [0, 0, 1, 1], [], []>} : vector<8x32xf32>, vector<32x32xf32>, vector<8x32xf32> -> vector<8x32xf32>
    %cst_4 = arith.constant 0.353553385 : f32
    %10 = vector.broadcast %cst_4 : f32 to vector<8x32xf32>
    %11 = arith.mulf %9, %10 : vector<8x32xf32>
    %12 = vector.shape_cast %11 : vector<8x32xf32> to vector<8x4x8xf32>
    %13 = tpu.transpose %12, [1, 0, 2] : vector<8x4x8xf32> -> vector<4x8x8xf32>
    %c0_5 = arith.constant 0 : index
    %c0_6 = arith.constant 0 : index
    %c0_7 = arith.constant 0 : index
    %14 = vector.load %arg15[%c0_5, %c0_6, %c0_7] : memref<4x8x8xf32, #tpu.memory_space<vmem>>, vector<4x8x8xf32>
    "tpu.trace_start"() <{level = 10 : i32, message = "hqd,hkd->hqk"}> : () -> ()
    %cst_8 = arith.constant dense<0.000000e+00> : vector<4x8x8xf32>
    %15 = tpu.matmul %13, %14, %cst_8 {dimension_numbers = #tpu.dot_dimension_numbers<[2], [2], [1], [1], [0, 0, 0, 1, 1, 1], [0], [0]>} : vector<4x8x8xf32>, vector<4x8x8xf32>, vector<4x8x8xf32> -> vector<4x8x8xf32>
    "tpu.trace_stop"() : () -> ()
    %cst_9 = arith.constant dense<0xFF800000> : vector<4x8xf32>
    %16 = vector.multi_reduction <maximumf>, %15, %cst_9 [2] : vector<4x8x8xf32> to vector<4x8xf32>
    %17 = vector.shape_cast %16 : vector<4x8xf32> to vector<4x8x1xf32>
    %18 = vector.broadcast %17 : vector<4x8x1xf32> to vector<4x8x8xf32>
    %19 = arith.subf %15, %18 : vector<4x8x8xf32>
    %20 = math.exp %19 : vector<4x8x8xf32>
    %cst_10 = arith.constant dense<0.000000e+00> : vector<4x8xf32>
    %21 = vector.multi_reduction <add>, %20, %cst_10 [2] : vector<4x8x8xf32> to vector<4x8xf32>
    %22 = vector.shape_cast %21 : vector<4x8xf32> to vector<4x8x1xf32>
    %c0_11 = arith.constant 0 : index
    %c0_12 = arith.constant 0 : index
    %c0_13 = arith.constant 0 : index
    %23 = vector.load %arg16[%c0_11, %c0_12, %c0_13] : memref<4x8x8xf32, #tpu.memory_space<vmem>>, vector<4x8x8xf32>
    "tpu.trace_start"() <{level = 10 : i32, message = "hqk,hkd->hqd"}> : () -> ()
    %cst_14 = arith.constant dense<0.000000e+00> : vector<4x8x8xf32>
    %24 = tpu.matmul %20, %23, %cst_14 {dimension_numbers = #tpu.dot_dimension_numbers<[2], [1], [1], [2], [0, 0, 0, 1, 1, 2], [0], [0]>} : vector<4x8x8xf32>, vector<4x8x8xf32>, vector<4x8x8xf32> -> vector<4x8x8xf32>
    "tpu.trace_stop"() : () -> ()
    %25 = tpu.reciprocal %22 {approx = true} : vector<4x8x1xf32> -> vector<4x8x1xf32>
    %26 = vector.broadcast %25 : vector<4x8x1xf32> to vector<4x8x8xf32>
    %27 = arith.mulf %24, %26 : vector<4x8x8xf32>
    %28 = tpu.transpose %27, [1, 0, 2] : vector<4x8x8xf32> -> vector<8x4x8xf32>
    %29 = vector.shape_cast %28 : vector<8x4x8xf32> to vector<8x32xf32>
    %c0_15 = arith.constant 0 : index
    %c0_16 = arith.constant 0 : index
    %30 = vector.load %arg5[%c0_15, %c0_16] : memref<32x32xf32, #tpu.memory_space<vmem>>, vector<32x32xf32>
    %cst_17 = arith.constant dense<0.000000e+00> : vector<8x32xf32>
    %31 = tpu.matmul %29, %30, %cst_17 {dimension_numbers = #tpu.dot_dimension_numbers<[1], [0], [0], [1], [0, 0, 1, 1], [], []>} : vector<8x32xf32>, vector<32x32xf32>, vector<8x32xf32> -> vector<8x32xf32>
    %32 = arith.addf %31, %7 : vector<8x32xf32>
    %c0_18 = arith.constant 0 : index
    %c0_19 = arith.constant 0 : index
    %33 = vector.load %arg6[%c0_18, %c0_19] : memref<1x32xf32, #tpu.memory_space<vmem>>, vector<1x32xf32>
    %c0_20 = arith.constant 0 : index
    %c0_21 = arith.constant 0 : index
    %34 = vector.load %arg7[%c0_20, %c0_21] : memref<1x32xf32, #tpu.memory_space<vmem>>, vector<1x32xf32>
    %cst_22 = arith.constant dense<0.000000e+00> : vector<8xf32>
    %35 = vector.multi_reduction <add>, %32, %cst_22 [1] : vector<8x32xf32> to vector<8xf32>
    %36 = vector.shape_cast %35 : vector<8xf32> to vector<8x1xf32>
    %cst_23 = arith.constant 3.200000e+01 : f32
    %37 = vector.broadcast %cst_23 : f32 to vector<8x1xf32>
    %38 = arith.divf %36, %37 : vector<8x1xf32>
    %39 = vector.broadcast %38 : vector<8x1xf32> to vector<8x32xf32>
    %40 = arith.subf %32, %39 : vector<8x32xf32>
    %41 = arith.mulf %40, %40 : vector<8x32xf32>
    %cst_24 = arith.constant dense<0.000000e+00> : vector<8xf32>
    %42 = vector.multi_reduction <add>, %41, %cst_24 [1] : vector<8x32xf32> to vector<8xf32>
    %43 = vector.shape_cast %42 : vector<8xf32> to vector<8x1xf32>
    %cst_25 = arith.constant 3.200000e+01 : f32
    %44 = vector.broadcast %cst_25 : f32 to vector<8x1xf32>
    %45 = arith.divf %43, %44 : vector<8x1xf32>
    %46 = vector.broadcast %38 : vector<8x1xf32> to vector<8x32xf32>
    %47 = arith.subf %32, %46 : vector<8x32xf32>
    %cst_26 = arith.constant 9.99999997E-7 : f32
    %48 = vector.broadcast %cst_26 : f32 to vector<8x1xf32>
    %49 = arith.addf %45, %48 : vector<8x1xf32>
    %50 = math.rsqrt %49 : vector<8x1xf32>
    %51 = vector.broadcast %50 : vector<8x1xf32> to vector<8x32xf32>
    %52 = arith.mulf %47, %51 : vector<8x32xf32>
    %53 = vector.broadcast %33 : vector<1x32xf32> to vector<8x32xf32>
    %54 = arith.mulf %52, %53 : vector<8x32xf32>
    %55 = vector.broadcast %34 : vector<1x32xf32> to vector<8x32xf32>
    %56 = arith.addf %54, %55 : vector<8x32xf32>
    %c0_27 = arith.constant 0 : index
    %c0_28 = arith.constant 0 : index
    %57 = vector.load %arg8[%c0_27, %c0_28] : memref<32x64xf32, #tpu.memory_space<vmem>>, vector<32x64xf32>
    %cst_29 = arith.constant dense<0.000000e+00> : vector<8x64xf32>
    %58 = tpu.matmul %56, %57, %cst_29 {dimension_numbers = #tpu.dot_dimension_numbers<[1], [0], [0], [1], [0, 0, 1, 1], [], []>} : vector<8x32xf32>, vector<32x64xf32>, vector<8x64xf32> -> vector<8x64xf32>
    %c0_30 = arith.constant 0 : index
    %c0_31 = arith.constant 0 : index
    %59 = vector.load %arg9[%c0_30, %c0_31] : memref<1x64xf32, #tpu.memory_space<vmem>>, vector<1x64xf32>
    %60 = vector.broadcast %59 : vector<1x64xf32> to vector<8x64xf32>
    %61 = arith.addf %58, %60 : vector<8x64xf32>
    %cst_32 = arith.constant 0.000000e+00 : f32
    %62 = vector.broadcast %cst_32 : f32 to vector<8x64xf32>
    %63 = arith.maximumf %61, %62 : vector<8x64xf32>
    %c0_33 = arith.constant 0 : index
    %c0_34 = arith.constant 0 : index
    %64 = vector.load %arg10[%c0_33, %c0_34] : memref<64x32xf32, #tpu.memory_space<vmem>>, vector<64x32xf32>
    %cst_35 = arith.constant dense<0.000000e+00> : vector<8x32xf32>
    %65 = tpu.matmul %63, %64, %cst_35 {dimension_numbers = #tpu.dot_dimension_numbers<[1], [0], [0], [1], [0, 0, 1, 1], [], []>} : vector<8x64xf32>, vector<64x32xf32>, vector<8x32xf32> -> vector<8x32xf32>
    %c0_36 = arith.constant 0 : index
    %c0_37 = arith.constant 0 : index
    %66 = vector.load %arg11[%c0_36, %c0_37] : memref<1x32xf32, #tpu.memory_space<vmem>>, vector<1x32xf32>
    %67 = vector.broadcast %66 : vector<1x32xf32> to vector<8x32xf32>
    %68 = arith.addf %65, %67 : vector<8x32xf32>
    %69 = arith.addf %68, %56 : vector<8x32xf32>
    %c0_38 = arith.constant 0 : index
    %c0_39 = arith.constant 0 : index
    %70 = vector.load %arg12[%c0_38, %c0_39] : memref<1x32xf32, #tpu.memory_space<vmem>>, vector<1x32xf32>
    %c0_40 = arith.constant 0 : index
    %c0_41 = arith.constant 0 : index
    %71 = vector.load %arg13[%c0_40, %c0_41] : memref<1x32xf32, #tpu.memory_space<vmem>>, vector<1x32xf32>
    %cst_42 = arith.constant dense<0.000000e+00> : vector<8xf32>
    %72 = vector.multi_reduction <add>, %69, %cst_42 [1] : vector<8x32xf32> to vector<8xf32>
    %73 = vector.shape_cast %72 : vector<8xf32> to vector<8x1xf32>
    %cst_43 = arith.constant 3.200000e+01 : f32
    %74 = vector.broadcast %cst_43 : f32 to vector<8x1xf32>
    %75 = arith.divf %73, %74 : vector<8x1xf32>
    %76 = vector.broadcast %75 : vector<8x1xf32> to vector<8x32xf32>
    %77 = arith.subf %69, %76 : vector<8x32xf32>
    %78 = arith.mulf %77, %77 : vector<8x32xf32>
    %cst_44 = arith.constant dense<0.000000e+00> : vector<8xf32>
    %79 = vector.multi_reduction <add>, %78, %cst_44 [1] : vector<8x32xf32> to vector<8xf32>
    %80 = vector.shape_cast %79 : vector<8xf32> to vector<8x1xf32>
    %cst_45 = arith.constant 3.200000e+01 : f32
    %81 = vector.broadcast %cst_45 : f32 to vector<8x1xf32>
    %82 = arith.divf %80, %81 : vector<8x1xf32>
    %83 = vector.broadcast %75 : vector<8x1xf32> to vector<8x32xf32>
    %84 = arith.subf %69, %83 : vector<8x32xf32>
    %cst_46 = arith.constant 9.99999997E-7 : f32
    %85 = vector.broadcast %cst_46 : f32 to vector<8x1xf32>
    %86 = arith.addf %82, %85 : vector<8x1xf32>
    %87 = math.rsqrt %86 : vector<8x1xf32>
    %88 = vector.broadcast %87 : vector<8x1xf32> to vector<8x32xf32>
    %89 = arith.mulf %84, %88 : vector<8x32xf32>
    %90 = vector.broadcast %70 : vector<1x32xf32> to vector<8x32xf32>
    %91 = arith.mulf %89, %90 : vector<8x32xf32>
    %92 = vector.broadcast %71 : vector<1x32xf32> to vector<8x32xf32>
    %93 = arith.addf %91, %92 : vector<8x32xf32>
    %c0_47 = arith.constant 0 : index
    %c0_48 = arith.constant 0 : index
    %c0_49 = arith.constant 0 : index
    %94 = vector.load %arg14[%c0_47, %c0_48, %c0_49] : memref<1x8x32xf32, #tpu.memory_space<vmem>>, vector<1x8x32xf32>
    %95 = vector.shape_cast %94 : vector<1x8x32xf32> to vector<8x32xf32>
    %96 = vector.shape_cast %93 : vector<8x32xf32> to vector<1x8x32xf32>
    tpu.vector_store %arg14[%c0_47, %c0_48, %c0_49], %96 {strides = array<i32>} : memref<1x8x32xf32, #tpu.memory_space<vmem>>, vector<1x8x32xf32>,
    return
  }
  func.func @transform_0(%arg0: i32, %arg1: i32) -> (i32, i32, i32) {
    %c0_i32 = arith.constant 0 : i32
    %c0_i32_0 = arith.constant 0 : i32
    %c0_i32_1 = arith.constant 0 : i32
    return %arg0, %c0_i32, %c0_i32_0 : i32, i32, i32
  }
  func.func @transform_1(%arg0: i32, %arg1: i32) -> (i32, i32) {
    %c0_i32 = arith.constant 0 : i32
    %c0_i32_0 = arith.constant 0 : i32
    %c0_i32_1 = arith.constant 0 : i32
    return %c0_i32, %c0_i32_0 : i32, i32
  }
  func.func @transform_2(%arg0: i32, %arg1: i32) -> (i32, i32) {
    %c0_i32 = arith.constant 0 : i32
    %c0_i32_0 = arith.constant 0 : i32
    %c0_i32_1 = arith.constant 0 : i32
    return %c0_i32, %c0_i32_0 : i32, i32
  }
  func.func @transform_3(%arg0: i32, %arg1: i32) -> (i32, i32) {
    %c0_i32 = arith.constant 0 : i32
    %c0_i32_0 = arith.constant 0 : i32
    %c0_i32_1 = arith.constant 0 : i32
    return %c0_i32, %c0_i32_0 : i32, i32
  }
  func.func @transform_4(%arg0: i32, %arg1: i32) -> (i32, i32) {
    %c0_i32 = arith.constant 0 : i32
    %c0_i32_0 = arith.constant 0 : i32
    %c0_i32_1 = arith.constant 0 : i32
    return %c0_i32, %c0_i32_0 : i32, i32
  }
  func.func @transform_5(%arg0: i32, %arg1: i32) -> (i32, i32) {
    %c0_i32 = arith.constant 0 : i32
    %c0_i32_0 = arith.constant 0 : i32
    %c0_i32_1 = arith.constant 0 : i32
    return %c0_i32, %c0_i32_0 : i32, i32
  }
  func.func @transform_6(%arg0: i32, %arg1: i32) -> (i32, i32) {
    %c0_i32 = arith.constant 0 : i32
    %c0_i32_0 = arith.constant 0 : i32
    %c0_i32_1 = arith.constant 0 : i32
    return %c0_i32, %c0_i32_0 : i32, i32
  }
  func.func @transform_7(%arg0: i32, %arg1: i32) -> (i32, i32) {
    %c0_i32 = arith.constant 0 : i32
    %c0_i32_0 = arith.constant 0 : i32
    %c0_i32_1 = arith.constant 0 : i32
    return %c0_i32, %c0_i32_0 : i32, i32
  }
  func.func @transform_8(%arg0: i32, %arg1: i32) -> (i32, i32) {
    %c0_i32 = arith.constant 0 : i32
    %c0_i32_0 = arith.constant 0 : i32
    %c0_i32_1 = arith.constant 0 : i32
    return %c0_i32, %c0_i32_0 : i32, i32
  }
  func.func @transform_9(%arg0: i32, %arg1: i32) -> (i32, i32) {
    %c0_i32 = arith.constant 0 : i32
    %c0_i32_0 = arith.constant 0 : i32
    %c0_i32_1 = arith.constant 0 : i32
    return %c0_i32, %c0_i32_0 : i32, i32
  }
  func.func @transform_10(%arg0: i32, %arg1: i32) -> (i32, i32) {
    %c0_i32 = arith.constant 0 : i32
    %c0_i32_0 = arith.constant 0 : i32
    %c0_i32_1 = arith.constant 0 : i32
    return %c0_i32, %c0_i32_0 : i32, i32
  }
  func.func @transform_11(%arg0: i32, %arg1: i32) -> (i32, i32) {
    %c0_i32 = arith.constant 0 : i32
    %c0_i32_0 = arith.constant 0 : i32
    %c0_i32_1 = arith.constant 0 : i32
    return %c0_i32, %c0_i32_0 : i32, i32
  }
  func.func @transform_12(%arg0: i32, %arg1: i32) -> (i32, i32, i32) {
    %c0_i32 = arith.constant 0 : i32
    %c0_i32_0 = arith.constant 0 : i32
    return %arg0, %arg1, %c0_i32 : i32, i32, i32
  }
}

</mosaic_0001>

<llo_original>
// kernel: tpu_custom_call.1
$region0: #{tpu_custom_call.1}
  #allocation0 [shape = 'u32[]', space=smem, size = 0x4, offset = 0x4, fixed_abs, tag = 'smem constant byte address 0x4 - core index']
  #allocation1 [shape = 'u32[72,128]{1,0:T(1,128)}', space=vmem, size = 0x9000, scoped, tag = 'internal scratch']
  #allocation2 [shape = 'f32[4,8,8]{2,1,0:T(8,128)}', space=vmem, size = 0x4000, scoped, tag = 'scratch operand']
  #allocation3 [shape = 'f32[4,8,8]{2,1,0:T(8,128)}', space=vmem, size = 0x4000, scoped, tag = 'scratch operand']
  %s0 = inlined_call_operand.hbm [shape: f32[2,8,32], index: 0, kind: input, shape index: {}]
  %s1 = inlined_call_operand.vmem [shape: f32[32,32], index: 1, kind: input, shape index: {}]
  %s2 = inlined_call_operand.vmem [shape: f32[32,64], index: 2, kind: input, shape index: {}]
  %s3 = inlined_call_operand.vmem [shape: f32[32,32], index: 3, kind: input, shape index: {}]
  %s4 = inlined_call_operand.vmem [shape: f32[1,32], index: 4, kind: input, shape index: {}]
  %s5 = inlined_call_operand.vmem [shape: f32[1,32], index: 5, kind: input, shape index: {}]
  %s6 = inlined_call_operand.hbm [shape: f32[32,64], index: 6, kind: input, shape index: {}]
  %s7 = inlined_call_operand.vmem [shape: f32[1,64], index: 7, kind: input, shape index: {}]
  %s8 = inlined_call_operand.vmem [shape: f32[64,32], index: 8, kind: input, shape index: {}]
  %s9 = inlined_call_operand.vmem [shape: f32[1,32], index: 9, kind: input, shape index: {}]
  %s10 = inlined_call_operand.vmem [shape: f32[1,32], index: 10, kind: input, shape index: {}]
  %s11 = inlined_call_operand.vmem [shape: f32[1,32], index: 11, kind: input, shape index: {}]
  %s12 = inlined_call_operand.hbm [shape: f32[2,8,32], index: 12, kind: output, shape index: {}]
  %s13 = sld [smem:[#allocation0]]
  $region93: #{tpu_custom_call.1} parent=0
    _
  %s15 = ssub.s32 1, %s13
  %s16 = scalar_select 0, %s15, %s13
  $region1: #{tpu_custom_call.1} parent=0
    #allocation4 [shape = 'u8[8192]{0}', space=vmem, size = 0x2000, scoped, tag = 'input window, operand 0']
    #allocation5 [shape = 's32[2]{0}', space=sflag, size = 0x8, scoped, tag = 'scoped memory for tpu_custom_call.1']
    #allocation6 [shape = 's32[2]{0}', space=sflag, size = 0x8, scoped, tag = 'scoped memory for tpu_custom_call.1']
    #allocation7 [shape = 'u8[16384]{0}', space=vmem, size = 0x4000, scoped, tag = 'input window, operand 6, single buffered']
    #allocation8 [shape = 's32[1]{0}', space=sflag, size = 0x4, scoped, tag = 'scoped memory for tpu_custom_call.1']
    #allocation9 [shape = 'u8[8192]{0}', space=vmem, size = 0x2000, scoped, tag = 'output window, operand 0']
    %17 = vsyncpa [#allocation5], 0
    %s18 = scalar_lea.sflag [#allocation5], 1
    %19 = vsyncpa %s18, 0
    %20 = vsyncpa [#allocation8], 0
    %21 = vsyncpa [#allocation6], 0
    %s22 = scalar_lea.sflag [#allocation6], 1
    %23 = vsyncpa %s22, 0
    loop: start=0, step=1, limit=4
    $region2: #{tpu_custom_call.1} parent=1 // loop_pre_header
      _
    $region3: #{tpu_custom_call.1} parent=1 // loop_header
      %s25 = sphi 0, %s29
      %p26 = scmp.ge.s32.totalorder %s25, 4
      %s32 = sphi 0, %s44
      %s33 = sphi 0, %s40
      %s34 = sphi 0, %s32
      %s35 = sphi 0, %s33
      %s36 = sphi 0, %s34
      %s37 = sphi 0, %s35
      %s47 = sphi 0, %s49
      %s50 = sphi 0, %s47
      %s51 = sphi 0, %s50
      %s67 = sphi 0, %s51
      %s71 = sphi 0, %s71
      %s73 = sphi 0, %s71
      %s74 = sphi 0, %s73
      %s88 = sphi 0, %s74
      %s92 = sphi 0, %s92
      %s94 = sphi 0, %s92
      %s95 = sphi 0, %s94
      %s109 = sphi 0, %s95
      %s113 = sphi 0, %s113
      %s115 = sphi 0, %s113
      %s116 = sphi 0, %s115
      %s130 = sphi 0, %s116
      %s134 = sphi 0, %s134
      %s136 = sphi 0, %s134
      %s137 = sphi 0, %s136
      %s151 = sphi 0, %s137
      %s155 = sphi 0, %s155
      %s157 = sphi 0, %s155
      %s158 = sphi 0, %s157
      %s172 = sphi 0, %s158
      %s176 = sphi 0, %s176
      %s178 = sphi 0, %s176
      %s179 = sphi 0, %s178
      %s193 = sphi 0, %s179
      %s197 = sphi 0, %s197
      %s199 = sphi 0, %s197
      %s200 = sphi 0, %s199
      %s214 = sphi 0, %s200
      %s218 = sphi 0, %s218
      %s220 = sphi 0, %s218
      %s221 = sphi 0, %s220
      %s235 = sphi 0, %s221
      %s239 = sphi 0, %s239
      %s241 = sphi 0, %s239
      %s242 = sphi 0, %s241
      %s256 = sphi 0, %s242
      %s260 = sphi 0, %s260
      %s262 = sphi 0, %s260
      %s263 = sphi 0, %s262
      %s277 = sphi 0, %s263
      %s281 = sphi 0, %s281
      %s283 = sphi 0, %s281
      %s284 = sphi 0, %s283
      %s298 = sphi 0, %s284
      %s306 = sphi 0, %s308
      %s309 = sphi 0, %s306
      %s310 = sphi 0, %s309
      %s326 = sphi 0, %s310
    $region4: #{tpu_custom_call.1} parent=1 // loop_header_branch
      %28 = sbr.rel (%p26) target = $region8
    $region5: #{tpu_custom_call.1} parent=1 // loop_body
      %s30 = ssub.s32 %s25, 1
      %s31 = ssub.s32 %s25, 2
      %s38 = sadd.s32 1, %s33
      %p39 = scmp.ge.s32.totalorder %s38, 1
      %s40 = scalar_select %p39, 0, %s38
      %s41 = sadd.s32 1, %s32
      %s42 = scalar_select %p39, %s41, %s32
      %p43 = scmp.ge.s32.totalorder %s42, 2
      %s44 = scalar_select %p43, 0, %s42
      %s45 = ssub.s32 %s32, %s44
      %p46 = scmp.eq.s32.totalorder %s45, 0
      %s48 = sadd.s32 %s47, 1
      %s49 = scalar_select %p46, %s47, %s48
      %p52 = pneg %p46
      %p53 = scmp.eq.s32.totalorder %s25, 1
      %p54 = por %p52, %p53
      %p55 = scmp.ne.s32.totalorder %s47, %s50
      %p56 = scmp.eq.s32.totalorder %s25, 0
      %p57 = por %p55, %p56
      %p58 = scmp.ne.s32.totalorder %s47, %s50
      %p59 = scmp.eq.s32.totalorder %s30, 1
      %p60 = por %p58, %p59
      %p61 = scmp.ne.s32.totalorder %s50, %s51
      %p62 = scmp.eq.s32.totalorder %s30, 0
      %p63 = por %p61, %p62
      %p64 = scmp.ne.s32.totalorder %s50, %s51
      %p65 = scmp.eq.s32.totalorder %s31, 1
      %p66 = por %p64, %p65
      %p68 = scmp.ne.s32.totalorder %s51, %s67
      %p69 = scmp.eq.s32.totalorder %s31, 0
      %p70 = por %p68, %p69
      %s72 = sadd.s32 %s71, 1
      %p75 = scmp.eq.s32.totalorder %s25, 1
      %p76 = scmp.ne.s32.totalorder %s71, %s73
      %p77 = scmp.eq.s32.totalorder %s25, 0
      %p78 = por %p76, %p77
      %p79 = scmp.ne.s32.totalorder %s71, %s73
      %p80 = scmp.eq.s32.totalorder %s30, 1
      %p81 = por %p79, %p80
      %p82 = scmp.ne.s32.totalorder %s73, %s74
      %p83 = scmp.eq.s32.totalorder %s30, 0
      %p84 = por %p82, %p83
      %p85 = scmp.ne.s32.totalorder %s73, %s74
      %p86 = scmp.eq.s32.totalorder %s31, 1
      %p87 = por %p85, %p86
      %p89 = scmp.ne.s32.totalorder %s74, %s88
      %p90 = scmp.eq.s32.totalorder %s31, 0
      %p91 = por %p89, %p90
      %s93 = sadd.s32 %s92, 1
      %p96 = scmp.eq.s32.totalorder %s25, 1
      %p97 = scmp.ne.s32.totalorder %s92, %s94
      %p98 = scmp.eq.s32.totalorder %s25, 0
      %p99 = por %p97, %p98
      %p100 = scmp.ne.s32.totalorder %s92, %s94
      %p101 = scmp.eq.s32.totalorder %s30, 1
      %p102 = por %p100, %p101
      %p103 = scmp.ne.s32.totalorder %s94, %s95
      %p104 = scmp.eq.s32.totalorder %s30, 0
      %p105 = por %p103, %p104
      %p106 = scmp.ne.s32.totalorder %s94, %s95
      %p107 = scmp.eq.s32.totalorder %s31, 1
      %p108 = por %p106, %p107
      %p110 = scmp.ne.s32.totalorder %s95, %s109
      %p111 = scmp.eq.s32.totalorder %s31, 0
      %p112 = por %p110, %p111
      %s114 = sadd.s32 %s113, 1
      %p117 = scmp.eq.s32.totalorder %s25, 1
      %p118 = scmp.ne.s32.totalorder %s113, %s115
      %p119 = scmp.eq.s32.totalorder %s25, 0
      %p120 = por %p118, %p119
      %p121 = scmp.ne.s32.totalorder %s113, %s115
      %p122 = scmp.eq.s32.totalorder %s30, 1
      %p123 = por %p121, %p122
      %p124 = scmp.ne.s32.totalorder %s115, %s116
      %p125 = scmp.eq.s32.totalorder %s30, 0
      %p126 = por %p124, %p125
      %p127 = scmp.ne.s32.totalorder %s115, %s116
      %p128 = scmp.eq.s32.totalorder %s31, 1
      %p129 = por %p127, %p128
      %p131 = scmp.ne.s32.totalorder %s116, %s130
      %p132 = scmp.eq.s32.totalorder %s31, 0
      %p133 = por %p131, %p132
      %s135 = sadd.s32 %s134, 1
      %p138 = scmp.eq.s32.totalorder %s25, 1
      %p139 = scmp.ne.s32.totalorder %s134, %s136
      %p140 = scmp.eq.s32.totalorder %s25, 0
      %p141 = por %p139, %p140
      %p142 = scmp.ne.s32.totalorder %s134, %s136
      %p143 = scmp.eq.s32.totalorder %s30, 1
      %p144 = por %p142, %p143
      %p145 = scmp.ne.s32.totalorder %s136, %s137
      %p146 = scmp.eq.s32.totalorder %s30, 0
      %p147 = por %p145, %p146
      %p148 = scmp.ne.s32.totalorder %s136, %s137
      %p149 = scmp.eq.s32.totalorder %s31, 1
      %p150 = por %p148, %p149
      %p152 = scmp.ne.s32.totalorder %s137, %s151
      %p153 = scmp.eq.s32.totalorder %s31, 0
      %p154 = por %p152, %p153
      %s156 = sadd.s32 %s155, 1
      %p159 = scmp.eq.s32.totalorder %s25, 1
      %p160 = scmp.ne.s32.totalorder %s155, %s157
      %p161 = scmp.eq.s32.totalorder %s25, 0
      %p162 = por %p160, %p161
      %p163 = scmp.ne.s32.totalorder %s155, %s157
      %p164 = scmp.eq.s32.totalorder %s30, 1
      %p165 = por %p163, %p164
      %p166 = scmp.ne.s32.totalorder %s157, %s158
      %p167 = scmp.eq.s32.totalorder %s30, 0
      %p168 = por %p166, %p167
      %p169 = scmp.ne.s32.totalorder %s157, %s158
      %p170 = scmp.eq.s32.totalorder %s31, 1
      %p171 = por %p169, %p170
      %p173 = scmp.ne.s32.totalorder %s158, %s172
      %p174 = scmp.eq.s32.totalorder %s31, 0
      %p175 = por %p173, %p174
      %s177 = sadd.s32 %s176, 1
      %p180 = scmp.eq.s32.totalorder %s25, 1
      %p181 = scmp.ne.s32.totalorder %s176, %s178
      %p182 = scmp.eq.s32.totalorder %s25, 0
      %p183 = por %p181, %p182
      %p184 = scmp.ne.s32.totalorder %s176, %s178
      %p185 = scmp.eq.s32.totalorder %s30, 1
      %p186 = por %p184, %p185
      %p187 = scmp.ne.s32.totalorder %s178, %s179
      %p188 = scmp.eq.s32.totalorder %s30, 0
      %p189 = por %p187, %p188
      %p190 = scmp.ne.s32.totalorder %s178, %s179
      %p191 = scmp.eq.s32.totalorder %s31, 1
      %p192 = por %p190, %p191
      %p194 = scmp.ne.s32.totalorder %s179, %s193
      %p195 = scmp.eq.s32.totalorder %s31, 0
      %p196 = por %p194, %p195
      %s198 = sadd.s32 %s197, 1
      %p201 = scmp.eq.s32.totalorder %s25, 1
      %p202 = scmp.ne.s32.totalorder %s197, %s199
      %p203 = scmp.eq.s32.totalorder %s25, 0
      %p204 = por %p202, %p203
      %p205 = scmp.ne.s32.totalorder %s197, %s199
      %p206 = scmp.eq.s32.totalorder %s30, 1
      %p207 = por %p205, %p206
      %p208 = scmp.ne.s32.totalorder %s199, %s200
      %p209 = scmp.eq.s32.totalorder %s30, 0
      %p210 = por %p208, %p209
      %p211 = scmp.ne.s32.totalorder %s199, %s200
      %p212 = scmp.eq.s32.totalorder %s31, 1
      %p213 = por %p211, %p212
      %p215 = scmp.ne.s32.totalorder %s200, %s214
      %p216 = scmp.eq.s32.totalorder %s31, 0
      %p217 = por %p215, %p216
      %s219 = sadd.s32 %s218, 1
      %p222 = scmp.eq.s32.totalorder %s25, 1
      %p223 = scmp.ne.s32.totalorder %s218, %s220
      %p224 = scmp.eq.s32.totalorder %s25, 0
      %p225 = por %p223, %p224
      %p226 = scmp.ne.s32.totalorder %s218, %s220
      %p227 = scmp.eq.s32.totalorder %s30, 1
      %p228 = por %p226, %p227
      %p229 = scmp.ne.s32.totalorder %s220, %s221
      %p230 = scmp.eq.s32.totalorder %s30, 0
      %p231 = por %p229, %p230
      %p232 = scmp.ne.s32.totalorder %s220, %s221
      %p233 = scmp.eq.s32.totalorder %s31, 1
      %p234 = por %p232, %p233
      %p236 = scmp.ne.s32.totalorder %s221, %s235
      %p237 = scmp.eq.s32.totalorder %s31, 0
      %p238 = por %p236, %p237
      %s240 = sadd.s32 %s239, 1
      %p243 = scmp.eq.s32.totalorder %s25, 1
      %p244 = scmp.ne.s32.totalorder %s239, %s241
      %p245 = scmp.eq.s32.totalorder %s25, 0
      %p246 = por %p244, %p245
      %p247 = scmp.ne.s32.totalorder %s239, %s241
      %p248 = scmp.eq.s32.totalorder %s30, 1
      %p249 = por %p247, %p248
      %p250 = scmp.ne.s32.totalorder %s241, %s242
      %p251 = scmp.eq.s32.totalorder %s30, 0
      %p252 = por %p250, %p251
      %p253 = scmp.ne.s32.totalorder %s241, %s242
      %p254 = scmp.eq.s32.totalorder %s31, 1
      %p255 = por %p253, %p254
      %p257 = scmp.ne.s32.totalorder %s242, %s256
      %p258 = scmp.eq.s32.totalorder %s31, 0
      %p259 = por %p257, %p258
      %s261 = sadd.s32 %s260, 1
      %p264 = scmp.eq.s32.totalorder %s25, 1
      %p265 = scmp.ne.s32.totalorder %s260, %s262
      %p266 = scmp.eq.s32.totalorder %s25, 0
      %p267 = por %p265, %p266
      %p268 = scmp.ne.s32.totalorder %s260, %s262
      %p269 = scmp.eq.s32.totalorder %s30, 1
      %p270 = por %p268, %p269
      %p271 = scmp.ne.s32.totalorder %s262, %s263
      %p272 = scmp.eq.s32.totalorder %s30, 0
      %p273 = por %p271, %p272
      %p274 = scmp.ne.s32.totalorder %s262, %s263
      %p275 = scmp.eq.s32.totalorder %s31, 1
      %p276 = por %p274, %p275
      %p278 = scmp.ne.s32.totalorder %s263, %s277
      %p279 = scmp.eq.s32.totalorder %s31, 0
      %p280 = por %p278, %p279
      %s282 = sadd.s32 %s281, 1
      %p285 = scmp.eq.s32.totalorder %s25, 1
      %p286 = scmp.ne.s32.totalorder %s281, %s283
      %p287 = scmp.eq.s32.totalorder %s25, 0
      %p288 = por %p286, %p287
      %p289 = scmp.ne.s32.totalorder %s281, %s283
      %p290 = scmp.eq.s32.totalorder %s30, 1
      %p291 = por %p289, %p290
      %p292 = scmp.ne.s32.totalorder %s283, %s284
      %p293 = scmp.eq.s32.totalorder %s30, 0
      %p294 = por %p292, %p293
      %p295 = scmp.ne.s32.totalorder %s283, %s284
      %p296 = scmp.eq.s32.totalorder %s31, 1
      %p297 = por %p295, %p296
      %p299 = scmp.ne.s32.totalorder %s284, %s298
      %p300 = scmp.eq.s32.totalorder %s31, 0
      %p301 = por %p299, %p300
      %s302 = ssub.s32 %s32, %s44
      %s303 = ssub.s32 %s33, %s40
      %s304 = sor.u32 %s302, %s303
      %p305 = scmp.eq.s32.totalorder %s304, 0
      %s307 = sadd.s32 %s306, 1
      %s308 = scalar_select %p305, %s306, %s307
      %p311 = pneg %p305
      %p312 = scmp.eq.s32.totalorder %s25, 1
      %p313 = por %p311, %p312
      %p314 = scmp.ne.s32.totalorder %s306, %s309
      %p315 = scmp.eq.s32.totalorder %s25, 0
      %p316 = por %p314, %p315
      %p317 = scmp.ne.s32.totalorder %s306, %s309
      %p318 = scmp.eq.s32.totalorder %s30, 1
      %p319 = por %p317, %p318
      %p320 = scmp.ne.s32.totalorder %s309, %s310
      %p321 = scmp.eq.s32.totalorder %s30, 0
      %p322 = por %p320, %p321
      %p323 = scmp.ne.s32.totalorder %s309, %s310
      %p324 = scmp.eq.s32.totalorder %s31, 1
      %p325 = por %p323, %p324
      %p327 = scmp.ne.s32.totalorder %s310, %s326
      %p328 = scmp.eq.s32.totalorder %s31, 0
      %p329 = por %p327, %p328
      %p330 = scmp.le.s32.totalorder 1, %s25
      %p331 = scmp.lt.s32.totalorder %s25, 3
      %p332 = pnand %p330, %p331
      %p333 = pneg %p332
      // Predicated region
      $region9: #{tpu_custom_call.1} parent=5 // pred_check
        _
      $region10: #{tpu_custom_call.1} parent=5 // pred_check_branch
        %335 = sbr.rel (%p332) target = $region12
      $region11: #{tpu_custom_call.1} parent=5 // pred_region
        %s336 = ssub.s32 %s25, 1
        // Predicated region
        $region13: #{tpu_custom_call.1} parent=11 // pred_check
          %p337 = pneg %p84
        $region14: #{tpu_custom_call.1} parent=11 // pred_check_branch
          %339 = sbr.rel (%p337) target = $region16
        $region15: #{tpu_custom_call.1} parent=11 // pred_region
          _
        $region16: #{tpu_custom_call.1} parent=11 // pred_fallthru
          _
        // Predicated region
        $region17: #{tpu_custom_call.1} parent=11 // pred_check
          %p340 = pneg %p105
        $region18: #{tpu_custom_call.1} parent=11 // pred_check_branch
          %342 = sbr.rel (%p340) target = $region20
        $region19: #{tpu_custom_call.1} parent=11 // pred_region
          _
        $region20: #{tpu_custom_call.1} parent=11 // pred_fallthru
          _
        // Predicated region
        $region21: #{tpu_custom_call.1} parent=11 // pred_check
          %p343 = pneg %p126
        $region22: #{tpu_custom_call.1} parent=11 // pred_check_branch
          %345 = sbr.rel (%p343) target = $region24
        $region23: #{tpu_custom_call.1} parent=11 // pred_region
          _
        $region24: #{tpu_custom_call.1} parent=11 // pred_fallthru
          _
        // Predicated region
        $region25: #{tpu_custom_call.1} parent=11 // pred_check
          %p346 = pneg %p147
        $region26: #{tpu_custom_call.1} parent=11 // pred_check_branch
          %348 = sbr.rel (%p346) target = $region28
        $region27: #{tpu_custom_call.1} parent=11 // pred_region
          _
        $region28: #{tpu_custom_call.1} parent=11 // pred_fallthru
          _
        // Predicated region
        $region29: #{tpu_custom_call.1} parent=11 // pred_check
          %p349 = pneg %p168
        $region30: #{tpu_custom_call.1} parent=11 // pred_check_branch
          %351 = sbr.rel (%p349) target = $region32
        $region31: #{tpu_custom_call.1} parent=11 // pred_region
          _
        $region32: #{tpu_custom_call.1} parent=11 // pred_fallthru
          _
        // Predicated region
        $region33: #{tpu_custom_call.1} parent=11 // pred_check
          %p352 = pneg %p189
        $region34: #{tpu_custom_call.1} parent=11 // pred_check_branch
          %354 = sbr.rel (%p352) target = $region36
        $region35: #{tpu_custom_call.1} parent=11 // pred_region
          %356 = vsyncadd [#allocation8], 0
          %s357 = sshll.u32 %s6, 4
          %s358 = int_to_ptr.hbm [resolvable:$true] %s357
          %s359 = sshll.u32 [#allocation7], 4
          %s360 = int_to_ptr.vmem [resolvable:$true] %s359
          %365 = dma.hbm_to_vmem [thread:$0]  %s358, 512, %s360, [#allocation8], 128, 128, 8
        $region36: #{tpu_custom_call.1} parent=11 // pred_fallthru
          _
        // Predicated region
        $region37: #{tpu_custom_call.1} parent=11 // pred_check
          %p366 = pneg %p210
        $region38: #{tpu_custom_call.1} parent=11 // pred_check_branch
          %368 = sbr.rel (%p366) target = $region40
        $region39: #{tpu_custom_call.1} parent=11 // pred_region
          _
        $region40: #{tpu_custom_call.1} parent=11 // pred_fallthru
          _
        // Predicated region
        $region41: #{tpu_custom_call.1} parent=11 // pred_check
          %p369 = pneg %p231
        $region42: #{tpu_custom_call.1} parent=11 // pred_check_branch
          %371 = sbr.rel (%p369) target = $region44
        $region43: #{tpu_custom_call.1} parent=11 // pred_region
          _
        $region44: #{tpu_custom_call.1} parent=11 // pred_fallthru
          _
        // Predicated region
        $region45: #{tpu_custom_call.1} parent=11 // pred_check
          %p372 = pneg %p252
        $region46: #{tpu_custom_call.1} parent=11 // pred_check_branch
          %374 = sbr.rel (%p372) target = $region48
        $region47: #{tpu_custom_call.1} parent=11 // pred_region
          _
        $region48: #{tpu_custom_call.1} parent=11 // pred_fallthru
          _
        // Predicated region
        $region49: #{tpu_custom_call.1} parent=11 // pred_check
          %p375 = pneg %p273
        $region50: #{tpu_custom_call.1} parent=11 // pred_check_branch
          %377 = sbr.rel (%p375) target = $region52
        $region51: #{tpu_custom_call.1} parent=11 // pred_region
          _
        $region52: #{tpu_custom_call.1} parent=11 // pred_fallthru
          _
        // Predicated region
        $region53: #{tpu_custom_call.1} parent=11 // pred_check
          %p378 = pneg %p294
        $region54: #{tpu_custom_call.1} parent=11 // pred_check_branch
          %380 = sbr.rel (%p378) target = $region56
        $region55: #{tpu_custom_call.1} parent=11 // pred_region
          _
        $region56: #{tpu_custom_call.1} parent=11 // pred_fallthru
          _
      $region12: #{tpu_custom_call.1} parent=5 // pred_fallthru
        _
      %p381 = scmp.lt.s32.totalorder %s25, 2
      // Predicated region
      $region57: #{tpu_custom_call.1} parent=5 // pred_check
        %p382 = pneg %p381
      $region58: #{tpu_custom_call.1} parent=5 // pred_check_branch
        %384 = sbr.rel (%p382) target = $region60
      $region59: #{tpu_custom_call.1} parent=5 // pred_region
        // Predicated region
        $region61: #{tpu_custom_call.1} parent=59 // pred_check
          %p385 = pneg %p57
        $region62: #{tpu_custom_call.1} parent=59 // pred_check_branch
          %387 = sbr.rel (%p385) target = $region64
        $region63: #{tpu_custom_call.1} parent=59 // pred_region
          %s388 = sand.u32 %s47, 1
          %s389 = scalar_lea.sflag [#allocation5], %s388
          %s390 = sand.u32 %s47, 1
          %s391 = smul.addr %s390, 8
          %s392 = scalar_lea.vmem [#allocation4], %s391
          %394 = vsyncadd %s389, 0
          %s395 = smul.addr %s32, 8
          %s396 = scalar_lea.hbm %s0, %s395
          %s398 = sshll.u32 %s396, 4
          %s399 = int_to_ptr.hbm [resolvable:$true] %s398
          %s400 = sshll.u32 %s392, 4
          %s401 = int_to_ptr.vmem [resolvable:$true] %s400
          %403 = dma.hbm_to_vmem [thread:$0]  %s399, 128, %s401, %s389
        $region64: #{tpu_custom_call.1} parent=59 // pred_fallthru
          _
      $region60: #{tpu_custom_call.1} parent=5 // pred_fallthru
        _
      %p404 = scmp.le.s32.totalorder 1, %s25
      %p405 = scmp.lt.s32.totalorder %s25, 3
      %p406 = pnand %p404, %p405
      %p407 = pneg %p406
      // Predicated region
      $region65: #{tpu_custom_call.1} parent=5 // pred_check
        _
      $region66: #{tpu_custom_call.1} parent=5 // pred_check_branch
        %409 = sbr.rel (%p406) target = $region68
      $region67: #{tpu_custom_call.1} parent=5 // pred_region
        %s410 = ssub.s32 %s25, 1
        %s411 = sand.u32 %s50, 1
        %s412 = scalar_lea.sflag [#allocation5], %s411
        %s413 = sand.u32 %s50, 1
        %s414 = smul.addr %s413, 8
        %s415 = scalar_lea.vmem [#allocation4], %s414
        // Predicated region
        $region69: #{tpu_custom_call.1} parent=67 // pred_check
          %p416 = pneg %p63
        $region70: #{tpu_custom_call.1} parent=67 // pred_check_branch
          %418 = sbr.rel (%p416) target = $region72
        $region71: #{tpu_custom_call.1} parent=67 // pred_region
          %420 = dma.done %s412, 128
        $region72: #{tpu_custom_call.1} parent=67 // pred_fallthru
          _
        // Predicated region
        $region73: #{tpu_custom_call.1} parent=67 // pred_check
          %p421 = pneg %p189
        $region74: #{tpu_custom_call.1} parent=67 // pred_check_branch
          %423 = sbr.rel (%p421) target = $region76
        $region75: #{tpu_custom_call.1} parent=67 // pred_region
          %425 = dma.done [#allocation8], 512
        $region76: #{tpu_custom_call.1} parent=67 // pred_fallthru
          _
        %s426 = sand.u32 %s50, 1
        %s427 = scalar_lea.sflag [#allocation5], %s426
        %s428 = sand.u32 %s50, 1
        %s429 = smul.addr %s428, 8
        %s430 = scalar_lea.vmem [#allocation4], %s429
        %p431 = pneg %p63
        %p432 = pneg %p60
        %p433 = pneg %p84
        %p434 = pneg %p81
        %p435 = pneg %p105
        %p436 = pneg %p102
        %p437 = pneg %p126
        %p438 = pneg %p123
        %p439 = pneg %p147
        %p440 = pneg %p144
        %p441 = pneg %p168
        %p442 = pneg %p165
        %p443 = pneg %p189
        %p444 = pneg %p186
        %p445 = pneg %p210
        %p446 = pneg %p207
        %p447 = pneg %p231
        %p448 = pneg %p228
        %p449 = pneg %p252
        %p450 = pneg %p249
        %p451 = pneg %p273
        %p452 = pneg %p270
        %p453 = pneg %p294
        %p454 = pneg %p291
        %p455 = pneg %p322
        %p456 = pneg %p319
        %s457 = sand.u32 %s309, 1
        %s458 = scalar_lea.sflag [#allocation6], %s457
        %s459 = sand.u32 %s309, 1
        %s460 = smul.addr %s459, 8
        %s461 = scalar_lea.vmem [#allocation9], %s460
        %p462 = scmp.eq.s32.totalorder %s35, 0
        // Predicated region
        $region77: #{tpu_custom_call.1} parent=67 // pred_check
          %p463 = pneg %p462
        $region78: #{tpu_custom_call.1} parent=67 // pred_check_branch
          %465 = sbr.rel (%p463) target = $region80
        $region79: #{tpu_custom_call.1} parent=67 // pred_region
          %v466 = vld [vmem:[%s415] sm:$0xff]
          %v467 = vld [vmem:[%s2] sm:$0xff]
          %v468 = vld [vmem:[%s2 + $0x8] sm:$0xff]
          %v469 = vld [vmem:[%s2 + $0x10] sm:$0xff]
          %v470 = vld [vmem:[%s2 + $0x18] sm:$0xff]
          %vm471 = vcmask 261120
          %v473 = vsel %vm471, %v466, 0
          %475 = vmatpush.msra.mxu0 0.0
          %476 = vmatpush.msra.mxu0 0.0
          %477 = vmatpush.msra.mxu0 0.0
          %478 = vmatpush.msra.mxu0 0.0
          %479 = vmatpush.msra.mxu0 0.0
          %480 = vmatpush.msra.mxu0 0.0
          %481 = vmatpush.msra.mxu0 0.0
          %482 = vmatpush.msra.mxu0 0.0
          %483 = vmatpush.msra.mxu0 0.0
          %484 = vmatpush.msra.mxu0 0.0
          %485 = vmatpush.msra.mxu0 0.0
          %486 = vmatpush.msra.mxu0 0.0
          %487 = vmatpush.msra.mxu0 %v470
          %488 = vmatpush.msra.mxu0 %v469
          %489 = vmatpush.msra.mxu0 %v468
          %490 = vmatpush.msra.mxu0 %v467
          %491 = vmatmul.f32.gmra.mxu0 %v473
          %v492 = vpop.f32.mrf.mxu0
          %v493 = vadd.f32 0.0, %v492
          %494 = vdwg.mxu0
          %496 = vrot.lane.b32.xlu0 %v493, 120
          %v497 = vpop.permute.xlu0 %496
          %499 = vrot.lane.b32.xlu0 %v493, 112
          %v500 = vpop.permute.xlu0 %499
          %502 = vrot.lane.b32.xlu0 %v493, 104
          %v503 = vpop.permute.xlu0 %502
          %v505 = vrot.slane %v500, 4
          %vm506 = vcmask 1047556
          %v507 = vsel %vm506, %v505, %v493
          %v508 = vrot.slane %v493, 4
          %v509 = vsel %vm506, %v500, %v508
          %v511 = vunpack.c.l.s4 1983009808
          %v512 = vunpack.c.0.s8 %v511
          %v513 = vperm.slane %v507, %v512
          %v515 = vunpack.c.l.s4 1983009808
          %v516 = vunpack.c.0.s8 %v515
          %v517 = vperm.slane %v509, %v516
          %v518 = vrot.slane %v503, 4
          %v519 = vsel %vm506, %v518, %v497
          %v520 = vrot.slane %v497, 4
          %v521 = vsel %vm506, %v503, %v520
          %v523 = vunpack.c.l.s4 1983009808
          %v524 = vunpack.c.0.s8 %v523
          %v525 = vperm.slane %v519, %v524
          %v527 = vunpack.c.l.s4 1983009808
          %v528 = vunpack.c.0.s8 %v527
          %v529 = vperm.slane %v521, %v528
          %v530 = vrot.slane %v525, 4
          %v531 = vsel %vm506, %v530, %v513
          %v532 = vrot.slane %v513, 4
          %v533 = vsel %vm506, %v525, %v532
          %v535 = vunpack.c.l.s4 1934713408
          %v536 = vunpack.c.0.s8 %v535
          %v537 = vperm.slane %v531, %v536
          %v539 = vunpack.c.l.s4 1934713408
          %v540 = vunpack.c.0.s8 %v539
          %v541 = vperm.slane %v533, %v540
          %v542 = vrot.slane %v529, 4
          %v543 = vsel %vm506, %v542, %v517
          %v544 = vrot.slane %v517, 4
          %v545 = vsel %vm506, %v529, %v544
          %v547 = vunpack.c.l.s4 1934713408
          %v548 = vunpack.c.0.s8 %v547
          %v549 = vperm.slane %v543, %v548
          %v551 = vunpack.c.l.s4 1934713408
          %v552 = vunpack.c.0.s8 %v551
          %v553 = vperm.slane %v545, %v552
          %v554 = vrot.slane %v537, 4
          %v555 = vsel %vm506, 0.0, %v554
          %v556 = vrot.slane %v541, 4
          %v557 = vsel %vm506, 0.0, %v556
          %v558 = vrot.slane %v549, 4
          %v559 = vsel %vm506, 0.0, %v558
          %v560 = vrot.slane %v553, 4
          %v561 = vsel %vm506, 0.0, %v560
          %v562 = vsel %vm506, %v556, %v537
          %v564 = vunpack.c.l.s4 1983009808
          %v565 = vunpack.c.0.s8 %v564
          %v566 = vperm.slane %v562, %v565
          %v567 = vrot.slane %v557, 4
          %v568 = vsel %vm506, %v567, %v555
          %v570 = vunpack.c.l.s4 1983009808
          %v571 = vunpack.c.0.s8 %v570
          %v572 = vperm.slane %v568, %v571
          %v573 = vsel %vm506, %v560, %v549
          %v575 = vunpack.c.l.s4 1983009808
          %v576 = vunpack.c.0.s8 %v575
          %v577 = vperm.slane %v573, %v576
          %v578 = vrot.slane %v561, 4
          %v579 = vsel %vm506, %v578, %v559
          %v581 = vunpack.c.l.s4 1983009808
          %v582 = vunpack.c.0.s8 %v581
          %v583 = vperm.slane %v579, %v582
          %v584 = vrot.slane %v572, 4
          %v585 = vsel %vm506, %v584, %v566
          %v586 = vrot.slane %v566, 4
          %v587 = vsel %vm506, %v572, %v586
          %v589 = vunpack.c.l.s4 1934713408
          %v590 = vunpack.c.0.s8 %v589
          %v591 = vperm.slane %v585, %v590
          %v593 = vunpack.c.l.s4 1934713408
          %v594 = vunpack.c.0.s8 %v593
          %v595 = vperm.slane %v587, %v594
          %v596 = vrot.slane %v583, 4
          %v597 = vsel %vm506, %v596, %v577
          %v598 = vrot.slane %v577, 4
          %v599 = vsel %vm506, %v583, %v598
          %v601 = vunpack.c.l.s4 1934713408
          %v602 = vunpack.c.0.s8 %v601
          %v603 = vperm.slane %v597, %v602
          %v605 = vunpack.c.l.s4 1934713408
          %v606 = vunpack.c.0.s8 %v605
          %v607 = vperm.slane %v599, %v606
          %v608 = vrot.slane %v603, 4
          %v609 = vsel %vm506, %v608, %v591
          %v610 = vrot.slane %v591, 4
          %v611 = vsel %vm506, %v603, %v610
          %v612 = vrot.slane %v607, 4
          %v613 = vsel %vm506, %v612, %v595
          %v614 = vrot.slane %v595, 4
          %v615 = vsel %vm506, %v607, %v614
          %vm616 = vcmask 64512
          %617 = vst.msk [vmem:[#allocation2] sm:$0xff] %vm616, %v609
          %618 = vst.msk [vmem:[#allocation2 + $0x8] sm:$0xff] %vm616, %v611
          %619 = vst.msk [vmem:[#allocation2 + $0x10] sm:$0xff] %vm616, %v613
          %620 = vst.msk [vmem:[#allocation2 + $0x18] sm:$0xff] %vm616, %v615
          %621 = vrot.lane.b32.xlu0 %v493, 96
          %v622 = vpop.permute.xlu0 %621
          %623 = vrot.lane.b32.xlu0 %v497, 96
          %v624 = vpop.permute.xlu0 %623
          %625 = vrot.lane.b32.xlu0 %v500, 96
          %v626 = vpop.permute.xlu0 %625
          %627 = vrot.lane.b32.xlu0 %v503, 96
          %v628 = vpop.permute.xlu0 %627
          %v633 = vrot.slane %v626, 4
          %v634 = vsel %vm506, %v633, %v622
          %v635 = vrot.slane %v622, 4
          %v636 = vsel %vm506, %v626, %v635
          %v638 = vunpack.c.l.s4 1983009808
          %v639 = vunpack.c.0.s8 %v638
          %v640 = vperm.slane %v634, %v639
          %v642 = vunpack.c.l.s4 1983009808
          %v643 = vunpack.c.0.s8 %v642
          %v644 = vperm.slane %v636, %v643
          %v645 = vrot.slane %v628, 4
          %v646 = vsel %vm506, %v645, %v624
          %v647 = vrot.slane %v624, 4
          %v648 = vsel %vm506, %v628, %v647
          %v650 = vunpack.c.l.s4 1983009808
          %v651 = vunpack.c.0.s8 %v650
          %v652 = vperm.slane %v646, %v651
          %v654 = vunpack.c.l.s4 1983009808
          %v655 = vunpack.c.0.s8 %v654
          %v656 = vperm.slane %v648, %v655
          %v657 = vrot.slane %v652, 4
          %v658 = vsel %vm506, %v657, %v640
          %v659 = vrot.slane %v640, 4
          %v660 = vsel %vm506, %v652, %v659
          %v662 = vunpack.c.l.s4 1934713408
          %v663 = vunpack.c.0.s8 %v662
          %v664 = vperm.slane %v658, %v663
          %v666 = vunpack.c.l.s4 1934713408
          %v667 = vunpack.c.0.s8 %v666
          %v668 = vperm.slane %v660, %v667
          %v669 = vrot.slane %v656, 4
          %v670 = vsel %vm506, %v669, %v644
          %v671 = vrot.slane %v644, 4
          %v672 = vsel %vm506, %v656, %v671
          %v674 = vunpack.c.l.s4 1934713408
          %v675 = vunpack.c.0.s8 %v674
          %v676 = vperm.slane %v670, %v675
          %v678 = vunpack.c.l.s4 1934713408
          %v679 = vunpack.c.0.s8 %v678
          %v680 = vperm.slane %v672, %v679
          %v681 = vrot.slane %v664, 4
          %v682 = vsel %vm506, 0.0, %v681
          %v683 = vrot.slane %v668, 4
          %v684 = vsel %vm506, 0.0, %v683
          %v685 = vrot.slane %v676, 4
          %v686 = vsel %vm506, 0.0, %v685
          %v687 = vrot.slane %v680, 4
          %v688 = vsel %vm506, 0.0, %v687
          %v689 = vsel %vm506, %v683, %v664
          %v691 = vunpack.c.l.s4 1983009808
          %v692 = vunpack.c.0.s8 %v691
          %v693 = vperm.slane %v689, %v692
          %v694 = vrot.slane %v684, 4
          %v695 = vsel %vm506, %v694, %v682
          %v697 = vunpack.c.l.s4 1983009808
          %v698 = vunpack.c.0.s8 %v697
          %v699 = vperm.slane %v695, %v698
          %v700 = vsel %vm506, %v687, %v676
          %v702 = vunpack.c.l.s4 1983009808
          %v703 = vunpack.c.0.s8 %v702
          %v704 = vperm.slane %v700, %v703
          %v705 = vrot.slane %v688, 4
          %v706 = vsel %vm506, %v705, %v686
          %v708 = vunpack.c.l.s4 1983009808
          %v709 = vunpack.c.0.s8 %v708
          %v710 = vperm.slane %v706, %v709
          %v711 = vrot.slane %v699, 4
          %v712 = vsel %vm506, %v711, %v693
          %v713 = vrot.slane %v693, 4
          %v714 = vsel %vm506, %v699, %v713
          %v716 = vunpack.c.l.s4 1934713408
          %v717 = vunpack.c.0.s8 %v716
          %v718 = vperm.slane %v712, %v717
          %v720 = vunpack.c.l.s4 1934713408
          %v721 = vunpack.c.0.s8 %v720
          %v722 = vperm.slane %v714, %v721
          %v723 = vrot.slane %v710, 4
          %v724 = vsel %vm506, %v723, %v704
          %v725 = vrot.slane %v704, 4
          %v726 = vsel %vm506, %v710, %v725
          %v728 = vunpack.c.l.s4 1934713408
          %v729 = vunpack.c.0.s8 %v728
          %v730 = vperm.slane %v724, %v729
          %v732 = vunpack.c.l.s4 1934713408
          %v733 = vunpack.c.0.s8 %v732
          %v734 = vperm.slane %v726, %v733
          %v735 = vrot.slane %v730, 4
          %v736 = vsel %vm506, %v735, %v718
          %v737 = vrot.slane %v718, 4
          %v738 = vsel %vm506, %v730, %v737
          %v739 = vrot.slane %v734, 4
          %v740 = vsel %vm506, %v739, %v722
          %v741 = vrot.slane %v722, 4
          %v742 = vsel %vm506, %v734, %v741
          %743 = vst.msk [vmem:[#allocation3] sm:$0xff] %vm616, %v736
          %744 = vst.msk [vmem:[#allocation3 + $0x8] sm:$0xff] %vm616, %v738
          %745 = vst.msk [vmem:[#allocation3 + $0x10] sm:$0xff] %vm616, %v740
          %746 = vst.msk [vmem:[#allocation3 + $0x18] sm:$0xff] %vm616, %v742
        $region80: #{tpu_custom_call.1} parent=67 // pred_fallthru
          _
        %s747 = smul.u32 %s35, 8
        %s748 = scalar_lea.vmem %s415, %s747 [#allocation4]
        %v749 = vld [vmem:[%s748] sm:$0xff]
        %v750 = vld [vmem:[%s1] sm:$0xff]
        %v751 = vld [vmem:[%s1 + $0x8] sm:$0xff]
        %v752 = vld [vmem:[%s1 + $0x10] sm:$0xff]
        %v753 = vld [vmem:[%s1 + $0x18] sm:$0xff]
        %vm754 = vcmask 261120
        %v756 = vsel %vm754, %v749, 0
        %758 = vmatpush.msra.mxu0 0.0
        %759 = vmatpush.msra.mxu0 0.0
        %760 = vmatpush.msra.mxu0 0.0
        %761 = vmatpush.msra.mxu0 0.0
        %762 = vmatpush.msra.mxu0 0.0
        %763 = vmatpush.msra.mxu0 0.0
        %764 = vmatpush.msra.mxu0 0.0
        %765 = vmatpush.msra.mxu0 0.0
        %766 = vmatpush.msra.mxu0 0.0
        %767 = vmatpush.msra.mxu0 0.0
        %768 = vmatpush.msra.mxu0 0.0
        %769 = vmatpush.msra.mxu0 0.0
        %770 = vmatpush.msra.mxu0 %v753
        %771 = vmatpush.msra.mxu0 %v752
        %772 = vmatpush.msra.mxu0 %v751
        %773 = vmatpush.msra.mxu0 %v750
        %774 = vmatmul.f32.gmra.mxu0 %v756
        %v775 = vpop.f32.mrf.mxu0
        %v776 = vadd.f32 0.0, %v775
        %777 = vdwg.mxu0
        %v778 = vmul.f32 %v776, 0.35355338
        %780 = vrot.lane.b32.xlu0 %v778, 120
        %v781 = vpop.permute.xlu0 %780
        %783 = vrot.lane.b32.xlu0 %v778, 112
        %v784 = vpop.permute.xlu0 %783
        %786 = vrot.lane.b32.xlu0 %v778, 104
        %v787 = vpop.permute.xlu0 %786
        %v789 = vrot.slane %v784, 4
        %vm790 = vcmask 1047556
        %v791 = vsel %vm790, %v789, %v778
        %v792 = vrot.slane %v778, 4
        %v793 = vsel %vm790, %v784, %v792
        %v795 = vunpack.c.l.s4 1983009808
        %v796 = vunpack.c.0.s8 %v795
        %v797 = vperm.slane %v791, %v796
        %v799 = vunpack.c.l.s4 1983009808
        %v800 = vunpack.c.0.s8 %v799
        %v801 = vperm.slane %v793, %v800
        %v802 = vrot.slane %v787, 4
        %v803 = vsel %vm790, %v802, %v781
        %v804 = vrot.slane %v781, 4
        %v805 = vsel %vm790, %v787, %v804
        %v807 = vunpack.c.l.s4 1983009808
        %v808 = vunpack.c.0.s8 %v807
        %v809 = vperm.slane %v803, %v808
        %v811 = vunpack.c.l.s4 1983009808
        %v812 = vunpack.c.0.s8 %v811
        %v813 = vperm.slane %v805, %v812
        %v814 = vrot.slane %v809, 4
        %v815 = vsel %vm790, %v814, %v797
        %v816 = vrot.slane %v797, 4
        %v817 = vsel %vm790, %v809, %v816
        %v819 = vunpack.c.l.s4 1934713408
        %v820 = vunpack.c.0.s8 %v819
        %v821 = vperm.slane %v815, %v820
        %v823 = vunpack.c.l.s4 1934713408
        %v824 = vunpack.c.0.s8 %v823
        %v825 = vperm.slane %v817, %v824
        %v826 = vrot.slane %v813, 4
        %v827 = vsel %vm790, %v826, %v801
        %v828 = vrot.slane %v801, 4
        %v829 = vsel %vm790, %v813, %v828
        %v831 = vunpack.c.l.s4 1934713408
        %v832 = vunpack.c.0.s8 %v831
        %v833 = vperm.slane %v827, %v832
        %v835 = vunpack.c.l.s4 1934713408
        %v836 = vunpack.c.0.s8 %v835
        %v837 = vperm.slane %v829, %v836
        %v838 = vrot.slane %v821, 4
        %v839 = vsel %vm790, 0.0, %v838
        %v840 = vrot.slane %v825, 4
        %v841 = vsel %vm790, 0.0, %v840
        %v842 = vrot.slane %v833, 4
        %v843 = vsel %vm790, 0.0, %v842
        %v844 = vrot.slane %v837, 4
        %v845 = vsel %vm790, 0.0, %v844
        %v846 = vsel %vm790, %v840, %v821
        %v848 = vunpack.c.l.s4 1983009808
        %v849 = vunpack.c.0.s8 %v848
        %v850 = vperm.slane %v846, %v849
        %v851 = vrot.slane %v841, 4
        %v852 = vsel %vm790, %v851, %v839
        %v854 = vunpack.c.l.s4 1983009808
        %v855 = vunpack.c.0.s8 %v854
        %v856 = vperm.slane %v852, %v855
        %v857 = vsel %vm790, %v844, %v833
        %v859 = vunpack.c.l.s4 1983009808
        %v860 = vunpack.c.0.s8 %v859
        %v861 = vperm.slane %v857, %v860
        %v862 = vrot.slane %v845, 4
        %v863 = vsel %vm790, %v862, %v843
        %v865 = vunpack.c.l.s4 1983009808
        %v866 = vunpack.c.0.s8 %v865
        %v867 = vperm.slane %v863, %v866
        %v868 = vrot.slane %v856, 4
        %v869 = vsel %vm790, %v868, %v850
        %v870 = vrot.slane %v850, 4
        %v871 = vsel %vm790, %v856, %v870
        %v873 = vunpack.c.l.s4 1934713408
        %v874 = vunpack.c.0.s8 %v873
        %v875 = vperm.slane %v869, %v874
        %v877 = vunpack.c.l.s4 1934713408
        %v878 = vunpack.c.0.s8 %v877
        %v879 = vperm.slane %v871, %v878
        %v880 = vrot.slane %v867, 4
        %v881 = vsel %vm790, %v880, %v861
        %v882 = vrot.slane %v861, 4
        %v883 = vsel %vm790, %v867, %v882
        %v885 = vunpack.c.l.s4 1934713408
        %v886 = vunpack.c.0.s8 %v885
        %v887 = vperm.slane %v881, %v886
        %v889 = vunpack.c.l.s4 1934713408
        %v890 = vunpack.c.0.s8 %v889
        %v891 = vperm.slane %v883, %v890
        %v892 = vrot.slane %v887, 4
        %v893 = vsel %vm790, %v892, %v875
        %v894 = vrot.slane %v875, 4
        %v895 = vsel %vm790, %v887, %v894
        %v896 = vrot.slane %v891, 4
        %v897 = vsel %vm790, %v896, %v879
        %v898 = vrot.slane %v879, 4
        %v899 = vsel %vm790, %v891, %v898
        %v900 = vld [vmem:[#allocation2] sm:$0xff]
        %v901 = vld [vmem:[#allocation2 + $0x8] sm:$0xff]
        %v902 = vld [vmem:[#allocation2 + $0x10] sm:$0xff]
        %v903 = vld [vmem:[#allocation2 + $0x18] sm:$0xff]
        %vm904 = vcmask 64512
        %v906 = vsel %vm904, %v893, 0
        %v909 = vsel %vm904, %v900, 0
        %911 = vmatpush.xpose.msra.mxu0 0.0
        %912 = vmatpush.xpose.msra.mxu0 0.0
        %913 = vmatpush.xpose.msra.mxu0 0.0
        %914 = vmatpush.xpose.msra.mxu0 0.0
        %915 = vmatpush.xpose.msra.mxu0 0.0
        %916 = vmatpush.xpose.msra.mxu0 0.0
        %917 = vmatpush.xpose.msra.mxu0 0.0
        %918 = vmatpush.xpose.msra.mxu0 0.0
        %919 = vmatpush.xpose.msra.mxu0 0.0
        %920 = vmatpush.xpose.msra.mxu0 0.0
        %921 = vmatpush.xpose.msra.mxu0 0.0
        %922 = vmatpush.xpose.msra.mxu0 0.0
        %923 = vmatpush.xpose.msra.mxu0 0.0
        %924 = vmatpush.xpose.msra.mxu0 0.0
        %925 = vmatpush.xpose.msra.mxu0 0.0
        %926 = vmatpush.xpose.msra.mxu0 %v909
        %927 = vmatmul.f32.gmra.mxu0 %v906
        %v928 = vpop.f32.mrf.mxu0
        %v929 = vadd.f32 0.0, %v928
        %930 = vdwg.mxu0
        %v932 = vsel %vm904, %v895, 0
        %v935 = vsel %vm904, %v901, 0
        %937 = vmatpush.xpose.msra.mxu0 0.0
        %938 = vmatpush.xpose.msra.mxu0 0.0
        %939 = vmatpush.xpose.msra.mxu0 0.0
        %940 = vmatpush.xpose.msra.mxu0 0.0
        %941 = vmatpush.xpose.msra.mxu0 0.0
        %942 = vmatpush.xpose.msra.mxu0 0.0
        %943 = vmatpush.xpose.msra.mxu0 0.0
        %944 = vmatpush.xpose.msra.mxu0 0.0
        %945 = vmatpush.xpose.msra.mxu0 0.0
        %946 = vmatpush.xpose.msra.mxu0 0.0
        %947 = vmatpush.xpose.msra.mxu0 0.0
        %948 = vmatpush.xpose.msra.mxu0 0.0
        %949 = vmatpush.xpose.msra.mxu0 0.0
        %950 = vmatpush.xpose.msra.mxu0 0.0
        %951 = vmatpush.xpose.msra.mxu0 0.0
        %952 = vmatpush.xpose.msra.mxu0 %v935
        %953 = vmatmul.f32.gmra.mxu0 %v932
        %v954 = vpop.f32.mrf.mxu0
        %v955 = vadd.f32 0.0, %v954
        %956 = vdwg.mxu0
        %v958 = vsel %vm904, %v897, 0
        %v961 = vsel %vm904, %v902, 0
        %963 = vmatpush.xpose.msra.mxu0 0.0
        %964 = vmatpush.xpose.msra.mxu0 0.0
        %965 = vmatpush.xpose.msra.mxu0 0.0
        %966 = vmatpush.xpose.msra.mxu0 0.0
        %967 = vmatpush.xpose.msra.mxu0 0.0
        %968 = vmatpush.xpose.msra.mxu0 0.0
        %969 = vmatpush.xpose.msra.mxu0 0.0
        %970 = vmatpush.xpose.msra.mxu0 0.0
        %971 = vmatpush.xpose.msra.mxu0 0.0
        %972 = vmatpush.xpose.msra.mxu0 0.0
        %973 = vmatpush.xpose.msra.mxu0 0.0
        %974 = vmatpush.xpose.msra.mxu0 0.0
        %975 = vmatpush.xpose.msra.mxu0 0.0
        %976 = vmatpush.xpose.msra.mxu0 0.0
        %977 = vmatpush.xpose.msra.mxu0 0.0
        %978 = vmatpush.xpose.msra.mxu0 %v961
        %979 = vmatmul.f32.gmra.mxu0 %v958
        %v980 = vpop.f32.mrf.mxu0
        %v981 = vadd.f32 0.0, %v980
        %982 = vdwg.mxu0
        %v984 = vsel %vm904, %v899, 0
        %v987 = vsel %vm904, %v903, 0
        %989 = vmatpush.xpose.msra.mxu0 0.0
        %990 = vmatpush.xpose.msra.mxu0 0.0
        %991 = vmatpush.xpose.msra.mxu0 0.0
        %992 = vmatpush.xpose.msra.mxu0 0.0
        %993 = vmatpush.xpose.msra.mxu0 0.0
        %994 = vmatpush.xpose.msra.mxu0 0.0
        %995 = vmatpush.xpose.msra.mxu0 0.0
        %996 = vmatpush.xpose.msra.mxu0 0.0
        %997 = vmatpush.xpose.msra.mxu0 0.0
        %998 = vmatpush.xpose.msra.mxu0 0.0
        %999 = vmatpush.xpose.msra.mxu0 0.0
        %1000 = vmatpush.xpose.msra.mxu0 0.0
        %1001 = vmatpush.xpose.msra.mxu0 0.0
        %1002 = vmatpush.xpose.msra.mxu0 0.0
        %1003 = vmatpush.xpose.msra.mxu0 0.0
        %1004 = vmatpush.xpose.msra.mxu0 %v987
        %1005 = vmatmul.f32.gmra.mxu0 %v984
        %v1006 = vpop.f32.mrf.mxu0
        %v1007 = vadd.f32 0.0, %v1006
        %1008 = vdwg.mxu0
        %v1009 = vsel %vm904, %v929, -inf
        %1010 = vmax.xlane.f32.xlu0 %v1009
        %v1011 = vpop.xlane.xlu0 %1010
        %v1012 = vsel %vm904, %v955, -inf
        %1013 = vmax.xlane.f32.xlu0 %v1012
        %v1014 = vpop.xlane.xlu0 %1013
        %v1015 = vsel %vm904, %v981, -inf
        %1016 = vmax.xlane.f32.xlu0 %v1015
        %v1017 = vpop.xlane.xlu0 %1016
        %v1018 = vsel %vm904, %v1007, -inf
        %1019 = vmax.xlane.f32.xlu0 %v1018
        %v1020 = vpop.xlane.xlu0 %1019
        %v1021 = vsub.f32 %v929, %v1011
        %v1022 = vsub.f32 %v955, %v1014
        %v1023 = vsub.f32 %v981, %v1017
        %v1024 = vsub.f32 %v1007, %v1020
        %v1025 = vmul.f32 %v1021, 1.442695
        %v1026 = vpow.pop %v1025
        %v1027 = vmul.f32 %v1022, 1.442695
        %v1028 = vpow.pop %v1027
        %v1029 = vmul.f32 %v1023, 1.442695
        %v1030 = vpow.pop %v1029
        %v1031 = vmul.f32 %v1024, 1.442695
        %v1032 = vpow.pop %v1031
        %v1033 = vsel %vm904, %v1026, 0.0
        %1034 = vadd.xlane.f32.xlu0 %v1033
        %v1035 = vpop.xlane.xlu0 %1034
        %v1036 = vsel %vm904, %v1028, 0.0
        %1037 = vadd.xlane.f32.xlu0 %v1036
        %v1038 = vpop.xlane.xlu0 %1037
        %v1039 = vsel %vm904, %v1030, 0.0
        %1040 = vadd.xlane.f32.xlu0 %v1039
        %v1041 = vpop.xlane.xlu0 %1040
        %v1042 = vsel %vm904, %v1032, 0.0
        %1043 = vadd.xlane.f32.xlu0 %v1042
        %v1044 = vpop.xlane.xlu0 %1043
        %v1045 = vld [vmem:[#allocation3] sm:$0xff]
        %v1046 = vld [vmem:[#allocation3 + $0x8] sm:$0xff]
        %v1047 = vld [vmem:[#allocation3 + $0x10] sm:$0xff]
        %v1048 = vld [vmem:[#allocation3 + $0x18] sm:$0xff]
        %v1050 = vsel %vm904, %v1026, 0
        %1052 = vmatpush.msra.mxu0 0.0
        %1053 = vmatpush.msra.mxu0 0.0
        %1054 = vmatpush.msra.mxu0 0.0
        %1055 = vmatpush.msra.mxu0 0.0
        %1056 = vmatpush.msra.mxu0 0.0
        %1057 = vmatpush.msra.mxu0 0.0
        %1058 = vmatpush.msra.mxu0 0.0
        %1059 = vmatpush.msra.mxu0 0.0
        %1060 = vmatpush.msra.mxu0 0.0
        %1061 = vmatpush.msra.mxu0 0.0
        %1062 = vmatpush.msra.mxu0 0.0
        %1063 = vmatpush.msra.mxu0 0.0
        %1064 = vmatpush.msra.mxu0 0.0
        %1065 = vmatpush.msra.mxu0 0.0
        %1066 = vmatpush.msra.mxu0 0.0
        %1067 = vmatpush.msra.mxu0 %v1045
        %1068 = vmatmul.f32.gmra.mxu0 %v1050
        %v1069 = vpop.f32.mrf.mxu0
        %v1070 = vadd.f32 0.0, %v1069
        %1071 = vdwg.mxu0
        %v1073 = vsel %vm904, %v1028, 0
        %1075 = vmatpush.msra.mxu0 0.0
        %1076 = vmatpush.msra.mxu0 0.0
        %1077 = vmatpush.msra.mxu0 0.0
        %1078 = vmatpush.msra.mxu0 0.0
        %1079 = vmatpush.msra.mxu0 0.0
        %1080 = vmatpush.msra.mxu0 0.0
        %1081 = vmatpush.msra.mxu0 0.0
        %1082 = vmatpush.msra.mxu0 0.0
        %1083 = vmatpush.msra.mxu0 0.0
        %1084 = vmatpush.msra.mxu0 0.0
        %1085 = vmatpush.msra.mxu0 0.0
        %1086 = vmatpush.msra.mxu0 0.0
        %1087 = vmatpush.msra.mxu0 0.0
        %1088 = vmatpush.msra.mxu0 0.0
        %1089 = vmatpush.msra.mxu0 0.0
        %1090 = vmatpush.msra.mxu0 %v1046
        %1091 = vmatmul.f32.gmra.mxu0 %v1073
        %v1092 = vpop.f32.mrf.mxu0
        %v1093 = vadd.f32 0.0, %v1092
        %1094 = vdwg.mxu0
        %v1096 = vsel %vm904, %v1030, 0
        %1098 = vmatpush.msra.mxu0 0.0
        %1099 = vmatpush.msra.mxu0 0.0
        %1100 = vmatpush.msra.mxu0 0.0
        %1101 = vmatpush.msra.mxu0 0.0
        %1102 = vmatpush.msra.mxu0 0.0
        %1103 = vmatpush.msra.mxu0 0.0
        %1104 = vmatpush.msra.mxu0 0.0
        %1105 = vmatpush.msra.mxu0 0.0
        %1106 = vmatpush.msra.mxu0 0.0
        %1107 = vmatpush.msra.mxu0 0.0
        %1108 = vmatpush.msra.mxu0 0.0
        %1109 = vmatpush.msra.mxu0 0.0
        %1110 = vmatpush.msra.mxu0 0.0
        %1111 = vmatpush.msra.mxu0 0.0
        %1112 = vmatpush.msra.mxu0 0.0
        %1113 = vmatpush.msra.mxu0 %v1047
        %1114 = vmatmul.f32.gmra.mxu0 %v1096
        %v1115 = vpop.f32.mrf.mxu0
        %v1116 = vadd.f32 0.0, %v1115
        %1117 = vdwg.mxu0
        %v1119 = vsel %vm904, %v1032, 0
        %1121 = vmatpush.msra.mxu0 0.0
        %1122 = vmatpush.msra.mxu0 0.0
        %1123 = vmatpush.msra.mxu0 0.0
        %1124 = vmatpush.msra.mxu0 0.0
        %1125 = vmatpush.msra.mxu0 0.0
        %1126 = vmatpush.msra.mxu0 0.0
        %1127 = vmatpush.msra.mxu0 0.0
        %1128 = vmatpush.msra.mxu0 0.0
        %1129 = vmatpush.msra.mxu0 0.0
        %1130 = vmatpush.msra.mxu0 0.0
        %1131 = vmatpush.msra.mxu0 0.0
        %1132 = vmatpush.msra.mxu0 0.0
        %1133 = vmatpush.msra.mxu0 0.0
        %1134 = vmatpush.msra.mxu0 0.0
        %1135 = vmatpush.msra.mxu0 0.0
        %1136 = vmatpush.msra.mxu0 %v1048
        %1137 = vmatmul.f32.gmra.mxu0 %v1119
        %v1138 = vpop.f32.mrf.mxu0
        %v1139 = vadd.f32 0.0, %v1138
        %1140 = vdwg.mxu0
        %v1141 = vrcp.pop %v1035
        %v1142 = vrcp.pop %v1038
        %v1143 = vrcp.pop %v1041
        %v1144 = vrcp.pop %v1044
        %v1145 = vmul.f32 %v1070, %v1141
        %v1146 = vmul.f32 %v1093, %v1142
        %v1147 = vmul.f32 %v1116, %v1143
        %v1148 = vmul.f32 %v1139, %v1144
        %v1149 = vrot.slane %v1147, 4
        %v1150 = vsel %vm790, %v1149, %v1145
        %v1151 = vrot.slane %v1145, 4
        %v1152 = vsel %vm790, %v1147, %v1151
        %v1154 = vunpack.c.l.s4 1983009808
        %v1155 = vunpack.c.0.s8 %v1154
        %v1156 = vperm.slane %v1150, %v1155
        %v1158 = vunpack.c.l.s4 1983009808
        %v1159 = vunpack.c.0.s8 %v1158
        %v1160 = vperm.slane %v1152, %v1159
        %v1161 = vrot.slane %v1148, 4
        %v1162 = vsel %vm790, %v1161, %v1146
        %v1163 = vrot.slane %v1146, 4
        %v1164 = vsel %vm790, %v1148, %v1163
        %v1166 = vunpack.c.l.s4 1983009808
        %v1167 = vunpack.c.0.s8 %v1166
        %v1168 = vperm.slane %v1162, %v1167
        %v1170 = vunpack.c.l.s4 1983009808
        %v1171 = vunpack.c.0.s8 %v1170
        %v1172 = vperm.slane %v1164, %v1171
        %v1173 = vrot.slane %v1168, 4
        %v1174 = vsel %vm790, %v1173, %v1156
        %v1175 = vrot.slane %v1156, 4
        %v1176 = vsel %vm790, %v1168, %v1175
        %v1178 = vunpack.c.l.s4 1934713408
        %v1179 = vunpack.c.0.s8 %v1178
        %v1180 = vperm.slane %v1174, %v1179
        %v1182 = vunpack.c.l.s4 1934713408
        %v1183 = vunpack.c.0.s8 %v1182
        %v1184 = vperm.slane %v1176, %v1183
        %v1185 = vrot.slane %v1172, 4
        %v1186 = vsel %vm790, %v1185, %v1160
        %v1187 = vrot.slane %v1160, 4
        %v1188 = vsel %vm790, %v1172, %v1187
        %v1190 = vunpack.c.l.s4 1934713408
        %v1191 = vunpack.c.0.s8 %v1190
        %v1192 = vperm.slane %v1186, %v1191
        %v1194 = vunpack.c.l.s4 1934713408
        %v1195 = vunpack.c.0.s8 %v1194
        %v1196 = vperm.slane %v1188, %v1195
        %v1197 = vrot.slane %v1180, 4
        %v1198 = vsel %vm790, 0.0, %v1197
        %v1199 = vrot.slane %v1184, 4
        %v1200 = vsel %vm790, 0.0, %v1199
        %v1201 = vrot.slane %v1192, 4
        %v1202 = vsel %vm790, 0.0, %v1201
        %v1203 = vrot.slane %v1196, 4
        %v1204 = vsel %vm790, 0.0, %v1203
        %v1205 = vsel %vm790, %v1199, %v1180
        %v1207 = vunpack.c.l.s4 1983009808
        %v1208 = vunpack.c.0.s8 %v1207
        %v1209 = vperm.slane %v1205, %v1208
        %v1210 = vrot.slane %v1200, 4
        %v1211 = vsel %vm790, %v1210, %v1198
        %v1213 = vunpack.c.l.s4 1983009808
        %v1214 = vunpack.c.0.s8 %v1213
        %v1215 = vperm.slane %v1211, %v1214
        %v1216 = vsel %vm790, %v1203, %v1192
        %v1218 = vunpack.c.l.s4 1983009808
        %v1219 = vunpack.c.0.s8 %v1218
        %v1220 = vperm.slane %v1216, %v1219
        %v1221 = vrot.slane %v1204, 4
        %v1222 = vsel %vm790, %v1221, %v1202
        %v1224 = vunpack.c.l.s4 1983009808
        %v1225 = vunpack.c.0.s8 %v1224
        %v1226 = vperm.slane %v1222, %v1225
        %v1227 = vrot.slane %v1215, 4
        %v1228 = vsel %vm790, %v1227, %v1209
        %v1229 = vrot.slane %v1209, 4
        %v1230 = vsel %vm790, %v1215, %v1229
        %v1232 = vunpack.c.l.s4 1934713408
        %v1233 = vunpack.c.0.s8 %v1232
        %v1234 = vperm.slane %v1228, %v1233
        %v1236 = vunpack.c.l.s4 1934713408
        %v1237 = vunpack.c.0.s8 %v1236
        %v1238 = vperm.slane %v1230, %v1237
        %v1239 = vrot.slane %v1226, 4
        %v1240 = vsel %vm790, %v1239, %v1220
        %v1241 = vrot.slane %v1220, 4
        %v1242 = vsel %vm790, %v1226, %v1241
        %v1244 = vunpack.c.l.s4 1934713408
        %v1245 = vunpack.c.0.s8 %v1244
        %v1246 = vperm.slane %v1240, %v1245
        %v1248 = vunpack.c.l.s4 1934713408
        %v1249 = vunpack.c.0.s8 %v1248
        %v1250 = vperm.slane %v1242, %v1249
        %v1251 = vrot.slane %v1246, 4
        %v1252 = vsel %vm790, %v1251, %v1234
        %v1253 = vrot.slane %v1234, 4
        %v1254 = vsel %vm790, %v1246, %v1253
        %v1255 = vrot.slane %v1250, 4
        %v1256 = vsel %vm790, %v1255, %v1238
        %v1257 = vrot.slane %v1238, 4
        %v1258 = vsel %vm790, %v1250, %v1257
        %1260 = vrot.lane.b32.xlu0 %v1254, 8
        %v1261 = vpop.permute.xlu0 %1260
        %1264 = vrot.lane.b32.xlu0 %v1256, 16
        %v1265 = vpop.permute.xlu0 %1264
        %1268 = vrot.lane.b32.xlu0 %v1258, 24
        %v1269 = vpop.permute.xlu0 %1268
        %v1271 = vsel %vm904, %v1252, %v1261
        %vm1272 = vcmask 130048
        %v1273 = vsel %vm1272, %v1271, %v1265
        %vm1274 = vcmask 195584
        %v1275 = vsel %vm1274, %v1273, %v1269
        %v1276 = vld [vmem:[%s3] sm:$0xff]
        %v1277 = vld [vmem:[%s3 + $0x8] sm:$0xff]
        %v1278 = vld [vmem:[%s3 + $0x10] sm:$0xff]
        %v1279 = vld [vmem:[%s3 + $0x18] sm:$0xff]
        %v1281 = vsel %vm754, %v1275, 0
        %1283 = vmatpush.msra.mxu0 0.0
        %1284 = vmatpush.msra.mxu0 0.0
        %1285 = vmatpush.msra.mxu0 0.0
        %1286 = vmatpush.msra.mxu0 0.0
        %1287 = vmatpush.msra.mxu0 0.0
        %1288 = vmatpush.msra.mxu0 0.0
        %1289 = vmatpush.msra.mxu0 0.0
        %1290 = vmatpush.msra.mxu0 0.0
        %1291 = vmatpush.msra.mxu0 0.0
        %1292 = vmatpush.msra.mxu0 0.0
        %1293 = vmatpush.msra.mxu0 0.0
        %1294 = vmatpush.msra.mxu0 0.0
        %1295 = vmatpush.msra.mxu0 %v1279
        %1296 = vmatpush.msra.mxu0 %v1278
        %1297 = vmatpush.msra.mxu0 %v1277
        %1298 = vmatpush.msra.mxu0 %v1276
        %1299 = vmatmul.f32.gmra.mxu0 %v1281
        %v1300 = vpop.f32.mrf.mxu0
        %v1301 = vadd.f32 %v749, %v1300
        %1302 = vdwg.mxu0
        %v1303 = vld [vmem:[%s4] sm:$0x1]
        %v1304 = vld [vmem:[%s5] sm:$0x1]
        %v1305 = vsel %vm754, %v1301, 0.0
        %1306 = vadd.xlane.f32.xlu0 %v1305
        %v1307 = vpop.xlane.xlu0 %1306
        %v1308 = vrcp.pop 32.0
        %v1309 = vmul.f32 32.0, %v1308
        %v1310 = vsub.f32 1.0, %v1309
        %v1311 = vmul.f32 %v1308, %v1310
        %v1312 = vadd.f32 %v1308, %v1311
        %vm1313 = vweird.f32 %v1308
        %v1314 = vsel %vm1313, %v1308, %v1312
        %v1315 = vmul.f32 %v1307, %v1314
        %v1316 = vsub.f32 %v1301, %v1315
        %v1317 = vmul.f32 %v1316, %v1316
        %v1318 = vsel %vm754, %v1317, 0.0
        %1319 = vadd.xlane.f32.xlu0 %v1318
        %v1320 = vpop.xlane.xlu0 %1319
        %v1321 = vmul.f32 %v1320, %v1314
        %v1322 = vadd.f32 %v1321, 1e-06
        %v1323 = vrsqrt.pop %v1322
        %v1324 = vmul.f32 %v1323, %v1322
        %v1325 = vmul.f32 %v1324, %v1323
        %v1326 = vmul.f32 0.5, %v1325
        %v1327 = vsub.f32 1.5, %v1326
        %v1328 = vmul.f32 %v1323, %v1327
        %vm1329 = vweird.f32 %v1322
        %vm1330 = vweird.f32 %v1323
        %vm1331 = vmor %vm1329, %vm1330
        %v1332 = vsel %vm1331, %v1323, %v1328
        %v1333 = vmul.f32 %v1316, %v1332
        %v1335 = vperm.slane %v1303, 0
        %v1337 = vmul.f32 %v1333, %v1335
        %v1339 = vperm.slane %v1304, 0
        %v1341 = vadd.f32 %v1337, %v1339
        %v1342 = vld [vmem:[#allocation7] sm:$0xff]
        %v1343 = vld [vmem:[#allocation7 + $0x8] sm:$0xff]
        %v1344 = vld [vmem:[#allocation7 + $0x10] sm:$0xff]
        %v1345 = vld [vmem:[#allocation7 + $0x18] sm:$0xff]
        %v1346 = vld [vmem:[%s7] sm:$0x1]
        %v1348 = vperm.slane %v1346, 0
        %v1351 = vsel %vm754, %v1341, 0
        %1353 = vmatpush.msra.mxu0 0.0
        %1354 = vmatpush.msra.mxu0 0.0
        %1355 = vmatpush.msra.mxu0 0.0
        %1356 = vmatpush.msra.mxu0 0.0
        %1357 = vmatpush.msra.mxu0 0.0
        %1358 = vmatpush.msra.mxu0 0.0
        %1359 = vmatpush.msra.mxu0 0.0
        %1360 = vmatpush.msra.mxu0 0.0
        %1361 = vmatpush.msra.mxu0 0.0
        %1362 = vmatpush.msra.mxu0 0.0
        %1363 = vmatpush.msra.mxu0 0.0
        %1364 = vmatpush.msra.mxu0 0.0
        %1365 = vmatpush.msra.mxu0 %v1345
        %1366 = vmatpush.msra.mxu0 %v1344
        %1367 = vmatpush.msra.mxu0 %v1343
        %1368 = vmatpush.msra.mxu0 %v1342
        %1369 = vmatmul.f32.gmra.mxu0 %v1351
        %v1370 = vpop.f32.mrf.mxu0
        %v1371 = vadd.f32 %v1348, %v1370
        %1372 = vdwg.mxu0
        %v1373 = vmax.f32 %v1371, 0.0
        %v1374 = vld [vmem:[%s8] sm:$0xff]
        %v1375 = vld [vmem:[%s8 + $0x8] sm:$0xff]
        %v1376 = vld [vmem:[%s8 + $0x10] sm:$0xff]
        %v1377 = vld [vmem:[%s8 + $0x18] sm:$0xff]
        %v1378 = vld [vmem:[%s8 + $0x20] sm:$0xff]
        %v1379 = vld [vmem:[%s8 + $0x28] sm:$0xff]
        %v1380 = vld [vmem:[%s8 + $0x30] sm:$0xff]
        %v1381 = vld [vmem:[%s8 + $0x38] sm:$0xff]
        %v1382 = vld [vmem:[%s9] sm:$0x1]
        %v1384 = vperm.slane %v1382, 0
        %vm1386 = vcmask 523264
        %v1388 = vsel %vm1386, %v1373, 0
        %1390 = vmatpush.msra.mxu0 0.0
        %1391 = vmatpush.msra.mxu0 0.0
        %1392 = vmatpush.msra.mxu0 0.0
        %1393 = vmatpush.msra.mxu0 0.0
        %1394 = vmatpush.msra.mxu0 0.0
        %1395 = vmatpush.msra.mxu0 0.0
        %1396 = vmatpush.msra.mxu0 0.0
        %1397 = vmatpush.msra.mxu0 0.0
        %1398 = vmatpush.msra.mxu0 %v1381
        %1399 = vmatpush.msra.mxu0 %v1380
        %1400 = vmatpush.msra.mxu0 %v1379
        %1401 = vmatpush.msra.mxu0 %v1378
        %1402 = vmatpush.msra.mxu0 %v1377
        %1403 = vmatpush.msra.mxu0 %v1376
        %1404 = vmatpush.msra.mxu0 %v1375
        %1405 = vmatpush.msra.mxu0 %v1374
        %1406 = vmatmul.f32.gmra.mxu0 %v1388
        %v1407 = vpop.f32.mrf.mxu0
        %v1408 = vadd.f32 %v1384, %v1407
        %1409 = vdwg.mxu0
        %v1410 = vadd.f32 %v1408, %v1341
        %v1411 = vld [vmem:[%s10] sm:$0x1]
        %v1412 = vld [vmem:[%s11] sm:$0x1]
        %v1413 = vsel %vm754, %v1410, 0.0
        %1414 = vadd.xlane.f32.xlu0 %v1413
        %v1415 = vpop.xlane.xlu0 %1414
        %v1416 = vmul.f32 %v1415, %v1314
        %v1417 = vsub.f32 %v1410, %v1416
        %v1418 = vmul.f32 %v1417, %v1417
        %v1419 = vsel %vm754, %v1418, 0.0
        %1420 = vadd.xlane.f32.xlu0 %v1419
        %v1421 = vpop.xlane.xlu0 %1420
        %v1422 = vmul.f32 %v1421, %v1314
        %v1423 = vadd.f32 %v1422, 1e-06
        %v1424 = vrsqrt.pop %v1423
        %v1425 = vmul.f32 %v1424, %v1423
        %v1426 = vmul.f32 %v1425, %v1424
        %v1427 = vmul.f32 0.5, %v1426
        %v1428 = vsub.f32 1.5, %v1427
        %v1429 = vmul.f32 %v1424, %v1428
        %vm1430 = vweird.f32 %v1423
        %vm1431 = vweird.f32 %v1424
        %vm1432 = vmor %vm1430, %vm1431
        %v1433 = vsel %vm1432, %v1424, %v1429
        %v1434 = vmul.f32 %v1417, %v1433
        %v1436 = vperm.slane %v1411, 0
        %v1438 = vmul.f32 %v1434, %v1436
        %v1440 = vperm.slane %v1412, 0
        %v1442 = vadd.f32 %v1438, %v1440
        %1443 = vst.msk [vmem:[%s461] sm:$0xff] %vm754, %v1442
        %s1444 = sand.u32 %s309, 1
        %s1445 = scalar_lea.sflag [#allocation6], %s1444
        %s1446 = sand.u32 %s309, 1
        %s1447 = smul.addr %s1446, 8
        %s1448 = scalar_lea.vmem [#allocation9], %s1447
        // Predicated region
        $region81: #{tpu_custom_call.1} parent=67 // pred_check
          %p1449 = pneg %p319
        $region82: #{tpu_custom_call.1} parent=67 // pred_check_branch
          %1451 = sbr.rel (%p1449) target = $region84
        $region83: #{tpu_custom_call.1} parent=67 // pred_region
          %1453 = vsyncadd %s1445, 0
          %s1454 = sadd.s32 %s35, %s34
          %s1455 = smul.addr %s1454, 8
          %s1456 = scalar_lea.hbm %s12, %s1455
          %s1458 = sshll.u32 %s1448, 4
          %s1459 = int_to_ptr.vmem [resolvable:$true] %s1458
          %s1460 = sshll.u32 %s1456, 4
          %s1461 = int_to_ptr.hbm [resolvable:$true] %s1460
          %1463 = dma.vmem_to_hbm [thread:$0]  %s1459, 128, %s1461, %s1445
        $region84: #{tpu_custom_call.1} parent=67 // pred_fallthru
          _
      $region68: #{tpu_custom_call.1} parent=5 // pred_fallthru
        _
      %p1464 = scmp.le.s32.totalorder 2, %s25
      // Predicated region
      $region85: #{tpu_custom_call.1} parent=5 // pred_check
        %p1465 = pneg %p1464
      $region86: #{tpu_custom_call.1} parent=5 // pred_check_branch
        %1467 = sbr.rel (%p1465) target = $region88
      $region87: #{tpu_custom_call.1} parent=5 // pred_region
        %s1468 = ssub.s32 %s25, 2
        // Predicated region
        $region89: #{tpu_custom_call.1} parent=87 // pred_check
          %p1469 = pneg %p325
        $region90: #{tpu_custom_call.1} parent=87 // pred_check_branch
          %1471 = sbr.rel (%p1469) target = $region92
        $region91: #{tpu_custom_call.1} parent=87 // pred_region
          %s1472 = sand.u32 %s310, 1
          %s1473 = scalar_lea.sflag [#allocation6], %s1472
          %s1474 = sand.u32 %s310, 1
          %s1475 = smul.addr %s1474, 8
          %s1476 = scalar_lea.vmem [#allocation9], %s1475
          %1478 = dma.done %s1473, 128
        $region92: #{tpu_custom_call.1} parent=87 // pred_fallthru
          _
      $region88: #{tpu_custom_call.1} parent=5 // pred_fallthru
        _
    $region6: #{tpu_custom_call.1} parent=1 // loop_footer
      %s29 = sadd.s32 1, %s25
    $region7: #{tpu_custom_call.1} parent=1 // loop_footer_branch
      %24 = sbr.rel target = $region3
    $region8: #{tpu_custom_call.1} parent=1 // loop_exit
      _
    %1479 = vsyncpa [#allocation5], 1
    %s1480 = scalar_lea.sflag [#allocation5], 1
    %1481 = vsyncpa %s1480, 1
    %1482 = vsyncpa [#allocation8], 1
    %1483 = vsyncpa [#allocation6], 1
    %s1484 = scalar_lea.sflag [#allocation6], 1
    %1485 = vsyncpa %s1484, 1

// kernel: tpu_custom_call.1
$region0: #{tpu_custom_call.1}
  #allocation0 [shape = 'u32[]', space=smem, size = 0x4, offset = 0x4, fixed_abs, tag = 'smem constant byte address 0x4 - core index']
  #allocation1 [shape = 'u32[72,128]{1,0:T(1,128)}', space=vmem, size = 0x9000, scoped, tag = 'internal scratch']
  #allocation2 [shape = 'f32[4,8,8]{2,1,0:T(8,128)}', space=vmem, size = 0x4000, scoped, tag = 'scratch operand']
  #allocation3 [shape = 'f32[4,8,8]{2,1,0:T(8,128)}', space=vmem, size = 0x4000, scoped, tag = 'scratch operand']
  %s0 = inlined_call_operand.hbm [shape: f32[2,8,32], index: 0, kind: input, shape index: {}]
  %s1 = inlined_call_operand.vmem [shape: f32[32,32], index: 1, kind: input, shape index: {}]
  %s2 = inlined_call_operand.vmem [shape: f32[32,64], index: 2, kind: input, shape index: {}]
  %s3 = inlined_call_operand.vmem [shape: f32[32,32], index: 3, kind: input, shape index: {}]
  %s4 = inlined_call_operand.vmem [shape: f32[1,32], index: 4, kind: input, shape index: {}]
  %s5 = inlined_call_operand.vmem [shape: f32[1,32], index: 5, kind: input, shape index: {}]
  %s6 = inlined_call_operand.hbm [shape: f32[32,64], index: 6, kind: input, shape index: {}]
  %s7 = inlined_call_operand.vmem [shape: f32[1,64], index: 7, kind: input, shape index: {}]
  %s8 = inlined_call_operand.vmem [shape: f32[64,32], index: 8, kind: input, shape index: {}]
  %s9 = inlined_call_operand.vmem [shape: f32[1,32], index: 9, kind: input, shape index: {}]
  %s10 = inlined_call_operand.vmem [shape: f32[1,32], index: 10, kind: input, shape index: {}]
  %s11 = inlined_call_operand.vmem [shape: f32[1,32], index: 11, kind: input, shape index: {}]
  %s12 = inlined_call_operand.hbm [shape: f32[2,8,32], index: 12, kind: output, shape index: {}]
  %s13 = sld [smem:[#allocation0]]
  $region93: #{tpu_custom_call.1} parent=0
    _
  %s15 = ssub.s32 1, %s13
  %s16 = scalar_select 0, %s15, %s13
  $region1: #{tpu_custom_call.1} parent=0
    #allocation4 [shape = 'u8[8192]{0}', space=vmem, size = 0x2000, scoped, tag = 'input window, operand 0']
    #allocation5 [shape = 's32[2]{0}', space=sflag, size = 0x8, scoped, tag = 'scoped memory for tpu_custom_call.1']
    #allocation6 [shape = 's32[2]{0}', space=sflag, size = 0x8, scoped, tag = 'scoped memory for tpu_custom_call.1']
    #allocation7 [shape = 'u8[16384]{0}', space=vmem, size = 0x4000, scoped, tag = 'input window, operand 6, single buffered']
    #allocation8 [shape = 's32[1]{0}', space=sflag, size = 0x4, scoped, tag = 'scoped memory for tpu_custom_call.1']
    #allocation9 [shape = 'u8[8192]{0}', space=vmem, size = 0x2000, scoped, tag = 'output window, operand 0']
    %17 = vsyncpa [#allocation5], 0
    %s18 = scalar_lea.sflag [#allocation5], 1
    %19 = vsyncpa %s18, 0
    %20 = vsyncpa [#allocation8], 0
    %21 = vsyncpa [#allocation6], 0
    %s22 = scalar_lea.sflag [#allocation6], 1
    %23 = vsyncpa %s22, 0
    loop: start=0, step=1, limit=4
    $region2: #{tpu_custom_call.1} parent=1 // loop_pre_header
      _
    $region3: #{tpu_custom_call.1} parent=1 // loop_header
      %s25 = sphi 0, %s29
      %p26 = scmp.ge.s32.totalorder %s25, 4
      %s32 = sphi 0, %s44
      %s33 = sphi 0, %s40
      %s34 = sphi 0, %s32
      %s35 = sphi 0, %s33
      %s36 = sphi 0, %s34
      %s37 = sphi 0, %s35
      %s47 = sphi 0, %s49
      %s50 = sphi 0, %s47
      %s51 = sphi 0, %s50
      %s67 = sphi 0, %s51
      %s71 = sphi 0, %s71
      %s73 = sphi 0, %s71
      %s74 = sphi 0, %s73
      %s88 = sphi 0, %s74
      %s92 = sphi 0, %s92
      %s94 = sphi 0, %s92
      %s95 = sphi 0, %s94
      %s109 = sphi 0, %s95
      %s113 = sphi 0, %s113
      %s115 = sphi 0, %s113
      %s116 = sphi 0, %s115
      %s130 = sphi 0, %s116
      %s134 = sphi 0, %s134
      %s136 = sphi 0, %s134
      %s137 = sphi 0, %s136
      %s151 = sphi 0, %s137
      %s155 = sphi 0, %s155
      %s157 = sphi 0, %s155
      %s158 = sphi 0, %s157
      %s172 = sphi 0, %s158
      %s176 = sphi 0, %s176
      %s178 = sphi 0, %s176
      %s179 = sphi 0, %s178
      %s193 = sphi 0, %s179
      %s197 = sphi 0, %s197
      %s199 = sphi 0, %s197
      %s200 = sphi 0, %s199
      %s214 = sphi 0, %s200
      %s218 = sphi 0, %s218
      %s220 = sphi 0, %s218
      %s221 = sphi 0, %s220
      %s235 = sphi 0, %s221
      %s239 = sphi 0, %s239
      %s241 = sphi 0, %s239
      %s242 = sphi 0, %s241
      %s256 = sphi 0, %s242
      %s260 = sphi 0, %s260
      %s262 = sphi 0, %s260
      %s263 = sphi 0, %s262
      %s277 = sphi 0, %s263
      %s281 = sphi 0, %s281
      %s283 = sphi 0, %s281
      %s284 = sphi 0, %s283
      %s298 = sphi 0, %s284
      %s306 = sphi 0, %s308
      %s309 = sphi 0, %s306
      %s310 = sphi 0, %s309
      %s326 = sphi 0, %s310
    $region4: #{tpu_custom_call.1} parent=1 // loop_header_branch
      %28 = sbr.rel (%p26) target = $region8
    $region5: #{tpu_custom_call.1} parent=1 // loop_body
      %s30 = ssub.s32 %s25, 1
      %s31 = ssub.s32 %s25, 2
      %s38 = sadd.s32 1, %s33
      %p39 = scmp.ge.s32.totalorder %s38, 1
      %s40 = scalar_select %p39, 0, %s38
      %s41 = sadd.s32 1, %s32
      %s42 = scalar_select %p39, %s41, %s32
      %p43 = scmp.ge.s32.totalorder %s42, 2
      %s44 = scalar_select %p43, 0, %s42
      %s45 = ssub.s32 %s32, %s44
      %p46 = scmp.eq.s32.totalorder %s45, 0
      %s48 = sadd.s32 %s47, 1
      %s49 = scalar_select %p46, %s47, %s48
      %p52 = pneg %p46
      %p53 = scmp.eq.s32.totalorder %s25, 1
      %p54 = por %p52, %p53
      %p55 = scmp.ne.s32.totalorder %s47, %s50
      %p56 = scmp.eq.s32.totalorder %s25, 0
      %p57 = por %p55, %p56
      %p58 = scmp.ne.s32.totalorder %s47, %s50
      %p59 = scmp.eq.s32.totalorder %s30, 1
      %p60 = por %p58, %p59
      %p61 = scmp.ne.s32.totalorder %s50, %s51
      %p62 = scmp.eq.s32.totalorder %s30, 0
      %p63 = por %p61, %p62
      %p64 = scmp.ne.s32.totalorder %s50, %s51
      %p65 = scmp.eq.s32.totalorder %s31, 1
      %p66 = por %p64, %p65
      %p68 = scmp.ne.s32.totalorder %s51, %s67
      %p69 = scmp.eq.s32.totalorder %s31, 0
      %p70 = por %p68, %p69
      %s72 = sadd.s32 %s71, 1
      %p75 = scmp.eq.s32.totalorder %s25, 1
      %p76 = scmp.ne.s32.totalorder %s71, %s73
      %p77 = scmp.eq.s32.totalorder %s25, 0
      %p78 = por %p76, %p77
      %p79 = scmp.ne.s32.totalorder %s71, %s73
      %p80 = scmp.eq.s32.totalorder %s30, 1
      %p81 = por %p79, %p80
      %p82 = scmp.ne.s32.totalorder %s73, %s74
      %p83 = scmp.eq.s32.totalorder %s30, 0
      %p84 = por %p82, %p83
      %p85 = scmp.ne.s32.totalorder %s73, %s74
      %p86 = scmp.eq.s32.totalorder %s31, 1
      %p87 = por %p85, %p86
      %p89 = scmp.ne.s32.totalorder %s74, %s88
      %p90 = scmp.eq.s32.totalorder %s31, 0
      %p91 = por %p89, %p90
      %s93 = sadd.s32 %s92, 1
      %p96 = scmp.eq.s32.totalorder %s25, 1
      %p97 = scmp.ne.s32.totalorder %s92, %s94
      %p98 = scmp.eq.s32.totalorder %s25, 0
      %p99 = por %p97, %p98
      %p100 = scmp.ne.s32.totalorder %s92, %s94
      %p101 = scmp.eq.s32.totalorder %s30, 1
      %p102 = por %p100, %p101
      %p103 = scmp.ne.s32.totalorder %s94, %s95
      %p104 = scmp.eq.s32.totalorder %s30, 0
      %p105 = por %p103, %p104
      %p106 = scmp.ne.s32.totalorder %s94, %s95
      %p107 = scmp.eq.s32.totalorder %s31, 1
      %p108 = por %p106, %p107
      %p110 = scmp.ne.s32.totalorder %s95, %s109
      %p111 = scmp.eq.s32.totalorder %s31, 0
      %p112 = por %p110, %p111
      %s114 = sadd.s32 %s113, 1
      %p117 = scmp.eq.s32.totalorder %s25, 1
      %p118 = scmp.ne.s32.totalorder %s113, %s115
      %p119 = scmp.eq.s32.totalorder %s25, 0
      %p120 = por %p118, %p119
      %p121 = scmp.ne.s32.totalorder %s113, %s115
      %p122 = scmp.eq.s32.totalorder %s30, 1
      %p123 = por %p121, %p122
      %p124 = scmp.ne.s32.totalorder %s115, %s116
      %p125 = scmp.eq.s32.totalorder %s30, 0
      %p126 = por %p124, %p125
      %p127 = scmp.ne.s32.totalorder %s115, %s116
      %p128 = scmp.eq.s32.totalorder %s31, 1
      %p129 = por %p127, %p128
      %p131 = scmp.ne.s32.totalorder %s116, %s130
      %p132 = scmp.eq.s32.totalorder %s31, 0
      %p133 = por %p131, %p132
      %s135 = sadd.s32 %s134, 1
      %p138 = scmp.eq.s32.totalorder %s25, 1
      %p139 = scmp.ne.s32.totalorder %s134, %s136
      %p140 = scmp.eq.s32.totalorder %s25, 0
      %p141 = por %p139, %p140
      %p142 = scmp.ne.s32.totalorder %s134, %s136
      %p143 = scmp.eq.s32.totalorder %s30, 1
      %p144 = por %p142, %p143
      %p145 = scmp.ne.s32.totalorder %s136, %s137
      %p146 = scmp.eq.s32.totalorder %s30, 0
      %p147 = por %p145, %p146
      %p148 = scmp.ne.s32.totalorder %s136, %s137
      %p149 = scmp.eq.s32.totalorder %s31, 1
      %p150 = por %p148, %p149
      %p152 = scmp.ne.s32.totalorder %s137, %s151
      %p153 = scmp.eq.s32.totalorder %s31, 0
      %p154 = por %p152, %p153
      %s156 = sadd.s32 %s155, 1
      %p159 = scmp.eq.s32.totalorder %s25, 1
      %p160 = scmp.ne.s32.totalorder %s155, %s157
      %p161 = scmp.eq.s32.totalorder %s25, 0
      %p162 = por %p160, %p161
      %p163 = scmp.ne.s32.totalorder %s155, %s157
      %p164 = scmp.eq.s32.totalorder %s30, 1
      %p165 = por %p163, %p164
      %p166 = scmp.ne.s32.totalorder %s157, %s158
      %p167 = scmp.eq.s32.totalorder %s30, 0
      %p168 = por %p166, %p167
      %p169 = scmp.ne.s32.totalorder %s157, %s158
      %p170 = scmp.eq.s32.totalorder %s31, 1
      %p171 = por %p169, %p170
      %p173 = scmp.ne.s32.totalorder %s158, %s172
      %p174 = scmp.eq.s32.totalorder %s31, 0
      %p175 = por %p173, %p174
      %s177 = sadd.s32 %s176, 1
      %p180 = scmp.eq.s32.totalorder %s25, 1
      %p181 = scmp.ne.s32.totalorder %s176, %s178
      %p182 = scmp.eq.s32.totalorder %s25, 0
      %p183 = por %p181, %p182
      %p184 = scmp.ne.s32.totalorder %s176, %s178
      %p185 = scmp.eq.s32.totalorder %s30, 1
      %p186 = por %p184, %p185
      %p187 = scmp.ne.s32.totalorder %s178, %s179
      %p188 = scmp.eq.s32.totalorder %s30, 0
      %p189 = por %p187, %p188
      %p190 = scmp.ne.s32.totalorder %s178, %s179
      %p191 = scmp.eq.s32.totalorder %s31, 1
      %p192 = por %p190, %p191
      %p194 = scmp.ne.s32.totalorder %s179, %s193
      %p195 = scmp.eq.s32.totalorder %s31, 0
      %p196 = por %p194, %p195
      %s198 = sadd.s32 %s197, 1
      %p201 = scmp.eq.s32.totalorder %s25, 1
      %p202 = scmp.ne.s32.totalorder %s197, %s199
      %p203 = scmp.eq.s32.totalorder %s25, 0
      %p204 = por %p202, %p203
      %p205 = scmp.ne.s32.totalorder %s197, %s199
      %p206 = scmp.eq.s32.totalorder %s30, 1
      %p207 = por %p205, %p206
      %p208 = scmp.ne.s32.totalorder %s199, %s200
      %p209 = scmp.eq.s32.totalorder %s30, 0
      %p210 = por %p208, %p209
      %p211 = scmp.ne.s32.totalorder %s199, %s200
      %p212 = scmp.eq.s32.totalorder %s31, 1
      %p213 = por %p211, %p212
      %p215 = scmp.ne.s32.totalorder %s200, %s214
      %p216 = scmp.eq.s32.totalorder %s31, 0
      %p217 = por %p215, %p216
      %s219 = sadd.s32 %s218, 1
      %p222 = scmp.eq.s32.totalorder %s25, 1
      %p223 = scmp.ne.s32.totalorder %s218, %s220
      %p224 = scmp.eq.s32.totalorder %s25, 0
      %p225 = por %p223, %p224
      %p226 = scmp.ne.s32.totalorder %s218, %s220
      %p227 = scmp.eq.s32.totalorder %s30, 1
      %p228 = por %p226, %p227
      %p229 = scmp.ne.s32.totalorder %s220, %s221
      %p230 = scmp.eq.s32.totalorder %s30, 0
      %p231 = por %p229, %p230
      %p232 = scmp.ne.s32.totalorder %s220, %s221
      %p233 = scmp.eq.s32.totalorder %s31, 1
      %p234 = por %p232, %p233
      %p236 = scmp.ne.s32.totalorder %s221, %s235
      %p237 = scmp.eq.s32.totalorder %s31, 0
      %p238 = por %p236, %p237
      %s240 = sadd.s32 %s239, 1
      %p243 = scmp.eq.s32.totalorder %s25, 1
      %p244 = scmp.ne.s32.totalorder %s239, %s241
      %p245 = scmp.eq.s32.totalorder %s25, 0
      %p246 = por %p244, %p245
      %p247 = scmp.ne.s32.totalorder %s239, %s241
      %p248 = scmp.eq.s32.totalorder %s30, 1
      %p249 = por %p247, %p248
      %p250 = scmp.ne.s32.totalorder %s241, %s242
      %p251 = scmp.eq.s32.totalorder %s30, 0
      %p252 = por %p250, %p251
      %p253 = scmp.ne.s32.totalorder %s241, %s242
      %p254 = scmp.eq.s32.totalorder %s31, 1
      %p255 = por %p253, %p254
      %p257 = scmp.ne.s32.totalorder %s242, %s256
      %p258 = scmp.eq.s32.totalorder %s31, 0
      %p259 = por %p257, %p258
      %s261 = sadd.s32 %s260, 1
      %p264 = scmp.eq.s32.totalorder %s25, 1
      %p265 = scmp.ne.s32.totalorder %s260, %s262
      %p266 = scmp.eq.s32.totalorder %s25, 0
      %p267 = por %p265, %p266
      %p268 = scmp.ne.s32.totalorder %s260, %s262
      %p269 = scmp.eq.s32.totalorder %s30, 1
      %p270 = por %p268, %p269
      %p271 = scmp.ne.s32.totalorder %s262, %s263
      %p272 = scmp.eq.s32.totalorder %s30, 0
      %p273 = por %p271, %p272
      %p274 = scmp.ne.s32.totalorder %s262, %s263
      %p275 = scmp.eq.s32.totalorder %s31, 1
      %p276 = por %p274, %p275
      %p278 = scmp.ne.s32.totalorder %s263, %s277
      %p279 = scmp.eq.s32.totalorder %s31, 0
      %p280 = por %p278, %p279
      %s282 = sadd.s32 %s281, 1
      %p285 = scmp.eq.s32.totalorder %s25, 1
      %p286 = scmp.ne.s32.totalorder %s281, %s283
      %p287 = scmp.eq.s32.totalorder %s25, 0
      %p288 = por %p286, %p287
      %p289 = scmp.ne.s32.totalorder %s281, %s283
      %p290 = scmp.eq.s32.totalorder %s30, 1
      %p291 = por %p289, %p290
      %p292 = scmp.ne.s32.totalorder %s283, %s284
      %p293 = scmp.eq.s32.totalorder %s30, 0
      %p294 = por %p292, %p293
      %p295 = scmp.ne.s32.totalorder %s283, %s284
      %p296 = scmp.eq.s32.totalorder %s31, 1
      %p297 = por %p295, %p296
      %p299 = scmp.ne.s32.totalorder %s284, %s298
      %p300 = scmp.eq.s32.totalorder %s31, 0
      %p301 = por %p299, %p300
      %s302 = ssub.s32 %s32, %s44
      %s303 = ssub.s32 %s33, %s40
      %s304 = sor.u32 %s302, %s303
      %p305 = scmp.eq.s32.totalorder %s304, 0
      %s307 = sadd.s32 %s306, 1
      %s308 = scalar_select %p305, %s306, %s307
      %p311 = pneg %p305
      %p312 = scmp.eq.s32.totalorder %s25, 1
      %p313 = por %p311, %p312
      %p314 = scmp.ne.s32.totalorder %s306, %s309
      %p315 = scmp.eq.s32.totalorder %s25, 0
      %p316 = por %p314, %p315
      %p317 = scmp.ne.s32.totalorder %s306, %s309
      %p318 = scmp.eq.s32.totalorder %s30, 1
      %p319 = por %p317, %p318
      %p320 = scmp.ne.s32.totalorder %s309, %s310
      %p321 = scmp.eq.s32.totalorder %s30, 0
      %p322 = por %p320, %p321
      %p323 = scmp.ne.s32.totalorder %s309, %s310
      %p324 = scmp.eq.s32.totalorder %s31, 1
      %p325 = por %p323, %p324
      %p327 = scmp.ne.s32.totalorder %s310, %s326
      %p328 = scmp.eq.s32.totalorder %s31, 0
      %p329 = por %p327, %p328
      %p330 = scmp.le.s32.totalorder 1, %s25
      %p331 = scmp.lt.s32.totalorder %s25, 3
      %p332 = pnand %p330, %p331
      %p333 = pneg %p332
      // Predicated region
      $region9: #{tpu_custom_call.1} parent=5 // pred_check
        _
      $region10: #{tpu_custom_call.1} parent=5 // pred_check_branch
        %335 = sbr.rel (%p332) target = $region12
      $region11: #{tpu_custom_call.1} parent=5 // pred_region
        %s336 = ssub.s32 %s25, 1
        // Predicated region
        $region13: #{tpu_custom_call.1} parent=11 // pred_check
          %p337 = pneg %p84
        $region14: #{tpu_custom_call.1} parent=11 // pred_check_branch
          %339 = sbr.rel (%p337) target = $region16
        $region15: #{tpu_custom_call.1} parent=11 // pred_region
          _
        $region16: #{tpu_custom_call.1} parent=11 // pred_fallthru
          _
        // Predicated region
        $region17: #{tpu_custom_call.1} parent=11 // pred_check
          %p340 = pneg %p105
        $region18: #{tpu_custom_call.1} parent=11 // pred_check_branch
          %342 = sbr.rel (%p340) target = $region20
        $region19: #{tpu_custom_call.1} parent=11 // pred_region
          _
        $region20: #{tpu_custom_call.1} parent=11 // pred_fallthru
          _
        // Predicated region
        $region21: #{tpu_custom_call.1} parent=11 // pred_check
          %p343 = pneg %p126
        $region22: #{tpu_custom_call.1} parent=11 // pred_check_branch
          %345 = sbr.rel (%p343) target = $region24
        $region23: #{tpu_custom_call.1} parent=11 // pred_region
          _
        $region24: #{tpu_custom_call.1} parent=11 // pred_fallthru
          _
        // Predicated region
        $region25: #{tpu_custom_call.1} parent=11 // pred_check
          %p346 = pneg %p147
        $region26: #{tpu_custom_call.1} parent=11 // pred_check_branch
          %348 = sbr.rel (%p346) target = $region28
        $region27: #{tpu_custom_call.1} parent=11 // pred_region
          _
        $region28: #{tpu_custom_call.1} parent=11 // pred_fallthru
          _
        // Predicated region
        $region29: #{tpu_custom_call.1} parent=11 // pred_check
          %p349 = pneg %p168
        $region30: #{tpu_custom_call.1} parent=11 // pred_check_branch
          %351 = sbr.rel (%p349) target = $region32
        $region31: #{tpu_custom_call.1} parent=11 // pred_region
          _
        $region32: #{tpu_custom_call.1} parent=11 // pred_fallthru
          _
        // Predicated region
        $region33: #{tpu_custom_call.1} parent=11 // pred_check
          %p352 = pneg %p189
        $region34: #{tpu_custom_call.1} parent=11 // pred_check_branch
          %354 = sbr.rel (%p352) target = $region36
        $region35: #{tpu_custom_call.1} parent=11 // pred_region
          %356 = vsyncadd [#allocation8], 0
          %s357 = sshll.u32 %s6, 4
          %s358 = int_to_ptr.hbm [resolvable:$true] %s357
          %s359 = sshll.u32 [#allocation7], 4
          %s360 = int_to_ptr.vmem [resolvable:$true] %s359
          %365 = dma.hbm_to_vmem [thread:$0]  %s358, 512, %s360, [#allocation8], 128, 128, 8
        $region36: #{tpu_custom_call.1} parent=11 // pred_fallthru
          _
        // Predicated region
        $region37: #{tpu_custom_call.1} parent=11 // pred_check
          %p366 = pneg %p210
        $region38: #{tpu_custom_call.1} parent=11 // pred_check_branch
          %368 = sbr.rel (%p366) target = $region40
        $region39: #{tpu_custom_call.1} parent=11 // pred_region
          _
        $region40: #{tpu_custom_call.1} parent=11 // pred_fallthru
          _
        // Predicated region
        $region41: #{tpu_custom_call.1} parent=11 // pred_check
          %p369 = pneg %p231
        $region42: #{tpu_custom_call.1} parent=11 // pred_check_branch
          %371 = sbr.rel (%p369) target = $region44
        $region43: #{tpu_custom_call.1} parent=11 // pred_region
          _
        $region44: #{tpu_custom_call.1} parent=11 // pred_fallthru
          _
        // Predicated region
        $region45: #{tpu_custom_call.1} parent=11 // pred_check
          %p372 = pneg %p252
        $region46: #{tpu_custom_call.1} parent=11 // pred_check_branch
          %374 = sbr.rel (%p372) target = $region48
        $region47: #{tpu_custom_call.1} parent=11 // pred_region
          _
        $region48: #{tpu_custom_call.1} parent=11 // pred_fallthru
          _
        // Predicated region
        $region49: #{tpu_custom_call.1} parent=11 // pred_check
          %p375 = pneg %p273
        $region50: #{tpu_custom_call.1} parent=11 // pred_check_branch
          %377 = sbr.rel (%p375) target = $region52
        $region51: #{tpu_custom_call.1} parent=11 // pred_region
          _
        $region52: #{tpu_custom_call.1} parent=11 // pred_fallthru
          _
        // Predicated region
        $region53: #{tpu_custom_call.1} parent=11 // pred_check
          %p378 = pneg %p294
        $region54: #{tpu_custom_call.1} parent=11 // pred_check_branch
          %380 = sbr.rel (%p378) target = $region56
        $region55: #{tpu_custom_call.1} parent=11 // pred_region
          _
        $region56: #{tpu_custom_call.1} parent=11 // pred_fallthru
          _
      $region12: #{tpu_custom_call.1} parent=5 // pred_fallthru
        _
      %p381 = scmp.lt.s32.totalorder %s25, 2
      // Predicated region
      $region57: #{tpu_custom_call.1} parent=5 // pred_check
        %p382 = pneg %p381
      $region58: #{tpu_custom_call.1} parent=5 // pred_check_branch
        %384 = sbr.rel (%p382) target = $region60
      $region59: #{tpu_custom_call.1} parent=5 // pred_region
        // Predicated region
        $region61: #{tpu_custom_call.1} parent=59 // pred_check
          %p385 = pneg %p57
        $region62: #{tpu_custom_call.1} parent=59 // pred_check_branch
          %387 = sbr.rel (%p385) target = $region64
        $region63: #{tpu_custom_call.1} parent=59 // pred_region
          %s388 = sand.u32 %s47, 1
          %s389 = scalar_lea.sflag [#allocation5], %s388
          %s390 = sand.u32 %s47, 1
          %s391 = smul.addr %s390, 8
          %s392 = scalar_lea.vmem [#allocation4], %s391
          %394 = vsyncadd %s389, 0
          %s395 = smul.addr %s32, 8
          %s396 = scalar_lea.hbm %s0, %s395
          %s398 = sshll.u32 %s396, 4
          %s399 = int_to_ptr.hbm [resolvable:$true] %s398
          %s400 = sshll.u32 %s392, 4
          %s401 = int_to_ptr.vmem [resolvable:$true] %s400
          %403 = dma.hbm_to_vmem [thread:$0]  %s399, 128, %s401, %s389
        $region64: #{tpu_custom_call.1} parent=59 // pred_fallthru
          _
      $region60: #{tpu_custom_call.1} parent=5 // pred_fallthru
        _
      %p404 = scmp.le.s32.totalorder 1, %s25
      %p405 = scmp.lt.s32.totalorder %s25, 3
      %p406 = pnand %p404, %p405
      %p407 = pneg %p406
      // Predicated region
      $region65: #{tpu_custom_call.1} parent=5 // pred_check
        _
      $region66: #{tpu_custom_call.1} parent=5 // pred_check_branch
        %409 = sbr.rel (%p406) target = $region68
      $region67: #{tpu_custom_call.1} parent=5 // pred_region
        %s410 = ssub.s32 %s25, 1
        %s411 = sand.u32 %s50, 1
        %s412 = scalar_lea.sflag [#allocation5], %s411
        %s413 = sand.u32 %s50, 1
        %s414 = smul.addr %s413, 8
        %s415 = scalar_lea.vmem [#allocation4], %s414
        // Predicated region
        $region69: #{tpu_custom_call.1} parent=67 // pred_check
          %p416 = pneg %p63
        $region70: #{tpu_custom_call.1} parent=67 // pred_check_branch
          %418 = sbr.rel (%p416) target = $region72
        $region71: #{tpu_custom_call.1} parent=67 // pred_region
          %420 = dma.done %s412, 128
        $region72: #{tpu_custom_call.1} parent=67 // pred_fallthru
          _
        // Predicated region
        $region73: #{tpu_custom_call.1} parent=67 // pred_check
          %p421 = pneg %p189
        $region74: #{tpu_custom_call.1} parent=67 // pred_check_branch
          %423 = sbr.rel (%p421) target = $region76
        $region75: #{tpu_custom_call.1} parent=67 // pred_region
          %425 = dma.done [#allocation8], 512
        $region76: #{tpu_custom_call.1} parent=67 // pred_fallthru
          _
        %s426 = sand.u32 %s50, 1
        %s427 = scalar_lea.sflag [#allocation5], %s426
        %s428 = sand.u32 %s50, 1
        %s429 = smul.addr %s428, 8
        %s430 = scalar_lea.vmem [#allocation4], %s429
        %p431 = pneg %p63
        %p432 = pneg %p60
        %p433 = pneg %p84
        %p434 = pneg %p81
        %p435 = pneg %p105
        %p436 = pneg %p102
        %p437 = pneg %p126
        %p438 = pneg %p123
        %p439 = pneg %p147
        %p440 = pneg %p144
        %p441 = pneg %p168
        %p442 = pneg %p165
        %p443 = pneg %p189
        %p444 = pneg %p186
        %p445 = pneg %p210
        %p446 = pneg %p207
        %p447 = pneg %p231
        %p448 = pneg %p228
        %p449 = pneg %p252
        %p450 = pneg %p249
        %p451 = pneg %p273
        %p452 = pneg %p270
        %p453 = pneg %p294
        %p454 = pneg %p291
        %p455 = pneg %p322
        %p456 = pneg %p319
        %s457 = sand.u32 %s309, 1
        %s458 = scalar_lea.sflag [#allocation6], %s457
        %s459 = sand.u32 %s309, 1
        %s460 = smul.addr %s459, 8
        %s461 = scalar_lea.vmem [#allocation9], %s460
        %p462 = scmp.eq.s32.totalorder %s35, 0
        // Predicated region
        $region77: #{tpu_custom_call.1} parent=67 // pred_check
          %p463 = pneg %p462
        $region78: #{tpu_custom_call.1} parent=67 // pred_check_branch
          %465 = sbr.rel (%p463) target = $region80
        $region79: #{tpu_custom_call.1} parent=67 // pred_region
          %v466 = vld [vmem:[%s415] sm:$0xff]
          %v467 = vld [vmem:[%s2] sm:$0xff]
          %v468 = vld [vmem:[%s2 + $0x8] sm:$0xff]
          %v469 = vld [vmem:[%s2 + $0x10] sm:$0xff]
          %v470 = vld [vmem:[%s2 + $0x18] sm:$0xff]
          %vm471 = vcmask 261120
          %v473 = vsel %vm471, %v466, 0
          %475 = vmatpush.msra.mxu0 0.0
          %476 = vmatpush.msra.mxu0 0.0
          %477 = vmatpush.msra.mxu0 0.0
          %478 = vmatpush.msra.mxu0 0.0
          %479 = vmatpush.msra.mxu0 0.0
          %480 = vmatpush.msra.mxu0 0.0
          %481 = vmatpush.msra.mxu0 0.0
          %482 = vmatpush.msra.mxu0 0.0
          %483 = vmatpush.msra.mxu0 0.0
          %484 = vmatpush.msra.mxu0 0.0
          %485 = vmatpush.msra.mxu0 0.0
          %486 = vmatpush.msra.mxu0 0.0
          %487 = vmatpush.msra.mxu0 %v470
          %488 = vmatpush.msra.mxu0 %v469
          %489 = vmatpush.msra.mxu0 %v468
          %490 = vmatpush.msra.mxu0 %v467
          %491 = vmatmul.f32.gmra.mxu0 %v473
          %v492 = vpop.f32.mrf.mxu0
          %v493 = vadd.f32 0.0, %v492
          %494 = vdwg.mxu0
          %496 = vrot.lane.b32.xlu0 %v493, 120
          %v497 = vpop.permute.xlu0 %496
          %499 = vrot.lane.b32.xlu0 %v493, 112
          %v500 = vpop.permute.xlu0 %499
          %502 = vrot.lane.b32.xlu0 %v493, 104
          %v503 = vpop.permute.xlu0 %502
          %v505 = vrot.slane %v500, 4
          %vm506 = vcmask 1047556
          %v507 = vsel %vm506, %v505, %v493
          %v508 = vrot.slane %v493, 4
          %v509 = vsel %vm506, %v500, %v508
          %v511 = vunpack.c.l.s4 1983009808
          %v512 = vunpack.c.0.s8 %v511
          %v513 = vperm.slane %v507, %v512
          %v515 = vunpack.c.l.s4 1983009808
          %v516 = vunpack.c.0.s8 %v515
          %v517 = vperm.slane %v509, %v516
          %v518 = vrot.slane %v503, 4
          %v519 = vsel %vm506, %v518, %v497
          %v520 = vrot.slane %v497, 4
          %v521 = vsel %vm506, %v503, %v520
          %v523 = vunpack.c.l.s4 1983009808
          %v524 = vunpack.c.0.s8 %v523
          %v525 = vperm.slane %v519, %v524
          %v527 = vunpack.c.l.s4 1983009808
          %v528 = vunpack.c.0.s8 %v527
          %v529 = vperm.slane %v521, %v528
          %v530 = vrot.slane %v525, 4
          %v531 = vsel %vm506, %v530, %v513
          %v532 = vrot.slane %v513, 4
          %v533 = vsel %vm506, %v525, %v532
          %v535 = vunpack.c.l.s4 1934713408
          %v536 = vunpack.c.0.s8 %v535
          %v537 = vperm.slane %v531, %v536
          %v539 = vunpack.c.l.s4 1934713408
          %v540 = vunpack.c.0.s8 %v539
          %v541 = vperm.slane %v533, %v540
          %v542 = vrot.slane %v529, 4
          %v543 = vsel %vm506, %v542, %v517
          %v544 = vrot.slane %v517, 4
          %v545 = vsel %vm506, %v529, %v544
          %v547 = vunpack.c.l.s4 1934713408
          %v548 = vunpack.c.0.s8 %v547
          %v549 = vperm.slane %v543, %v548
          %v551 = vunpack.c.l.s4 1934713408
          %v552 = vunpack.c.0.s8 %v551
          %v553 = vperm.slane %v545, %v552
          %v554 = vrot.slane %v537, 4
          %v555 = vsel %vm506, 0.0, %v554
          %v556 = vrot.slane %v541, 4
          %v557 = vsel %vm506, 0.0, %v556
          %v558 = vrot.slane %v549, 4
          %v559 = vsel %vm506, 0.0, %v558
          %v560 = vrot.slane %v553, 4
          %v561 = vsel %vm506, 0.0, %v560
          %v562 = vsel %vm506, %v556, %v537
          %v564 = vunpack.c.l.s4 1983009808
          %v565 = vunpack.c.0.s8 %v564
          %v566 = vperm.slane %v562, %v565
          %v567 = vrot.slane %v557, 4
          %v568 = vsel %vm506, %v567, %v555
          %v570 = vunpack.c.l.s4 1983009808
          %v571 = vunpack.c.0.s8 %v570
          %v572 = vperm.slane %v568, %v571
          %v573 = vsel %vm506, %v560, %v549
          %v575 = vunpack.c.l.s4 1983009808
          %v576 = vunpack.c.0.s8 %v575
          %v577 = vperm.slane %v573, %v576
          %v578 = vrot.slane %v561, 4
          %v579 = vsel %vm506, %v578, %v559
          %v581 = vunpack.c.l.s4 1983009808
          %v582 = vunpack.c.0.s8 %v581
          %v583 = vperm.slane %v579, %v582
          %v584 = vrot.slane %v572, 4
          %v585 = vsel %vm506, %v584, %v566
          %v586 = vrot.slane %v566, 4
          %v587 = vsel %vm506, %v572, %v586
          %v589 = vunpack.c.l.s4 1934713408
          %v590 = vunpack.c.0.s8 %v589
          %v591 = vperm.slane %v585, %v590
          %v593 = vunpack.c.l.s4 1934713408
          %v594 = vunpack.c.0.s8 %v593
          %v595 = vperm.slane %v587, %v594
          %v596 = vrot.slane %v583, 4
          %v597 = vsel %vm506, %v596, %v577
          %v598 = vrot.slane %v577, 4
          %v599 = vsel %vm506, %v583, %v598
          %v601 = vunpack.c.l.s4 1934713408
          %v602 = vunpack.c.0.s8 %v601
          %v603 = vperm.slane %v597, %v602
          %v605 = vunpack.c.l.s4 1934713408
          %v606 = vunpack.c.0.s8 %v605
          %v607 = vperm.slane %v599, %v606
          %v608 = vrot.slane %v603, 4
          %v609 = vsel %vm506, %v608, %v591
          %v610 = vrot.slane %v591, 4
          %v611 = vsel %vm506, %v603, %v610
          %v612 = vrot.slane %v607, 4
          %v613 = vsel %vm506, %v612, %v595
          %v614 = vrot.slane %v595, 4
          %v615 = vsel %vm506, %v607, %v614
          %vm616 = vcmask 64512
          %617 = vst.msk [vmem:[#allocation2] sm:$0xff] %vm616, %v609
          %618 = vst.msk [vmem:[#allocation2 + $0x8] sm:$0xff] %vm616, %v611
          %619 = vst.msk [vmem:[#allocation2 + $0x10] sm:$0xff] %vm616, %v613
          %620 = vst.msk [vmem:[#allocation2 + $0x18] sm:$0xff] %vm616, %v615
          %621 = vrot.lane.b32.xlu0 %v493, 96
          %v622 = vpop.permute.xlu0 %621
          %623 = vrot.lane.b32.xlu0 %v497, 96
          %v624 = vpop.permute.xlu0 %623
          %625 = vrot.lane.b32.xlu0 %v500, 96
          %v626 = vpop.permute.xlu0 %625
          %627 = vrot.lane.b32.xlu0 %v503, 96
          %v628 = vpop.permute.xlu0 %627
          %v633 = vrot.slane %v626, 4
          %v634 = vsel %vm506, %v633, %v622
          %v635 = vrot.slane %v622, 4
          %v636 = vsel %vm506, %v626, %v635
          %v638 = vunpack.c.l.s4 1983009808
          %v639 = vunpack.c.0.s8 %v638
          %v640 = vperm.slane %v634, %v639
          %v642 = vunpack.c.l.s4 1983009808
          %v643 = vunpack.c.0.s8 %v642
          %v644 = vperm.slane %v636, %v643
          %v645 = vrot.slane %v628, 4
          %v646 = vsel %vm506, %v645, %v624
          %v647 = vrot.slane %v624, 4
          %v648 = vsel %vm506, %v628, %v647
          %v650 = vunpack.c.l.s4 1983009808
          %v651 = vunpack.c.0.s8 %v650
          %v652 = vperm.slane %v646, %v651
          %v654 = vunpack.c.l.s4 1983009808
          %v655 = vunpack.c.0.s8 %v654
          %v656 = vperm.slane %v648, %v655
          %v657 = vrot.slane %v652, 4
          %v658 = vsel %vm506, %v657, %v640
          %v659 = vrot.slane %v640, 4
          %v660 = vsel %vm506, %v652, %v659
          %v662 = vunpack.c.l.s4 1934713408
          %v663 = vunpack.c.0.s8 %v662
          %v664 = vperm.slane %v658, %v663
          %v666 = vunpack.c.l.s4 1934713408
          %v667 = vunpack.c.0.s8 %v666
          %v668 = vperm.slane %v660, %v667
          %v669 = vrot.slane %v656, 4
          %v670 = vsel %vm506, %v669, %v644
          %v671 = vrot.slane %v644, 4
          %v672 = vsel %vm506, %v656, %v671
          %v674 = vunpack.c.l.s4 1934713408
          %v675 = vunpack.c.0.s8 %v674
          %v676 = vperm.slane %v670, %v675
          %v678 = vunpack.c.l.s4 1934713408
          %v679 = vunpack.c.0.s8 %v678
          %v680 = vperm.slane %v672, %v679
          %v681 = vrot.slane %v664, 4
          %v682 = vsel %vm506, 0.0, %v681
          %v683 = vrot.slane %v668, 4
          %v684 = vsel %vm506, 0.0, %v683
          %v685 = vrot.slane %v676, 4
          %v686 = vsel %vm506, 0.0, %v685
          %v687 = vrot.slane %v680, 4
          %v688 = vsel %vm506, 0.0, %v687
          %v689 = vsel %vm506, %v683, %v664
          %v691 = vunpack.c.l.s4 1983009808
          %v692 = vunpack.c.0.s8 %v691
          %v693 = vperm.slane %v689, %v692
          %v694 = vrot.slane %v684, 4
          %v695 = vsel %vm506, %v694, %v682
          %v697 = vunpack.c.l.s4 1983009808
          %v698 = vunpack.c.0.s8 %v697
          %v699 = vperm.slane %v695, %v698
          %v700 = vsel %vm506, %v687, %v676
          %v702 = vunpack.c.l.s4 1983009808
          %v703 = vunpack.c.0.s8 %v702
          %v704 = vperm.slane %v700, %v703
          %v705 = vrot.slane %v688, 4
          %v706 = vsel %vm506, %v705, %v686
          %v708 = vunpack.c.l.s4 1983009808
          %v709 = vunpack.c.0.s8 %v708
          %v710 = vperm.slane %v706, %v709
          %v711 = vrot.slane %v699, 4
          %v712 = vsel %vm506, %v711, %v693
          %v713 = vrot.slane %v693, 4
          %v714 = vsel %vm506, %v699, %v713
          %v716 = vunpack.c.l.s4 1934713408
          %v717 = vunpack.c.0.s8 %v716
          %v718 = vperm.slane %v712, %v717
          %v720 = vunpack.c.l.s4 1934713408
          %v721 = vunpack.c.0.s8 %v720
          %v722 = vperm.slane %v714, %v721
          %v723 = vrot.slane %v710, 4
          %v724 = vsel %vm506, %v723, %v704
          %v725 = vrot.slane %v704, 4
          %v726 = vsel %vm506, %v710, %v725
          %v728 = vunpack.c.l.s4 1934713408
          %v729 = vunpack.c.0.s8 %v728
          %v730 = vperm.slane %v724, %v729
          %v732 = vunpack.c.l.s4 1934713408
          %v733 = vunpack.c.0.s8 %v732
          %v734 = vperm.slane %v726, %v733
          %v735 = vrot.slane %v730, 4
          %v736 = vsel %vm506, %v735, %v718
          %v737 = vrot.slane %v718, 4
          %v738 = vsel %vm506, %v730, %v737
          %v739 = vrot.slane %v734, 4
          %v740 = vsel %vm506, %v739, %v722
          %v741 = vrot.slane %v722, 4
          %v742 = vsel %vm506, %v734, %v741
          %743 = vst.msk [vmem:[#allocation3] sm:$0xff] %vm616, %v736
          %744 = vst.msk [vmem:[#allocation3 + $0x8] sm:$0xff] %vm616, %v738
          %745 = vst.msk [vmem:[#allocation3 + $0x10] sm:$0xff] %vm616, %v740
          %746 = vst.msk [vmem:[#allocation3 + $0x18] sm:$0xff] %vm616, %v742
        $region80: #{tpu_custom_call.1} parent=67 // pred_fallthru
          _
        %s747 = smul.u32 %s35, 8
        %s748 = scalar_lea.vmem %s415, %s747 [#allocation4]
        %v749 = vld [vmem:[%s748] sm:$0xff]
        %v750 = vld [vmem:[%s1] sm:$0xff]
        %v751 = vld [vmem:[%s1 + $0x8] sm:$0xff]
        %v752 = vld [vmem:[%s1 + $0x10] sm:$0xff]
        %v753 = vld [vmem:[%s1 + $0x18] sm:$0xff]
        %vm754 = vcmask 261120
        %v756 = vsel %vm754, %v749, 0
        %758 = vmatpush.msra.mxu0 0.0
        %759 = vmatpush.msra.mxu0 0.0
        %760 = vmatpush.msra.mxu0 0.0
        %761 = vmatpush.msra.mxu0 0.0
        %762 = vmatpush.msra.mxu0 0.0
        %763 = vmatpush.msra.mxu0 0.0
        %764 = vmatpush.msra.mxu0 0.0
        %765 = vmatpush.msra.mxu0 0.0
        %766 = vmatpush.msra.mxu0 0.0
        %767 = vmatpush.msra.mxu0 0.0
        %768 = vmatpush.msra.mxu0 0.0
        %769 = vmatpush.msra.mxu0 0.0
        %770 = vmatpush.msra.mxu0 %v753
        %771 = vmatpush.msra.mxu0 %v752
        %772 = vmatpush.msra.mxu0 %v751
        %773 = vmatpush.msra.mxu0 %v750
        %774 = vmatmul.f32.gmra.mxu0 %v756
        %v775 = vpop.f32.mrf.mxu0
        %v776 = vadd.f32 0.0, %v775
        %777 = vdwg.mxu0
        %v778 = vmul.f32 %v776, 0.35355338
        %780 = vrot.lane.b32.xlu0 %v778, 120
        %v781 = vpop.permute.xlu0 %780
        %783 = vrot.lane.b32.xlu0 %v778, 112
        %v784 = vpop.permute.xlu0 %783
        %786 = vrot.lane.b32.xlu0 %v778, 104
        %v787 = vpop.permute.xlu0 %786
        %v789 = vrot.slane %v784, 4
        %vm790 = vcmask 1047556
        %v791 = vsel %vm790, %v789, %v778
        %v792 = vrot.slane %v778, 4
        %v793 = vsel %vm790, %v784, %v792
        %v795 = vunpack.c.l.s4 1983009808
        %v796 = vunpack.c.0.s8 %v795
        %v797 = vperm.slane %v791, %v796
        %v799 = vunpack.c.l.s4 1983009808
        %v800 = vunpack.c.0.s8 %v799
        %v801 = vperm.slane %v793, %v800
        %v802 = vrot.slane %v787, 4
        %v803 = vsel %vm790, %v802, %v781
        %v804 = vrot.slane %v781, 4
        %v805 = vsel %vm790, %v787, %v804
        %v807 = vunpack.c.l.s4 1983009808
        %v808 = vunpack.c.0.s8 %v807
        %v809 = vperm.slane %v803, %v808
        %v811 = vunpack.c.l.s4 1983009808
        %v812 = vunpack.c.0.s8 %v811
        %v813 = vperm.slane %v805, %v812
        %v814 = vrot.slane %v809, 4
        %v815 = vsel %vm790, %v814, %v797
        %v816 = vrot.slane %v797, 4
        %v817 = vsel %vm790, %v809, %v816
        %v819 = vunpack.c.l.s4 1934713408
        %v820 = vunpack.c.0.s8 %v819
        %v821 = vperm.slane %v815, %v820
        %v823 = vunpack.c.l.s4 1934713408
        %v824 = vunpack.c.0.s8 %v823
        %v825 = vperm.slane %v817, %v824
        %v826 = vrot.slane %v813, 4
        %v827 = vsel %vm790, %v826, %v801
        %v828 = vrot.slane %v801, 4
        %v829 = vsel %vm790, %v813, %v828
        %v831 = vunpack.c.l.s4 1934713408
        %v832 = vunpack.c.0.s8 %v831
        %v833 = vperm.slane %v827, %v832
        %v835 = vunpack.c.l.s4 1934713408
        %v836 = vunpack.c.0.s8 %v835
        %v837 = vperm.slane %v829, %v836
        %v838 = vrot.slane %v821, 4
        %v839 = vsel %vm790, 0.0, %v838
        %v840 = vrot.slane %v825, 4
        %v841 = vsel %vm790, 0.0, %v840
        %v842 = vrot.slane %v833, 4
        %v843 = vsel %vm790, 0.0, %v842
        %v844 = vrot.slane %v837, 4
        %v845 = vsel %vm790, 0.0, %v844
        %v846 = vsel %vm790, %v840, %v821
        %v848 = vunpack.c.l.s4 1983009808
        %v849 = vunpack.c.0.s8 %v848
        %v850 = vperm.slane %v846, %v849
        %v851 = vrot.slane %v841, 4
        %v852 = vsel %vm790, %v851, %v839
        %v854 = vunpack.c.l.s4 1983009808
        %v855 = vunpack.c.0.s8 %v854
        %v856 = vperm.slane %v852, %v855
        %v857 = vsel %vm790, %v844, %v833
        %v859 = vunpack.c.l.s4 1983009808
        %v860 = vunpack.c.0.s8 %v859
        %v861 = vperm.slane %v857, %v860
        %v862 = vrot.slane %v845, 4
        %v863 = vsel %vm790, %v862, %v843
        %v865 = vunpack.c.l.s4 1983009808
        %v866 = vunpack.c.0.s8 %v865
        %v867 = vperm.slane %v863, %v866
        %v868 = vrot.slane %v856, 4
        %v869 = vsel %vm790, %v868, %v850
        %v870 = vrot.slane %v850, 4
        %v871 = vsel %vm790, %v856, %v870
        %v873 = vunpack.c.l.s4 1934713408
        %v874 = vunpack.c.0.s8 %v873
        %v875 = vperm.slane %v869, %v874
        %v877 = vunpack.c.l.s4 1934713408
        %v878 = vunpack.c.0.s8 %v877
        %v879 = vperm.slane %v871, %v878
        %v880 = vrot.slane %v867, 4
        %v881 = vsel %vm790, %v880, %v861
        %v882 = vrot.slane %v861, 4
        %v883 = vsel %vm790, %v867, %v882
        %v885 = vunpack.c.l.s4 1934713408
        %v886 = vunpack.c.0.s8 %v885
        %v887 = vperm.slane %v881, %v886
        %v889 = vunpack.c.l.s4 1934713408
        %v890 = vunpack.c.0.s8 %v889
        %v891 = vperm.slane %v883, %v890
        %v892 = vrot.slane %v887, 4
        %v893 = vsel %vm790, %v892, %v875
        %v894 = vrot.slane %v875, 4
        %v895 = vsel %vm790, %v887, %v894
        %v896 = vrot.slane %v891, 4
        %v897 = vsel %vm790, %v896, %v879
        %v898 = vrot.slane %v879, 4
        %v899 = vsel %vm790, %v891, %v898
        %v900 = vld [vmem:[#allocation2] sm:$0xff]
        %v901 = vld [vmem:[#allocation2 + $0x8] sm:$0xff]
        %v902 = vld [vmem:[#allocation2 + $0x10] sm:$0xff]
        %v903 = vld [vmem:[#allocation2 + $0x18] sm:$0xff]
        %vm904 = vcmask 64512
        %v906 = vsel %vm904, %v893, 0
        %v909 = vsel %vm904, %v900, 0
        %911 = vmatpush.xpose.msra.mxu0 0.0
        %912 = vmatpush.xpose.msra.mxu0 0.0
        %913 = vmatpush.xpose.msra.mxu0 0.0
        %914 = vmatpush.xpose.msra.mxu0 0.0
        %915 = vmatpush.xpose.msra.mxu0 0.0
        %916 = vmatpush.xpose.msra.mxu0 0.0
        %917 = vmatpush.xpose.msra.mxu0 0.0
        %918 = vmatpush.xpose.msra.mxu0 0.0
        %919 = vmatpush.xpose.msra.mxu0 0.0
        %920 = vmatpush.xpose.msra.mxu0 0.0
        %921 = vmatpush.xpose.msra.mxu0 0.0
        %922 = vmatpush.xpose.msra.mxu0 0.0
        %923 = vmatpush.xpose.msra.mxu0 0.0
        %924 = vmatpush.xpose.msra.mxu0 0.0
        %925 = vmatpush.xpose.msra.mxu0 0.0
        %926 = vmatpush.xpose.msra.mxu0 %v909
        %927 = vmatmul.f32.gmra.mxu0 %v906
        %v928 = vpop.f32.mrf.mxu0
        %v929 = vadd.f32 0.0, %v928
        %930 = vdwg.mxu0
        %v932 = vsel %vm904, %v895, 0
        %v935 = vsel %vm904, %v901, 0
        %937 = vmatpush.xpose.msra.mxu0 0.0
        %938 = vmatpush.xpose.msra.mxu0 0.0
        %939 = vmatpush.xpose.msra.mxu0 0.0
        %940 = vmatpush.xpose.msra.mxu0 0.0
        %941 = vmatpush.xpose.msra.mxu0 0.0
        %942 = vmatpush.xpose.msra.mxu0 0.0
        %943 = vmatpush.xpose.msra.mxu0 0.0
        %944 = vmatpush.xpose.msra.mxu0 0.0
        %945 = vmatpush.xpose.msra.mxu0 0.0
        %946 = vmatpush.xpose.msra.mxu0 0.0
        %947 = vmatpush.xpose.msra.mxu0 0.0
        %948 = vmatpush.xpose.msra.mxu0 0.0
        %949 = vmatpush.xpose.msra.mxu0 0.0
        %950 = vmatpush.xpose.msra.mxu0 0.0
        %951 = vmatpush.xpose.msra.mxu0 0.0
        %952 = vmatpush.xpose.msra.mxu0 %v935
        %953 = vmatmul.f32.gmra.mxu0 %v932
        %v954 = vpop.f32.mrf.mxu0
        %v955 = vadd.f32 0.0, %v954
        %956 = vdwg.mxu0
        %v958 = vsel %vm904, %v897, 0
        %v961 = vsel %vm904, %v902, 0
        %963 = vmatpush.xpose.msra.mxu0 0.0
        %964 = vmatpush.xpose.msra.mxu0 0.0
        %965 = vmatpush.xpose.msra.mxu0 0.0
        %966 = vmatpush.xpose.msra.mxu0 0.0
        %967 = vmatpush.xpose.msra.mxu0 0.0
        %968 = vmatpush.xpose.msra.mxu0 0.0
        %969 = vmatpush.xpose.msra.mxu0 0.0
        %970 = vmatpush.xpose.msra.mxu0 0.0
        %971 = vmatpush.xpose.msra.mxu0 0.0
        %972 = vmatpush.xpose.msra.mxu0 0.0
        %973 = vmatpush.xpose.msra.mxu0 0.0
        %974 = vmatpush.xpose.msra.mxu0 0.0
        %975 = vmatpush.xpose.msra.mxu0 0.0
        %976 = vmatpush.xpose.msra.mxu0 0.0
        %977 = vmatpush.xpose.msra.mxu0 0.0
        %978 = vmatpush.xpose.msra.mxu0 %v961
        %979 = vmatmul.f32.gmra.mxu0 %v958
        %v980 = vpop.f32.mrf.mxu0
        %v981 = vadd.f32 0.0, %v980
        %982 = vdwg.mxu0
        %v984 = vsel %vm904, %v899, 0
        %v987 = vsel %vm904, %v903, 0
        %989 = vmatpush.xpose.msra.mxu0 0.0
        %990 = vmatpush.xpose.msra.mxu0 0.0
        %991 = vmatpush.xpose.msra.mxu0 0.0
        %992 = vmatpush.xpose.msra.mxu0 0.0
        %993 = vmatpush.xpose.msra.mxu0 0.0
        %994 = vmatpush.xpose.msra.mxu0 0.0
        %995 = vmatpush.xpose.msra.mxu0 0.0
        %996 = vmatpush.xpose.msra.mxu0 0.0
        %997 = vmatpush.xpose.msra.mxu0 0.0
        %998 = vmatpush.xpose.msra.mxu0 0.0
        %999 = vmatpush.xpose.msra.mxu0 0.0
        %1000 = vmatpush.xpose.msra.mxu0 0.0
        %1001 = vmatpush.xpose.msra.mxu0 0.0
        %1002 = vmatpush.xpose.msra.mxu0 0.0
        %1003 = vmatpush.xpose.msra.mxu0 0.0
        %1004 = vmatpush.xpose.msra.mxu0 %v987
        %1005 = vmatmul.f32.gmra.mxu0 %v984
        %v1006 = vpop.f32.mrf.mxu0
        %v1007 = vadd.f32 0.0, %v1006
        %1008 = vdwg.mxu0
        %v1009 = vsel %vm904, %v929, -inf
        %1010 = vmax.xlane.f32.xlu0 %v1009
        %v1011 = vpop.xlane.xlu0 %1010
        %v1012 = vsel %vm904, %v955, -inf
        %1013 = vmax.xlane.f32.xlu0 %v1012
        %v1014 = vpop.xlane.xlu0 %1013
        %v1015 = vsel %vm904, %v981, -inf
        %1016 = vmax.xlane.f32.xlu0 %v1015
        %v1017 = vpop.xlane.xlu0 %1016
        %v1018 = vsel %vm904, %v1007, -inf
        %1019 = vmax.xlane.f32.xlu0 %v1018
        %v1020 = vpop.xlane.xlu0 %1019
        %v1021 = vsub.f32 %v929, %v1011
        %v1022 = vsub.f32 %v955, %v1014
        %v1023 = vsub.f32 %v981, %v1017
        %v1024 = vsub.f32 %v1007, %v1020
        %v1025 = vmul.f32 %v1021, 1.442695
        %v1026 = vpow.pop %v1025
        %v1027 = vmul.f32 %v1022, 1.442695
        %v1028 = vpow.pop %v1027
        %v1029 = vmul.f32 %v1023, 1.442695
        %v1030 = vpow.pop %v1029
        %v1031 = vmul.f32 %v1024, 1.442695
        %v1032 = vpow.pop %v1031
        %v1033 = vsel %vm904, %v1026, 0.0
        %1034 = vadd.xlane.f32.xlu0 %v1033
        %v1035 = vpop.xlane.xlu0 %1034
        %v1036 = vsel %vm904, %v1028, 0.0
        %1037 = vadd.xlane.f32.xlu0 %v1036
        %v1038 = vpop.xlane.xlu0 %1037
        %v1039 = vsel %vm904, %v1030, 0.0
        %1040 = vadd.xlane.f32.xlu0 %v1039
        %v1041 = vpop.xlane.xlu0 %1040
        %v1042 = vsel %vm904, %v1032, 0.0
        %1043 = vadd.xlane.f32.xlu0 %v1042
        %v1044 = vpop.xlane.xlu0 %1043
        %v1045 = vld [vmem:[#allocation3] sm:$0xff]
        %v1046 = vld [vmem:[#allocation3 + $0x8] sm:$0xff]
        %v1047 = vld [vmem:[#allocation3 + $0x10] sm:$0xff]
        %v1048 = vld [vmem:[#allocation3 + $0x18] sm:$0xff]
        %v1050 = vsel %vm904, %v1026, 0
        %1052 = vmatpush.msra.mxu0 0.0
        %1053 = vmatpush.msra.mxu0 0.0
        %1054 = vmatpush.msra.mxu0 0.0
        %1055 = vmatpush.msra.mxu0 0.0
        %1056 = vmatpush.msra.mxu0 0.0
        %1057 = vmatpush.msra.mxu0 0.0
        %1058 = vmatpush.msra.mxu0 0.0
        %1059 = vmatpush.msra.mxu0 0.0
        %1060 = vmatpush.msra.mxu0 0.0
        %1061 = vmatpush.msra.mxu0 0.0
        %1062 = vmatpush.msra.mxu0 0.0
        %1063 = vmatpush.msra.mxu0 0.0
        %1064 = vmatpush.msra.mxu0 0.0
        %1065 = vmatpush.msra.mxu0 0.0
        %1066 = vmatpush.msra.mxu0 0.0
        %1067 = vmatpush.msra.mxu0 %v1045
        %1068 = vmatmul.f32.gmra.mxu0 %v1050
        %v1069 = vpop.f32.mrf.mxu0
        %v1070 = vadd.f32 0.0, %v1069
        %1071 = vdwg.mxu0
        %v1073 = vsel %vm904, %v1028, 0
        %1075 = vmatpush.msra.mxu0 0.0
        %1076 = vmatpush.msra.mxu0 0.0
        %1077 = vmatpush.msra.mxu0 0.0
        %1078 = vmatpush.msra.mxu0 0.0
        %1079 = vmatpush.msra.mxu0 0.0
        %1080 = vmatpush.msra.mxu0 0.0
        %1081 = vmatpush.msra.mxu0 0.0
        %1082 = vmatpush.msra.mxu0 0.0
        %1083 = vmatpush.msra.mxu0 0.0
        %1084 = vmatpush.msra.mxu0 0.0
        %1085 = vmatpush.msra.mxu0 0.0
        %1086 = vmatpush.msra.mxu0 0.0
        %1087 = vmatpush.msra.mxu0 0.0
        %1088 = vmatpush.msra.mxu0 0.0
        %1089 = vmatpush.msra.mxu0 0.0
        %1090 = vmatpush.msra.mxu0 %v1046
        %1091 = vmatmul.f32.gmra.mxu0 %v1073
        %v1092 = vpop.f32.mrf.mxu0
        %v1093 = vadd.f32 0.0, %v1092
        %1094 = vdwg.mxu0
        %v1096 = vsel %vm904, %v1030, 0
        %1098 = vmatpush.msra.mxu0 0.0
        %1099 = vmatpush.msra.mxu0 0.0
        %1100 = vmatpush.msra.mxu0 0.0
        %1101 = vmatpush.msra.mxu0 0.0
        %1102 = vmatpush.msra.mxu0 0.0
        %1103 = vmatpush.msra.mxu0 0.0
        %1104 = vmatpush.msra.mxu0 0.0
        %1105 = vmatpush.msra.mxu0 0.0
        %1106 = vmatpush.msra.mxu0 0.0
        %1107 = vmatpush.msra.mxu0 0.0
        %1108 = vmatpush.msra.mxu0 0.0
        %1109 = vmatpush.msra.mxu0 0.0
        %1110 = vmatpush.msra.mxu0 0.0
        %1111 = vmatpush.msra.mxu0 0.0
        %1112 = vmatpush.msra.mxu0 0.0
        %1113 = vmatpush.msra.mxu0 %v1047
        %1114 = vmatmul.f32.gmra.mxu0 %v1096
        %v1115 = vpop.f32.mrf.mxu0
        %v1116 = vadd.f32 0.0, %v1115
        %1117 = vdwg.mxu0
        %v1119 = vsel %vm904, %v1032, 0
        %1121 = vmatpush.msra.mxu0 0.0
        %1122 = vmatpush.msra.mxu0 0.0
        %1123 = vmatpush.msra.mxu0 0.0
        %1124 = vmatpush.msra.mxu0 0.0
        %1125 = vmatpush.msra.mxu0 0.0
        %1126 = vmatpush.msra.mxu0 0.0
        %1127 = vmatpush.msra.mxu0 0.0
        %1128 = vmatpush.msra.mxu0 0.0
        %1129 = vmatpush.msra.mxu0 0.0
        %1130 = vmatpush.msra.mxu0 0.0
        %1131 = vmatpush.msra.mxu0 0.0
        %1132 = vmatpush.msra.mxu0 0.0
        %1133 = vmatpush.msra.mxu0 0.0
        %1134 = vmatpush.msra.mxu0 0.0
        %1135 = vmatpush.msra.mxu0 0.0
        %1136 = vmatpush.msra.mxu0 %v1048
        %1137 = vmatmul.f32.gmra.mxu0 %v1119
        %v1138 = vpop.f32.mrf.mxu0
        %v1139 = vadd.f32 0.0, %v1138
        %1140 = vdwg.mxu0
        %v1141 = vrcp.pop %v1035
        %v1142 = vrcp.pop %v1038
        %v1143 = vrcp.pop %v1041
        %v1144 = vrcp.pop %v1044
        %v1145 = vmul.f32 %v1070, %v1141
        %v1146 = vmul.f32 %v1093, %v1142
        %v1147 = vmul.f32 %v1116, %v1143
        %v1148 = vmul.f32 %v1139, %v1144
        %v1149 = vrot.slane %v1147, 4
        %v1150 = vsel %vm790, %v1149, %v1145
        %v1151 = vrot.slane %v1145, 4
        %v1152 = vsel %vm790, %v1147, %v1151
        %v1154 = vunpack.c.l.s4 1983009808
        %v1155 = vunpack.c.0.s8 %v1154
        %v1156 = vperm.slane %v1150, %v1155
        %v1158 = vunpack.c.l.s4 1983009808
        %v1159 = vunpack.c.0.s8 %v1158
        %v1160 = vperm.slane %v1152, %v1159
        %v1161 = vrot.slane %v1148, 4
        %v1162 = vsel %vm790, %v1161, %v1146
        %v1163 = vrot.slane %v1146, 4
        %v1164 = vsel %vm790, %v1148, %v1163
        %v1166 = vunpack.c.l.s4 1983009808
        %v1167 = vunpack.c.0.s8 %v1166
        %v1168 = vperm.slane %v1162, %v1167
        %v1170 = vunpack.c.l.s4 1983009808
        %v1171 = vunpack.c.0.s8 %v1170
        %v1172 = vperm.slane %v1164, %v1171
        %v1173 = vrot.slane %v1168, 4
        %v1174 = vsel %vm790, %v1173, %v1156
        %v1175 = vrot.slane %v1156, 4
        %v1176 = vsel %vm790, %v1168, %v1175
        %v1178 = vunpack.c.l.s4 1934713408
        %v1179 = vunpack.c.0.s8 %v1178
        %v1180 = vperm.slane %v1174, %v1179
        %v1182 = vunpack.c.l.s4 1934713408
        %v1183 = vunpack.c.0.s8 %v1182
        %v1184 = vperm.slane %v1176, %v1183
        %v1185 = vrot.slane %v1172, 4
        %v1186 = vsel %vm790, %v1185, %v1160
        %v1187 = vrot.slane %v1160, 4
        %v1188 = vsel %vm790, %v1172, %v1187
        %v1190 = vunpack.c.l.s4 1934713408
        %v1191 = vunpack.c.0.s8 %v1190
        %v1192 = vperm.slane %v1186, %v1191
        %v1194 = vunpack.c.l.s4 1934713408
        %v1195 = vunpack.c.0.s8 %v1194
        %v1196 = vperm.slane %v1188, %v1195
        %v1197 = vrot.slane %v1180, 4
        %v1198 = vsel %vm790, 0.0, %v1197
        %v1199 = vrot.slane %v1184, 4
        %v1200 = vsel %vm790, 0.0, %v1199
        %v1201 = vrot.slane %v1192, 4
        %v1202 = vsel %vm790, 0.0, %v1201
        %v1203 = vrot.slane %v1196, 4
        %v1204 = vsel %vm790, 0.0, %v1203
        %v1205 = vsel %vm790, %v1199, %v1180
        %v1207 = vunpack.c.l.s4 1983009808
        %v1208 = vunpack.c.0.s8 %v1207
        %v1209 = vperm.slane %v1205, %v1208
        %v1210 = vrot.slane %v1200, 4
        %v1211 = vsel %vm790, %v1210, %v1198
        %v1213 = vunpack.c.l.s4 1983009808
        %v1214 = vunpack.c.0.s8 %v1213
        %v1215 = vperm.slane %v1211, %v1214
        %v1216 = vsel %vm790, %v1203, %v1192
        %v1218 = vunpack.c.l.s4 1983009808
        %v1219 = vunpack.c.0.s8 %v1218
        %v1220 = vperm.slane %v1216, %v1219
        %v1221 = vrot.slane %v1204, 4
        %v1222 = vsel %vm790, %v1221, %v1202
        %v1224 = vunpack.c.l.s4 1983009808
        %v1225 = vunpack.c.0.s8 %v1224
        %v1226 = vperm.slane %v1222, %v1225
        %v1227 = vrot.slane %v1215, 4
        %v1228 = vsel %vm790, %v1227, %v1209
        %v1229 = vrot.slane %v1209, 4
        %v1230 = vsel %vm790, %v1215, %v1229
        %v1232 = vunpack.c.l.s4 1934713408
        %v1233 = vunpack.c.0.s8 %v1232
        %v1234 = vperm.slane %v1228, %v1233
        %v1236 = vunpack.c.l.s4 1934713408
        %v1237 = vunpack.c.0.s8 %v1236
        %v1238 = vperm.slane %v1230, %v1237
        %v1239 = vrot.slane %v1226, 4
        %v1240 = vsel %vm790, %v1239, %v1220
        %v1241 = vrot.slane %v1220, 4
        %v1242 = vsel %vm790, %v1226, %v1241
        %v1244 = vunpack.c.l.s4 1934713408
        %v1245 = vunpack.c.0.s8 %v1244
        %v1246 = vperm.slane %v1240, %v1245
        %v1248 = vunpack.c.l.s4 1934713408
        %v1249 = vunpack.c.0.s8 %v1248
        %v1250 = vperm.slane %v1242, %v1249
        %v1251 = vrot.slane %v1246, 4
        %v1252 = vsel %vm790, %v1251, %v1234
        %v1253 = vrot.slane %v1234, 4
        %v1254 = vsel %vm790, %v1246, %v1253
        %v1255 = vrot.slane %v1250, 4
        %v1256 = vsel %vm790, %v1255, %v1238
        %v1257 = vrot.slane %v1238, 4
        %v1258 = vsel %vm790, %v1250, %v1257
        %1260 = vrot.lane.b32.xlu0 %v1254, 8
        %v1261 = vpop.permute.xlu0 %1260
        %1264 = vrot.lane.b32.xlu0 %v1256, 16
        %v1265 = vpop.permute.xlu0 %1264
        %1268 = vrot.lane.b32.xlu0 %v1258, 24
        %v1269 = vpop.permute.xlu0 %1268
        %v1271 = vsel %vm904, %v1252, %v1261
        %vm1272 = vcmask 130048
        %v1273 = vsel %vm1272, %v1271, %v1265
        %vm1274 = vcmask 195584
        %v1275 = vsel %vm1274, %v1273, %v1269
        %v1276 = vld [vmem:[%s3] sm:$0xff]
        %v1277 = vld [vmem:[%s3 + $0x8] sm:$0xff]
        %v1278 = vld [vmem:[%s3 + $0x10] sm:$0xff]
        %v1279 = vld [vmem:[%s3 + $0x18] sm:$0xff]
        %v1281 = vsel %vm754, %v1275, 0
        %1283 = vmatpush.msra.mxu0 0.0
        %1284 = vmatpush.msra.mxu0 0.0
        %1285 = vmatpush.msra.mxu0 0.0
        %1286 = vmatpush.msra.mxu0 0.0
        %1287 = vmatpush.msra.mxu0 0.0
        %1288 = vmatpush.msra.mxu0 0.0
        %1289 = vmatpush.msra.mxu0 0.0
        %1290 = vmatpush.msra.mxu0 0.0
        %1291 = vmatpush.msra.mxu0 0.0
        %1292 = vmatpush.msra.mxu0 0.0
        %1293 = vmatpush.msra.mxu0 0.0
        %1294 = vmatpush.msra.mxu0 0.0
        %1295 = vmatpush.msra.mxu0 %v1279
        %1296 = vmatpush.msra.mxu0 %v1278
        %1297 = vmatpush.msra.mxu0 %v1277
        %1298 = vmatpush.msra.mxu0 %v1276
        %1299 = vmatmul.f32.gmra.mxu0 %v1281
        %v1300 = vpop.f32.mrf.mxu0
        %v1301 = vadd.f32 %v749, %v1300
        %1302 = vdwg.mxu0
        %v1303 = vld [vmem:[%s4] sm:$0x1]
        %v1304 = vld [vmem:[%s5] sm:$0x1]
        %v1305 = vsel %vm754, %v1301, 0.0
        %1306 = vadd.xlane.f32.xlu0 %v1305
        %v1307 = vpop.xlane.xlu0 %1306
        %v1308 = vrcp.pop 32.0
        %v1309 = vmul.f32 32.0, %v1308
        %v1310 = vsub.f32 1.0, %v1309
        %v1311 = vmul.f32 %v1308, %v1310
        %v1312 = vadd.f32 %v1308, %v1311
        %vm1313 = vweird.f32 %v1308
        %v1314 = vsel %vm1313, %v1308, %v1312
        %v1315 = vmul.f32 %v1307, %v1314
        %v1316 = vsub.f32 %v1301, %v1315
        %v1317 = vmul.f32 %v1316, %v1316
        %v1318 = vsel %vm754, %v1317, 0.0
        %1319 = vadd.xlane.f32.xlu0 %v1318
        %v1320 = vpop.xlane.xlu0 %1319
        %v1321 = vmul.f32 %v1320, %v1314
        %v1322 = vadd.f32 %v1321, 1e-06
        %v1323 = vrsqrt.pop %v1322
        %v1324 = vmul.f32 %v1323, %v1322
        %v1325 = vmul.f32 %v1324, %v1323
        %v1326 = vmul.f32 0.5, %v1325
        %v1327 = vsub.f32 1.5, %v1326
        %v1328 = vmul.f32 %v1323, %v1327
        %vm1329 = vweird.f32 %v1322
        %vm1330 = vweird.f32 %v1323
        %vm1331 = vmor %vm1329, %vm1330
        %v1332 = vsel %vm1331, %v1323, %v1328
        %v1333 = vmul.f32 %v1316, %v1332
        %v1335 = vperm.slane %v1303, 0
        %v1337 = vmul.f32 %v1333, %v1335
        %v1339 = vperm.slane %v1304, 0
        %v1341 = vadd.f32 %v1337, %v1339
        %v1342 = vld [vmem:[#allocation7] sm:$0xff]
        %v1343 = vld [vmem:[#allocation7 + $0x8] sm:$0xff]
        %v1344 = vld [vmem:[#allocation7 + $0x10] sm:$0xff]
        %v1345 = vld [vmem:[#allocation7 + $0x18] sm:$0xff]
        %v1346 = vld [vmem:[%s7] sm:$0x1]
        %v1348 = vperm.slane %v1346, 0
        %v1351 = vsel %vm754, %v1341, 0
        %1353 = vmatpush.msra.mxu0 0.0
        %1354 = vmatpush.msra.mxu0 0.0
        %1355 = vmatpush.msra.mxu0 0.0
        %1356 = vmatpush.msra.mxu0 0.0
        %1357 = vmatpush.msra.mxu0 0.0
        %1358 = vmatpush.msra.mxu0 0.0
        %1359 = vmatpush.msra.mxu0 0.0
        %1360 = vmatpush.msra.mxu0 0.0
        %1361 = vmatpush.msra.mxu0 0.0
        %1362 = vmatpush.msra.mxu0 0.0
        %1363 = vmatpush.msra.mxu0 0.0
        %1364 = vmatpush.msra.mxu0 0.0
        %1365 = vmatpush.msra.mxu0 %v1345
        %1366 = vmatpush.msra.mxu0 %v1344
        %1367 = vmatpush.msra.mxu0 %v1343
        %1368 = vmatpush.msra.mxu0 %v1342
        %1369 = vmatmul.f32.gmra.mxu0 %v1351
        %v1370 = vpop.f32.mrf.mxu0
        %v1371 = vadd.f32 %v1348, %v1370
        %1372 = vdwg.mxu0
        %v1373 = vmax.f32 %v1371, 0.0
        %v1374 = vld [vmem:[%s8] sm:$0xff]
        %v1375 = vld [vmem:[%s8 + $0x8] sm:$0xff]
        %v1376 = vld [vmem:[%s8 + $0x10] sm:$0xff]
        %v1377 = vld [vmem:[%s8 + $0x18] sm:$0xff]
        %v1378 = vld [vmem:[%s8 + $0x20] sm:$0xff]
        %v1379 = vld [vmem:[%s8 + $0x28] sm:$0xff]
        %v1380 = vld [vmem:[%s8 + $0x30] sm:$0xff]
        %v1381 = vld [vmem:[%s8 + $0x38] sm:$0xff]
        %v1382 = vld [vmem:[%s9] sm:$0x1]
        %v1384 = vperm.slane %v1382, 0
        %vm1386 = vcmask 523264
        %v1388 = vsel %vm1386, %v1373, 0
        %1390 = vmatpush.msra.mxu0 0.0
        %1391 = vmatpush.msra.mxu0 0.0
        %1392 = vmatpush.msra.mxu0 0.0
        %1393 = vmatpush.msra.mxu0 0.0
        %1394 = vmatpush.msra.mxu0 0.0
        %1395 = vmatpush.msra.mxu0 0.0
        %1396 = vmatpush.msra.mxu0 0.0
        %1397 = vmatpush.msra.mxu0 0.0
        %1398 = vmatpush.msra.mxu0 %v1381
        %1399 = vmatpush.msra.mxu0 %v1380
        %1400 = vmatpush.msra.mxu0 %v1379
        %1401 = vmatpush.msra.mxu0 %v1378
        %1402 = vmatpush.msra.mxu0 %v1377
        %1403 = vmatpush.msra.mxu0 %v1376
        %1404 = vmatpush.msra.mxu0 %v1375
        %1405 = vmatpush.msra.mxu0 %v1374
        %1406 = vmatmul.f32.gmra.mxu0 %v1388
        %v1407 = vpop.f32.mrf.mxu0
        %v1408 = vadd.f32 %v1384, %v1407
        %1409 = vdwg.mxu0
        %v1410 = vadd.f32 %v1408, %v1341
        %v1411 = vld [vmem:[%s10] sm:$0x1]
        %v1412 = vld [vmem:[%s11] sm:$0x1]
        %v1413 = vsel %vm754, %v1410, 0.0
        %1414 = vadd.xlane.f32.xlu0 %v1413
        %v1415 = vpop.xlane.xlu0 %1414
        %v1416 = vmul.f32 %v1415, %v1314
        %v1417 = vsub.f32 %v1410, %v1416
        %v1418 = vmul.f32 %v1417, %v1417
        %v1419 = vsel %vm754, %v1418, 0.0
        %1420 = vadd.xlane.f32.xlu0 %v1419
        %v1421 = vpop.xlane.xlu0 %1420
        %v1422 = vmul.f32 %v1421, %v1314
        %v1423 = vadd.f32 %v1422, 1e-06
        %v1424 = vrsqrt.pop %v1423
        %v1425 = vmul.f32 %v1424, %v1423
        %v1426 = vmul.f32 %v1425, %v1424
        %v1427 = vmul.f32 0.5, %v1426
        %v1428 = vsub.f32 1.5, %v1427
        %v1429 = vmul.f32 %v1424, %v1428
        %vm1430 = vweird.f32 %v1423
        %vm1431 = vweird.f32 %v1424
        %vm1432 = vmor %vm1430, %vm1431
        %v1433 = vsel %vm1432, %v1424, %v1429
        %v1434 = vmul.f32 %v1417, %v1433
        %v1436 = vperm.slane %v1411, 0
        %v1438 = vmul.f32 %v1434, %v1436
        %v1440 = vperm.slane %v1412, 0
        %v1442 = vadd.f32 %v1438, %v1440
        %1443 = vst.msk [vmem:[%s461] sm:$0xff] %vm754, %v1442
        %s1444 = sand.u32 %s309, 1
        %s1445 = scalar_lea.sflag [#allocation6], %s1444
        %s1446 = sand.u32 %s309, 1
        %s1447 = smul.addr %s1446, 8
        %s1448 = scalar_lea.vmem [#allocation9], %s1447
        // Predicated region
        $region81: #{tpu_custom_call.1} parent=67 // pred_check
          %p1449 = pneg %p319
        $region82: #{tpu_custom_call.1} parent=67 // pred_check_branch
          %1451 = sbr.rel (%p1449) target = $region84
        $region83: #{tpu_custom_call.1} parent=67 // pred_region
          %1453 = vsyncadd %s1445, 0
          %s1454 = sadd.s32 %s35, %s34
          %s1455 = smul.addr %s1454, 8
          %s1456 = scalar_lea.hbm %s12, %s1455
          %s1458 = sshll.u32 %s1448, 4
          %s1459 = int_to_ptr.vmem [resolvable:$true] %s1458
          %s1460 = sshll.u32 %s1456, 4
          %s1461 = int_to_ptr.hbm [resolvable:$true] %s1460
          %1463 = dma.vmem_to_hbm [thread:$0]  %s1459, 128, %s1461, %s1445
        $region84: #{tpu_custom_call.1} parent=67 // pred_fallthru
          _
      $region68: #{tpu_custom_call.1} parent=5 // pred_fallthru
        _
      %p1464 = scmp.le.s32.totalorder 2, %s25
      // Predicated region
      $region85: #{tpu_custom_call.1} parent=5 // pred_check
        %p1465 = pneg %p1464
      $region86: #{tpu_custom_call.1} parent=5 // pred_check_branch
        %1467 = sbr.rel (%p1465) target = $region88
      $region87: #{tpu_custom_call.1} parent=5 // pred_region
        %s1468 = ssub.s32 %s25, 2
        // Predicated region
        $region89: #{tpu_custom_call.1} parent=87 // pred_check
          %p1469 = pneg %p325
        $region90: #{tpu_custom_call.1} parent=87 // pred_check_branch
          %1471 = sbr.rel (%p1469) target = $region92
        $region91: #{tpu_custom_call.1} parent=87 // pred_region
          %s1472 = sand.u32 %s310, 1
          %s1473 = scalar_lea.sflag [#allocation6], %s1472
          %s1474 = sand.u32 %s310, 1
          %s1475 = smul.addr %s1474, 8
          %s1476 = scalar_lea.vmem [#allocation9], %s1475
          %1478 = dma.done %s1473, 128
        $region92: #{tpu_custom_call.1} parent=87 // pred_fallthru
          _
      $region88: #{tpu_custom_call.1} parent=5 // pred_fallthru
        _
    $region6: #{tpu_custom_call.1} parent=1 // loop_footer
      %s29 = sadd.s32 1, %s25
    $region7: #{tpu_custom_call.1} parent=1 // loop_footer_branch
      %24 = sbr.rel target = $region3
    $region8: #{tpu_custom_call.1} parent=1 // loop_exit
      _
    %1479 = vsyncpa [#allocation5], 1
    %s1480 = scalar_lea.sflag [#allocation5], 1
    %1481 = vsyncpa %s1480, 1
    %1482 = vsyncpa [#allocation8], 1
    %1483 = vsyncpa [#allocation6], 1
    %s1484 = scalar_lea.sflag [#allocation6], 1
    %1485 = vsyncpa %s1484, 1

</llo_original>
